<compile_context>
chip_gen: v7x
topology: tpu7x:2x2x1
jax: 0.10.0
libtpu: 0.0.40
codegen_flags: <defaults>
</compile_context>

<pallas_src>
import functools

import numpy as np
import jax
import jax.numpy as jnp
from jax import lax
from jax.experimental import pallas as pl
from jax.experimental.pallas import tpu as pltpu


def shallow_convnet_kernel(x_ref, wf_ref, bfb_ref, pool_ref, lw_ref, lb_ref, out_ref,
                           *, nCh, C, T1, T2, F, Bblk):
    # x arrives in its native (Bblk, nCh, nTime) order; one small VMEM-resident
    # sublane re-layout here instead of an extra HBM pass over x in the wrapper.
    slab = pltpu.einshape("bct->cbt", x_ref[...])          # (nCh, Bblk, nTime)

    # --- temporal unfold: one lane-offset slice per tap, shared across channels
    #     and the whole batch block (C slices total). ---
    # TODO(synk): for large C, build xu into a VMEM scratch with lax.fori_loop
    # (bounds trace size / vreg pressure), or switch to a Toeplitz-of-w1 matmul.
    parts = [slab[:, :, c:c + T1].reshape(nCh, Bblk * T1) for c in range(C)]
    xu = jnp.concatenate(parts, axis=0)                    # (C*nCh, Bblk*T1)

    # --- fused temporal conv + depthwise spatial conv + BN scale: one MXU matmul,
    #     then the fused BN bias. ---
    y = jnp.dot(wf_ref[...], xu, preferred_element_type=jnp.float32)   # (F, Bblk*T1)
    y = y + bfb_ref[...]                                   # fused BN bias (F,1) broadcast
    y = y * y                                              # Lambda(torch.square)

    # --- AvgPool2d((1,P),(1,S)) as one matmul against kron(I_Bblk, pool_mat):
    #     batch stays in the lane dim, no (F,B*T1)->(F*B,T1) relayout. ---
    pooled = jnp.dot(y, pool_ref[...], preferred_element_type=jnp.float32)  # (F, Bblk*T2)
    feat = jnp.log(pooled)                                 # Lambda(torch.log)

    # --- Flatten (F-major, T2-minor) with a tiny transpose of the (F,Bblk,T2)
    #     tile, then a single lane-dense matmul for the Linear.
    #     nn.Dropout(p=0.5) is the identity at inference and is omitted. ---
    feat_b = pltpu.einshape("fbt->bft", feat.reshape(F, Bblk, T2)).reshape(Bblk, F * T2)
    logits = jnp.dot(feat_b, lw_ref[...],
                     preferred_element_type=jnp.float32) + lb_ref[...]  # (Bblk, nCls_pad)

    # --- LogSoftmax(dim=1); padded lanes carry a -1e30 bias, so they never win
    #     the max and exp to exactly 0. ---
    m = jnp.max(logits, axis=-1, keepdims=True)
    lse = m + jnp.log(jnp.sum(jnp.exp(logits - m), axis=-1, keepdims=True))
    out_ref[...] = logits - lse


def _derive_bblk(B, *, nCh, nTime, C, T1, T2, F, nCls_pad, itemsize,
                 budget_bytes, min_steps):
    """Largest multiple-of-8 batch block whose per-step VMEM footprint fits."""
    B8 = max(8, ((B + 7) // 8) * 8)

    def footprint(bb):
        f = 2 * bb * nCh * nTime * itemsize        # double-buffered x block
        f += bb * nCh * nTime * itemsize           # transposed slab copy
        f += C * nCh * bb * T1 * itemsize          # unfolded xu (the real VMEM hog)
        f += 2 * F * bb * T1 * 4                   # y (+ squared temp), f32
        f += 2 * bb * T1 * bb * T2 * 4             # kron pooling matrix (dbl-buffered)
        f += 2 * F * bb * T2 * 4                   # pooled / feat
        f += 2 * bb * nCls_pad * 4                 # output block (dbl-buffered)
        return f

    cap = max(8, (B8 // max(min_steps, 1) // 8) * 8)   # e.g. min_steps=2 on v7x megacore
    bb = min(B8, cap)
    while bb > 8 and footprint(bb) > budget_bytes:
        bb -= 8
    return bb


def shallow_convnet_forward(x, w1, w2, bn, Wlin, blin, *, C, P, S, eps=1e-5,
                            Bblk=None, min_steps=1, in_dtype=jnp.float32,
                            vmem_budget_bytes=24 * 1024 * 1024):
    B, _, nCh, nTime = x.shape
    F = w1.shape[0]
    nCls = Wlin.shape[0]
    T1 = nTime - C + 1
    T2 = (T1 - P) // S + 1
    nCls_pad = ((nCls + 127) // 128) * 128             # lane-dense logits / output

    itemsize = jnp.dtype(in_dtype).itemsize
    if Bblk is None:
        Bblk = _derive_bblk(B, nCh=nCh, nTime=nTime, C=C, T1=T1, T2=T2, F=F,
                            nCls_pad=nCls_pad, itemsize=itemsize,
                            budget_bytes=vmem_budget_bytes, min_steps=min_steps)
    Bblk = max(8, (Bblk // 8) * 8)                      # aligned, unmasked output stores
    B_pad = ((B + Bblk - 1) // Bblk) * Bblk

    # ---- fold conv1 (temporal) + conv2 (depthwise spatial) + BN scale/bias ----
    gamma, beta, mean, var = bn[:, 0], bn[:, 1], bn[:, 2], bn[:, 3]
    scale = gamma * lax.rsqrt(var + eps)                                # (F,)
    # wf[f, c*nCh + ch] = scale[f] * w1[f, c] * w2[f, ch]
    wf = (scale[:, None, None] * w1[:, :, None] * w2[:, None, :]).reshape(F, C * nCh)
    wf = wf.astype(in_dtype)
    bfb = (beta - mean * scale).reshape(F, 1).astype(jnp.float32)

    # ---- batched pooling matrix kron(I_Bblk, pool_mat): pooling stays a single
    #      matmul on the (F, Bblk*T1) activation layout (no in-kernel relayout) ----
    t_idx = jnp.arange(T1)[:, None]
    p_idx = jnp.arange(T2)[None, :]
    pool_mat = (((t_idx >= p_idx * S) & (t_idx < p_idx * S + P))
                .astype(jnp.float32)) / float(P)
    pool_bd = jnp.kron(jnp.eye(Bblk, dtype=jnp.float32), pool_mat)      # (Bblk*T1, Bblk*T2)

    # ---- linear weight padded to lane-dense nCls_pad; padded logits get a -1e30
    #      bias so they never win the softmax max and exp to exactly 0 ----
    lw = jnp.pad(Wlin.T.astype(jnp.float32), ((0, 0), (0, nCls_pad - nCls)))  # (F*T2, nCls_pad)
    lb = jnp.concatenate([blin.astype(jnp.float32),
                          jnp.full((nCls_pad - nCls,), -1e30, jnp.float32)]).reshape(1, nCls_pad)

    # ---- present x in its native (B, nCh, nTime) order (free reshape, no HBM
    #      transpose pass); pad the batch by replicating the last real sample so
    #      padded rows stay finite through log / log-softmax ----
    xb = x.reshape(B, nCh, nTime).astype(in_dtype)
    if B_pad != B:
        xb = jnp.pad(xb, ((0, B_pad - B), (0, 0), (0, 0)), mode='edge')

    kernel = functools.partial(shallow_convnet_kernel,
                               nCh=nCh, C=C, T1=T1, T2=T2, F=F, Bblk=Bblk)

    out = pl.pallas_call(
        kernel,
        out_shape=jax.ShapeDtypeStruct((B_pad, nCls_pad), jnp.float32),
        grid_spec=pltpu.PrefetchScalarGridSpec(
            num_scalar_prefetch=0,
            grid=(B_pad // Bblk,),
            in_specs=[
                pl.BlockSpec((Bblk, nCh, nTime), lambda b: (b, 0, 0)),
                pl.BlockSpec((F, C * nCh), lambda b: (0, 0)),
                pl.BlockSpec((F, 1), lambda b: (0, 0)),
                pl.BlockSpec((Bblk * T1, Bblk * T2), lambda b: (0, 0)),
                pl.BlockSpec((F * T2, nCls_pad), lambda b: (0, 0)),
                pl.BlockSpec((1, nCls_pad), lambda b: (0, 0)),
            ],
            out_specs=pl.BlockSpec((Bblk, nCls_pad), lambda b: (b, 0)),
        ),
        compiler_params=pltpu.CompilerParams(
            dimension_semantics=("parallel",),
            # Raise the scoped-VMEM ceiling (defaults: 16 MiB v5e / 32 MiB v6e,v7x);
            # 48 MiB leaves headroom under v7x's 64 MiB physical VMEM.
            vmem_limit_bytes=48 * 1024 * 1024),
    )(xb, wf, bfb, pool_bd, lw, lb)
    return out[:B, :nCls]


def reference_forward(x, w1, w2, bn, Wlin, blin, *, C, P, S):
    """Pure-JAX reference mirroring the PyTorch forward (eval mode)."""
    F = w1.shape[0]
    dn = ('NCHW', 'OIHW', 'NCHW')
    w1_4d = w1[:, None, None, :]           # (F, 1, 1, C)
    w2_4d = w2[:, None, :, None]           # (F, 1, nCh, 1)
    y = lax.conv_general_dilated(x, w1_4d, (1, 1), 'VALID', dimension_numbers=dn)
    y = lax.conv_general_dilated(y, w2_4d, (1, 1), 'VALID',
                                 dimension_numbers=dn, feature_group_count=F)
    gamma, beta, mean, var = bn[:, 0], bn[:, 1], bn[:, 2], bn[:, 3]
    y = (y - mean[None, :, None, None]) / jnp.sqrt(var[None, :, None, None] + 1e-5)
    y = y * gamma[None, :, None, None] + beta[None, :, None, None]
    y = y * y
    T1 = y.shape[-1]
    T2 = (T1 - P) // S + 1
    y = jnp.stack([y[..., p * S:p * S + P].mean(-1) for p in range(T2)], axis=-1)
    y = jnp.log(y)
    flat = y.reshape(y.shape[0], -1)       # (B, F*T2)  (F-major, T2-minor)
    logits = flat @ Wlin.T + blin
    return jax.nn.log_softmax(logits, axis=1)


def renorm(w, maxnorm):
    """torch.renorm(p=2, dim=0, maxnorm) equivalent (max-norm weight constraint)."""
    flat = w.reshape(w.shape[0], -1)
    n = jnp.sqrt(jnp.sum(flat * flat, axis=1, keepdims=True))
    scale = jnp.minimum(1.0, maxnorm / jnp.maximum(n, 1e-12))
    return (flat * scale).reshape(w.shape)


if __name__ == "__main__":
    # Small shapes consistent with ShallowConvNet(nCh, nTime, nCls, F, C, P, S)
    B, nCh, nTime, nCls = 16, 4, 64, 3
    F, C, P, S = 8, 14, 35, 7
    T1 = nTime - C + 1                     # 51
    T2 = (T1 - P) // S + 1                 # 3

    key = jax.random.PRNGKey(0)
    ks = jax.random.split(key, 9)

    x = jax.random.normal(ks[0], (B, 1, nCh, nTime), jnp.float32)

    # Conv2dWithNorm(1, F, (1, C), max_norm=2, bias=False) -> weight (F, 1, 1, C)
    w1 = renorm(0.3 * jax.random.normal(ks[1], (F, C), jnp.float32), 2.0)
    # Conv2dWithNorm(F, F, (nCh, 1), max_norm=2, bias=False, groups=F) -> (F, 1, nCh, 1)
    w2 = renorm(0.3 * jax.random.normal(ks[2], (F, nCh), jnp.float32), 2.0)

    # BatchNorm2d(F) parameters / running stats (eval mode)
    gamma = 1.0 + 0.1 * jax.random.normal(ks[3], (F,), jnp.float32)
    beta = 0.05 * jax.random.normal(ks[4], (F,), jnp.float32)
    rmean = 0.05 * jax.random.normal(ks[5], (F,), jnp.float32)
    rvar = 1.0 + 0.1 * jax.random.uniform(ks[6], (F,), jnp.float32)
    bn = jnp.stack([gamma, beta, rmean, rvar], axis=1)   # (F, 4)

    # LinearWithNorm(F*T2, nCls, max_norm=0.5) -> weight (nCls, F*T2), bias (nCls,)
    Wlin = renorm(0.2 * jax.random.normal(ks[7], (nCls, F * T2), jnp.float32), 0.5)
    blin = 0.05 * jax.random.normal(ks[8], (nCls,), jnp.float32)

    ref = reference_forward(x, w1, w2, bn, Wlin, blin, C=C, P=P, S=S)

    # Auto-derived Bblk: whole batch in one grid step (preferred on v5e/v6e).
    out = shallow_convnet_forward(x, w1, w2, bn, Wlin, blin, C=C, P=P, S=S)
    out = jax.block_until_ready(out)
    np.testing.assert_allclose(np.asarray(out), np.asarray(ref), rtol=1e-4, atol=1e-4)

    # Blocked path (grid=2): exercises multi-step grid / megacore-style sharding.
    out2 = shallow_convnet_forward(x, w1, w2, bn, Wlin, blin, C=C, P=P, S=S, Bblk=8)
    out2 = jax.block_until_ready(out2)
    np.testing.assert_allclose(np.asarray(out2), np.asarray(ref), rtol=1e-4, atol=1e-4)

    print("KERNEL_OK")
</pallas_src>

<mosaic_0001>
module attributes {stable_mosaic.version = 11 : i64} {
  func.func @shallow_convnet_kernel(%arg0: i32, %arg1: memref<16x4x64xf32, #tpu.memory_space<vmem>>, %arg2: memref<8x56xf32, #tpu.memory_space<vmem>>, %arg3: memref<8x1xf32, #tpu.memory_space<vmem>>, %arg4: memref<816x48xf32, #tpu.memory_space<vmem>>, %arg5: memref<24x128xf32, #tpu.memory_space<vmem>>, %arg6: memref<1x128xf32, #tpu.memory_space<vmem>>, %arg7: memref<16x128xf32, #tpu.memory_space<vmem>>) attributes {dimension_semantics = [#tpu.dimension_semantics<parallel>], iteration_bounds = array<i64: 1>, scalar_prefetch = 0 : i64, scratch_operands = 0 : i64, tpu.core_type = #tpu.core_type<tc>, window_params = [{transform_indices = @transform_0, window_bounds = array<i64: 16, 4, 64>}, {pipeline_mode = #tpu.pipeline_mode<synchronous>, transform_indices = @transform_1, window_bounds = array<i64: 8, 56>}, {pipeline_mode = #tpu.pipeline_mode<synchronous>, transform_indices = @transform_2, window_bounds = array<i64: 8, 1>}, {pipeline_mode = #tpu.pipeline_mode<synchronous>, transform_indices = @transform_3, window_bounds = array<i64: 816, 48>}, {pipeline_mode = #tpu.pipeline_mode<synchronous>, transform_indices = @transform_4, window_bounds = array<i64: 24, 128>}, {pipeline_mode = #tpu.pipeline_mode<synchronous>, transform_indices = @transform_5, window_bounds = array<i64: 1, 128>}, {transform_indices = @transform_6, window_bounds = array<i64: 16, 128>}]} {
    %c0 = arith.constant 0 : index
    %c0_0 = arith.constant 0 : index
    %c0_1 = arith.constant 0 : index
    %0 = vector.load %arg1[%c0, %c0_0, %c0_1] : memref<16x4x64xf32, #tpu.memory_space<vmem>>, vector<16x4x64xf32>
    %1 = tpu.transpose %0, [1, 0, 2] : vector<16x4x64xf32> -> vector<4x16x64xf32>
    %2 = vector.extract_strided_slice %1 {offsets = [0, 0, 0], sizes = [4, 16, 51], strides = [1, 1, 1]} : vector<4x16x64xf32> to vector<4x16x51xf32>
    %3 = vector.shape_cast %2 : vector<4x16x51xf32> to vector<4x816xf32>
    %4 = vector.extract_strided_slice %1 {offsets = [0, 0, 1], sizes = [4, 16, 51], strides = [1, 1, 1]} : vector<4x16x64xf32> to vector<4x16x51xf32>
    %5 = vector.shape_cast %4 : vector<4x16x51xf32> to vector<4x816xf32>
    %6 = vector.extract_strided_slice %1 {offsets = [0, 0, 2], sizes = [4, 16, 51], strides = [1, 1, 1]} : vector<4x16x64xf32> to vector<4x16x51xf32>
    %7 = vector.shape_cast %6 : vector<4x16x51xf32> to vector<4x816xf32>
    %8 = vector.extract_strided_slice %1 {offsets = [0, 0, 3], sizes = [4, 16, 51], strides = [1, 1, 1]} : vector<4x16x64xf32> to vector<4x16x51xf32>
    %9 = vector.shape_cast %8 : vector<4x16x51xf32> to vector<4x816xf32>
    %10 = vector.extract_strided_slice %1 {offsets = [0, 0, 4], sizes = [4, 16, 51], strides = [1, 1, 1]} : vector<4x16x64xf32> to vector<4x16x51xf32>
    %11 = vector.shape_cast %10 : vector<4x16x51xf32> to vector<4x816xf32>
    %12 = vector.extract_strided_slice %1 {offsets = [0, 0, 5], sizes = [4, 16, 51], strides = [1, 1, 1]} : vector<4x16x64xf32> to vector<4x16x51xf32>
    %13 = vector.shape_cast %12 : vector<4x16x51xf32> to vector<4x816xf32>
    %14 = vector.extract_strided_slice %1 {offsets = [0, 0, 6], sizes = [4, 16, 51], strides = [1, 1, 1]} : vector<4x16x64xf32> to vector<4x16x51xf32>
    %15 = vector.shape_cast %14 : vector<4x16x51xf32> to vector<4x816xf32>
    %16 = vector.extract_strided_slice %1 {offsets = [0, 0, 7], sizes = [4, 16, 51], strides = [1, 1, 1]} : vector<4x16x64xf32> to vector<4x16x51xf32>
    %17 = vector.shape_cast %16 : vector<4x16x51xf32> to vector<4x816xf32>
    %18 = vector.extract_strided_slice %1 {offsets = [0, 0, 8], sizes = [4, 16, 51], strides = [1, 1, 1]} : vector<4x16x64xf32> to vector<4x16x51xf32>
    %19 = vector.shape_cast %18 : vector<4x16x51xf32> to vector<4x816xf32>
    %20 = vector.extract_strided_slice %1 {offsets = [0, 0, 9], sizes = [4, 16, 51], strides = [1, 1, 1]} : vector<4x16x64xf32> to vector<4x16x51xf32>
    %21 = vector.shape_cast %20 : vector<4x16x51xf32> to vector<4x816xf32>
    %22 = vector.extract_strided_slice %1 {offsets = [0, 0, 10], sizes = [4, 16, 51], strides = [1, 1, 1]} : vector<4x16x64xf32> to vector<4x16x51xf32>
    %23 = vector.shape_cast %22 : vector<4x16x51xf32> to vector<4x816xf32>
    %24 = vector.extract_strided_slice %1 {offsets = [0, 0, 11], sizes = [4, 16, 51], strides = [1, 1, 1]} : vector<4x16x64xf32> to vector<4x16x51xf32>
    %25 = vector.shape_cast %24 : vector<4x16x51xf32> to vector<4x816xf32>
    %26 = vector.extract_strided_slice %1 {offsets = [0, 0, 12], sizes = [4, 16, 51], strides = [1, 1, 1]} : vector<4x16x64xf32> to vector<4x16x51xf32>
    %27 = vector.shape_cast %26 : vector<4x16x51xf32> to vector<4x816xf32>
    %28 = vector.extract_strided_slice %1 {offsets = [0, 0, 13], sizes = [4, 16, 51], strides = [1, 1, 1]} : vector<4x16x64xf32> to vector<4x16x51xf32>
    %29 = vector.shape_cast %28 : vector<4x16x51xf32> to vector<4x816xf32>
    %30 = tpu.concatenate %3, %5, %7, %9, %11, %13, %15, %17, %19, %21, %23, %25, %27, %29 in 0 : vector<4x816xf32>, vector<4x816xf32>, vector<4x816xf32>, vector<4x816xf32>, vector<4x816xf32>, vector<4x816xf32>, vector<4x816xf32>, vector<4x816xf32>, vector<4x816xf32>, vector<4x816xf32>, vector<4x816xf32>, vector<4x816xf32>, vector<4x816xf32>, vector<4x816xf32> -> vector<56x816xf32>
    %c0_2 = arith.constant 0 : index
    %c0_3 = arith.constant 0 : index
    %31 = vector.load %arg2[%c0_2, %c0_3] : memref<8x56xf32, #tpu.memory_space<vmem>>, vector<8x56xf32>
    %cst = arith.constant dense<0.000000e+00> : vector<8x816xf32>
    %32 = tpu.matmul %31, %30, %cst {dimension_numbers = #tpu.dot_dimension_numbers<[1], [0], [0], [1], [0, 0, 1, 1], [], []>} : vector<8x56xf32>, vector<56x816xf32>, vector<8x816xf32> -> vector<8x816xf32>
    %c0_4 = arith.constant 0 : index
    %c0_5 = arith.constant 0 : index
    %33 = vector.load %arg3[%c0_4, %c0_5] : memref<8x1xf32, #tpu.memory_space<vmem>>, vector<8x1xf32>
    %34 = vector.broadcast %33 : vector<8x1xf32> to vector<8x816xf32>
    %35 = arith.addf %32, %34 : vector<8x816xf32>
    %36 = arith.mulf %35, %35 : vector<8x816xf32>
    %c0_6 = arith.constant 0 : index
    %c0_7 = arith.constant 0 : index
    %37 = vector.load %arg4[%c0_6, %c0_7] : memref<816x48xf32, #tpu.memory_space<vmem>>, vector<816x48xf32>
    %cst_8 = arith.constant dense<0.000000e+00> : vector<8x48xf32>
    %38 = tpu.matmul %36, %37, %cst_8 {dimension_numbers = #tpu.dot_dimension_numbers<[1], [0], [0], [1], [0, 0, 1, 1], [], []>} : vector<8x816xf32>, vector<816x48xf32>, vector<8x48xf32> -> vector<8x48xf32>
    %39 = math.log %38 : vector<8x48xf32>
    %40 = vector.shape_cast %39 : vector<8x48xf32> to vector<8x16x3xf32>
    %41 = tpu.transpose %40, [1, 0, 2] : vector<8x16x3xf32> -> vector<16x8x3xf32>
    %42 = vector.shape_cast %41 : vector<16x8x3xf32> to vector<16x24xf32>
    %c0_9 = arith.constant 0 : index
    %c0_10 = arith.constant 0 : index
    %43 = vector.load %arg5[%c0_9, %c0_10] : memref<24x128xf32, #tpu.memory_space<vmem>>, vector<24x128xf32>
    %cst_11 = arith.constant dense<0.000000e+00> : vector<16x128xf32>
    %44 = tpu.matmul %42, %43, %cst_11 {dimension_numbers = #tpu.dot_dimension_numbers<[1], [0], [0], [1], [0, 0, 1, 1], [], []>} : vector<16x24xf32>, vector<24x128xf32>, vector<16x128xf32> -> vector<16x128xf32>
    %c0_12 = arith.constant 0 : index
    %c0_13 = arith.constant 0 : index
    %45 = vector.load %arg6[%c0_12, %c0_13] : memref<1x128xf32, #tpu.memory_space<vmem>>, vector<1x128xf32>
    %46 = vector.broadcast %45 : vector<1x128xf32> to vector<16x128xf32>
    %47 = arith.addf %44, %46 : vector<16x128xf32>
    %cst_14 = arith.constant dense<0xFF800000> : vector<16xf32>
    %48 = vector.multi_reduction <maximumf>, %47, %cst_14 [1] : vector<16x128xf32> to vector<16xf32>
    %49 = vector.shape_cast %48 : vector<16xf32> to vector<16x1xf32>
    %50 = vector.broadcast %49 : vector<16x1xf32> to vector<16x128xf32>
    %51 = arith.subf %47, %50 : vector<16x128xf32>
    %52 = math.exp %51 : vector<16x128xf32>
    %cst_15 = arith.constant dense<0.000000e+00> : vector<16xf32>
    %53 = vector.multi_reduction <add>, %52, %cst_15 [1] : vector<16x128xf32> to vector<16xf32>
    %54 = vector.shape_cast %53 : vector<16xf32> to vector<16x1xf32>
    %55 = math.log %54 : vector<16x1xf32>
    %56 = arith.addf %49, %55 : vector<16x1xf32>
    %57 = vector.broadcast %56 : vector<16x1xf32> to vector<16x128xf32>
    %58 = arith.subf %47, %57 : vector<16x128xf32>
    %c0_16 = arith.constant 0 : index
    %c0_17 = arith.constant 0 : index
    %59 = vector.load %arg7[%c0_16, %c0_17] : memref<16x128xf32, #tpu.memory_space<vmem>>, vector<16x128xf32>
    tpu.vector_store %arg7[%c0_16, %c0_17], %58 {strides = array<i32>} : memref<16x128xf32, #tpu.memory_space<vmem>>, vector<16x128xf32>,
    return
  }
  func.func @transform_0(%arg0: i32) -> (i32, i32, i32) {
    %c0_i32 = arith.constant 0 : i32
    %c0_i32_0 = arith.constant 0 : i32
    %c0_i32_1 = arith.constant 0 : i32
    return %arg0, %c0_i32, %c0_i32_0 : i32, i32, i32
  }
  func.func @transform_1(%arg0: i32) -> (i32, i32) {
    %c0_i32 = arith.constant 0 : i32
    %c0_i32_0 = arith.constant 0 : i32
    %c0_i32_1 = arith.constant 0 : i32
    return %c0_i32, %c0_i32_0 : i32, i32
  }
  func.func @transform_2(%arg0: i32) -> (i32, i32) {
    %c0_i32 = arith.constant 0 : i32
    %c0_i32_0 = arith.constant 0 : i32
    %c0_i32_1 = arith.constant 0 : i32
    return %c0_i32, %c0_i32_0 : i32, i32
  }
  func.func @transform_3(%arg0: i32) -> (i32, i32) {
    %c0_i32 = arith.constant 0 : i32
    %c0_i32_0 = arith.constant 0 : i32
    %c0_i32_1 = arith.constant 0 : i32
    return %c0_i32, %c0_i32_0 : i32, i32
  }
  func.func @transform_4(%arg0: i32) -> (i32, i32) {
    %c0_i32 = arith.constant 0 : i32
    %c0_i32_0 = arith.constant 0 : i32
    %c0_i32_1 = arith.constant 0 : i32
    return %c0_i32, %c0_i32_0 : i32, i32
  }
  func.func @transform_5(%arg0: i32) -> (i32, i32) {
    %c0_i32 = arith.constant 0 : i32
    %c0_i32_0 = arith.constant 0 : i32
    %c0_i32_1 = arith.constant 0 : i32
    return %c0_i32, %c0_i32_0 : i32, i32
  }
  func.func @transform_6(%arg0: i32) -> (i32, i32) {
    %c0_i32 = arith.constant 0 : i32
    %c0_i32_0 = arith.constant 0 : i32
    return %arg0, %c0_i32 : i32, i32
  }
}

</mosaic_0001>

<llo_original>
// kernel: tpu_custom_call.1
$region0: #{tpu_custom_call.1}
  #allocation0 [shape = 'u32[]', space=smem, size = 0x4, offset = 0x4, fixed_abs, tag = 'smem constant byte address 0x4 - core index']
  #allocation1 [shape = 'u32[144,128]{1,0:T(1,128)}', space=vmem, size = 0x12000, scoped, tag = 'internal scratch']
  %s0 = inlined_call_operand.vmem [shape: f32[16,4,64], index: 0, kind: input, shape index: {}]
  %s1 = inlined_call_operand.vmem [shape: f32[8,56], index: 1, kind: input, shape index: {}]
  %s2 = inlined_call_operand.vmem [shape: f32[8,1], index: 2, kind: input, shape index: {}]
  %s3 = inlined_call_operand.vmem [shape: f32[816,48], index: 3, kind: input, shape index: {}]
  %s4 = inlined_call_operand.vmem [shape: f32[24,128], index: 4, kind: input, shape index: {}]
  %s5 = inlined_call_operand.vmem [shape: f32[1,128], index: 5, kind: input, shape index: {}]
  %s6 = inlined_call_operand.hbm [shape: f32[16,128], index: 6, kind: output, shape index: {}]
  %s7 = sld [smem:[#allocation0]]
  $region34: #{tpu_custom_call.1} parent=0
    _
  %s9 = ssub.s32 1, %s7
  %s10 = scalar_select 0, %s9, %s7
  $region1: #{tpu_custom_call.1} parent=0
    #allocation2 [shape = 'u8[8192]{0}', space=vmem, size = 0x2000, scoped, tag = 'output window, operand 0, single buffered']
    #allocation3 [shape = 's32[1]{0}', space=sflag, size = 0x4, scoped, tag = 'scoped memory for tpu_custom_call.1']
    %11 = vsyncpa [#allocation3], 0
    // Predicated region
    $region2: #{tpu_custom_call.1} parent=1 // pred_check
      _
    $region3: #{tpu_custom_call.1} parent=1 // pred_check_branch
      %13 = sbr.rel (0) target = $region5
    $region4: #{tpu_custom_call.1} parent=1 // pred_region
      _
    $region5: #{tpu_custom_call.1} parent=1 // pred_fallthru
      _
    // Predicated region
    $region6: #{tpu_custom_call.1} parent=1 // pred_check
      _
    $region7: #{tpu_custom_call.1} parent=1 // pred_check_branch
      %15 = sbr.rel (0) target = $region9
    $region8: #{tpu_custom_call.1} parent=1 // pred_region
      _
    $region9: #{tpu_custom_call.1} parent=1 // pred_fallthru
      _
    // Predicated region
    $region10: #{tpu_custom_call.1} parent=1 // pred_check
      _
    $region11: #{tpu_custom_call.1} parent=1 // pred_check_branch
      %17 = sbr.rel (0) target = $region13
    $region12: #{tpu_custom_call.1} parent=1 // pred_region
      _
    $region13: #{tpu_custom_call.1} parent=1 // pred_fallthru
      _
    // Predicated region
    $region14: #{tpu_custom_call.1} parent=1 // pred_check
      _
    $region15: #{tpu_custom_call.1} parent=1 // pred_check_branch
      %19 = sbr.rel (0) target = $region17
    $region16: #{tpu_custom_call.1} parent=1 // pred_region
      _
    $region17: #{tpu_custom_call.1} parent=1 // pred_fallthru
      _
    // Predicated region
    $region18: #{tpu_custom_call.1} parent=1 // pred_check
      _
    $region19: #{tpu_custom_call.1} parent=1 // pred_check_branch
      %21 = sbr.rel (0) target = $region21
    $region20: #{tpu_custom_call.1} parent=1 // pred_region
      _
    $region21: #{tpu_custom_call.1} parent=1 // pred_fallthru
      _
    // Predicated region
    $region22: #{tpu_custom_call.1} parent=1 // pred_check
      _
    $region23: #{tpu_custom_call.1} parent=1 // pred_check_branch
      %23 = sbr.rel (0) target = $region25
    $region24: #{tpu_custom_call.1} parent=1 // pred_region
      _
    $region25: #{tpu_custom_call.1} parent=1 // pred_fallthru
      _
    %v24 = vld [vmem:[%s0] sm:$0xf]
    %v25 = vld [vmem:[%s0 + $0x4] sm:$0xf]
    %v26 = vld [vmem:[%s0 + $0x8] sm:$0xf]
    %v27 = vld [vmem:[%s0 + $0xc] sm:$0xf]
    %v28 = vld [vmem:[%s0 + $0x10] sm:$0xf]
    %v29 = vld [vmem:[%s0 + $0x14] sm:$0xf]
    %v30 = vld [vmem:[%s0 + $0x18] sm:$0xf]
    %v31 = vld [vmem:[%s0 + $0x1c] sm:$0xf]
    %v32 = vld [vmem:[%s0 + $0x20] sm:$0xf]
    %v33 = vld [vmem:[%s0 + $0x24] sm:$0xf]
    %v34 = vld [vmem:[%s0 + $0x28] sm:$0xf]
    %v35 = vld [vmem:[%s0 + $0x2c] sm:$0xf]
    %v36 = vld [vmem:[%s0 + $0x30] sm:$0xf]
    %v37 = vld [vmem:[%s0 + $0x34] sm:$0xf]
    %v38 = vld [vmem:[%s0 + $0x38] sm:$0xf]
    %v39 = vld [vmem:[%s0 + $0x3c] sm:$0xf]
    %v40 = vcombine.low %v24, %v26
    %v42 = vunpack.c.l.s4 1983009808
    %v43 = vunpack.c.0.s8 %v42
    %v44 = vlaneseq
    %v45 = vshrl.u32 %v44, 7
    %v46 = vsub.s32 %v43, %v45
    %v47 = vrot.slane %v40, %v46
    %v48 = vcombine.low %v25, %v27
    %v50 = vunpack.c.l.s4 1983009808
    %v51 = vunpack.c.0.s8 %v50
    %v52 = vlaneseq
    %v53 = vshrl.u32 %v52, 7
    %v54 = vsub.s32 %v51, %v53
    %v55 = vrot.slane %v48, %v54
    %v56 = vcombine.low %v28, %v30
    %v58 = vunpack.c.l.s4 1983009808
    %v59 = vunpack.c.0.s8 %v58
    %v60 = vlaneseq
    %v61 = vshrl.u32 %v60, 7
    %v62 = vsub.s32 %v59, %v61
    %v63 = vrot.slane %v56, %v62
    %v64 = vcombine.low %v29, %v31
    %v66 = vunpack.c.l.s4 1983009808
    %v67 = vunpack.c.0.s8 %v66
    %v68 = vlaneseq
    %v69 = vshrl.u32 %v68, 7
    %v70 = vsub.s32 %v67, %v69
    %v71 = vrot.slane %v64, %v70
    %v72 = vcombine.low %v47, %v55
    %v73 = vcombine.high %v47, %v55
    %v75 = vunpack.c.l.s4 1934713408
    %v76 = vunpack.c.0.s8 %v75
    %v77 = vlaneseq
    %v78 = vshrl.u32 %v77, 7
    %v79 = vsub.s32 %v76, %v78
    %v80 = vrot.slane %v72, %v79
    %v82 = vunpack.c.l.s4 1934713408
    %v83 = vunpack.c.0.s8 %v82
    %v84 = vlaneseq
    %v85 = vshrl.u32 %v84, 7
    %v86 = vsub.s32 %v83, %v85
    %v87 = vrot.slane %v73, %v86
    %v88 = vcombine.low %v63, %v71
    %v89 = vcombine.high %v63, %v71
    %v91 = vunpack.c.l.s4 1934713408
    %v92 = vunpack.c.0.s8 %v91
    %v93 = vlaneseq
    %v94 = vshrl.u32 %v93, 7
    %v95 = vsub.s32 %v92, %v94
    %v96 = vrot.slane %v88, %v95
    %v98 = vunpack.c.l.s4 1934713408
    %v99 = vunpack.c.0.s8 %v98
    %v100 = vlaneseq
    %v101 = vshrl.u32 %v100, 7
    %v102 = vsub.s32 %v99, %v101
    %v103 = vrot.slane %v89, %v102
    %v104 = vcombine.low %v80, %v96
    %v105 = vcombine.high %v80, %v96
    %v106 = vcombine.low %v87, %v103
    %v107 = vcombine.high %v87, %v103
    %v108 = vcombine.low %v32, %v34
    %v110 = vunpack.c.l.s4 1983009808
    %v111 = vunpack.c.0.s8 %v110
    %v112 = vlaneseq
    %v113 = vshrl.u32 %v112, 7
    %v114 = vsub.s32 %v111, %v113
    %v115 = vrot.slane %v108, %v114
    %v116 = vcombine.low %v33, %v35
    %v118 = vunpack.c.l.s4 1983009808
    %v119 = vunpack.c.0.s8 %v118
    %v120 = vlaneseq
    %v121 = vshrl.u32 %v120, 7
    %v122 = vsub.s32 %v119, %v121
    %v123 = vrot.slane %v116, %v122
    %v124 = vcombine.low %v36, %v38
    %v126 = vunpack.c.l.s4 1983009808
    %v127 = vunpack.c.0.s8 %v126
    %v128 = vlaneseq
    %v129 = vshrl.u32 %v128, 7
    %v130 = vsub.s32 %v127, %v129
    %v131 = vrot.slane %v124, %v130
    %v132 = vcombine.low %v37, %v39
    %v134 = vunpack.c.l.s4 1983009808
    %v135 = vunpack.c.0.s8 %v134
    %v136 = vlaneseq
    %v137 = vshrl.u32 %v136, 7
    %v138 = vsub.s32 %v135, %v137
    %v139 = vrot.slane %v132, %v138
    %v140 = vcombine.low %v115, %v123
    %v141 = vcombine.high %v115, %v123
    %v143 = vunpack.c.l.s4 1934713408
    %v144 = vunpack.c.0.s8 %v143
    %v145 = vlaneseq
    %v146 = vshrl.u32 %v145, 7
    %v147 = vsub.s32 %v144, %v146
    %v148 = vrot.slane %v140, %v147
    %v150 = vunpack.c.l.s4 1934713408
    %v151 = vunpack.c.0.s8 %v150
    %v152 = vlaneseq
    %v153 = vshrl.u32 %v152, 7
    %v154 = vsub.s32 %v151, %v153
    %v155 = vrot.slane %v141, %v154
    %v156 = vcombine.low %v131, %v139
    %v157 = vcombine.high %v131, %v139
    %v159 = vunpack.c.l.s4 1934713408
    %v160 = vunpack.c.0.s8 %v159
    %v161 = vlaneseq
    %v162 = vshrl.u32 %v161, 7
    %v163 = vsub.s32 %v160, %v162
    %v164 = vrot.slane %v156, %v163
    %v166 = vunpack.c.l.s4 1934713408
    %v167 = vunpack.c.0.s8 %v166
    %v168 = vlaneseq
    %v169 = vshrl.u32 %v168, 7
    %v170 = vsub.s32 %v167, %v169
    %v171 = vrot.slane %v157, %v170
    %v172 = vcombine.low %v148, %v164
    %v173 = vcombine.high %v148, %v164
    %v174 = vcombine.low %v155, %v171
    %v175 = vcombine.high %v155, %v171
    %v176 = vcombine.low %v104, %v106
    %v177 = vcombine.high %v104, %v106
    %v179 = vunpack.c.l.s4 1983009808
    %v180 = vunpack.c.0.s8 %v179
    %v181 = vlaneseq
    %v182 = vshrl.u32 %v181, 7
    %v183 = vsub.s32 %v180, %v182
    %v184 = vrot.slane %v176, %v183
    %v186 = vunpack.c.l.s4 1983009808
    %v187 = vunpack.c.0.s8 %v186
    %v188 = vlaneseq
    %v189 = vshrl.u32 %v188, 7
    %v190 = vsub.s32 %v187, %v189
    %v191 = vrot.slane %v177, %v190
    %v192 = vcombine.low %v105, %v107
    %v193 = vcombine.high %v105, %v107
    %v195 = vunpack.c.l.s4 1983009808
    %v196 = vunpack.c.0.s8 %v195
    %v197 = vlaneseq
    %v198 = vshrl.u32 %v197, 7
    %v199 = vsub.s32 %v196, %v198
    %v200 = vrot.slane %v192, %v199
    %v202 = vunpack.c.l.s4 1983009808
    %v203 = vunpack.c.0.s8 %v202
    %v204 = vlaneseq
    %v205 = vshrl.u32 %v204, 7
    %v206 = vsub.s32 %v203, %v205
    %v207 = vrot.slane %v193, %v206
    %v208 = vcombine.low %v184, %v200
    %v209 = vcombine.high %v184, %v200
    %v211 = vunpack.c.l.s4 1934713408
    %v212 = vunpack.c.0.s8 %v211
    %v213 = vlaneseq
    %v214 = vshrl.u32 %v213, 7
    %v215 = vsub.s32 %v212, %v214
    %v216 = vrot.slane %v208, %v215
    %v218 = vunpack.c.l.s4 1934713408
    %v219 = vunpack.c.0.s8 %v218
    %v220 = vlaneseq
    %v221 = vshrl.u32 %v220, 7
    %v222 = vsub.s32 %v219, %v221
    %v223 = vrot.slane %v209, %v222
    %v224 = vcombine.low %v191, %v207
    %v225 = vcombine.high %v191, %v207
    %v227 = vunpack.c.l.s4 1934713408
    %v228 = vunpack.c.0.s8 %v227
    %v229 = vlaneseq
    %v230 = vshrl.u32 %v229, 7
    %v231 = vsub.s32 %v228, %v230
    %v232 = vrot.slane %v224, %v231
    %v234 = vunpack.c.l.s4 1934713408
    %v235 = vunpack.c.0.s8 %v234
    %v236 = vlaneseq
    %v237 = vshrl.u32 %v236, 7
    %v238 = vsub.s32 %v235, %v237
    %v239 = vrot.slane %v225, %v238
    %v240 = vcombine.high %v216, 0.0
    %v241 = vcombine.high %v223, 0.0
    %v242 = vcombine.high %v232, 0.0
    %v243 = vcombine.high %v239, 0.0
    %v244 = vcombine.low %v172, %v174
    %v245 = vcombine.high %v172, %v174
    %v247 = vunpack.c.l.s4 1983009808
    %v248 = vunpack.c.0.s8 %v247
    %v249 = vlaneseq
    %v250 = vshrl.u32 %v249, 7
    %v251 = vsub.s32 %v248, %v250
    %v252 = vrot.slane %v244, %v251
    %v254 = vunpack.c.l.s4 1983009808
    %v255 = vunpack.c.0.s8 %v254
    %v256 = vlaneseq
    %v257 = vshrl.u32 %v256, 7
    %v258 = vsub.s32 %v255, %v257
    %v259 = vrot.slane %v245, %v258
    %v260 = vcombine.low %v173, %v175
    %v261 = vcombine.high %v173, %v175
    %v263 = vunpack.c.l.s4 1983009808
    %v264 = vunpack.c.0.s8 %v263
    %v265 = vlaneseq
    %v266 = vshrl.u32 %v265, 7
    %v267 = vsub.s32 %v264, %v266
    %v268 = vrot.slane %v260, %v267
    %v270 = vunpack.c.l.s4 1983009808
    %v271 = vunpack.c.0.s8 %v270
    %v272 = vlaneseq
    %v273 = vshrl.u32 %v272, 7
    %v274 = vsub.s32 %v271, %v273
    %v275 = vrot.slane %v261, %v274
    %v276 = vcombine.low %v252, %v268
    %v277 = vcombine.high %v252, %v268
    %v279 = vunpack.c.l.s4 1934713408
    %v280 = vunpack.c.0.s8 %v279
    %v281 = vlaneseq
    %v282 = vshrl.u32 %v281, 7
    %v283 = vsub.s32 %v280, %v282
    %v284 = vrot.slane %v276, %v283
    %v286 = vunpack.c.l.s4 1934713408
    %v287 = vunpack.c.0.s8 %v286
    %v288 = vlaneseq
    %v289 = vshrl.u32 %v288, 7
    %v290 = vsub.s32 %v287, %v289
    %v291 = vrot.slane %v277, %v290
    %v292 = vcombine.low %v259, %v275
    %v293 = vcombine.high %v259, %v275
    %v295 = vunpack.c.l.s4 1934713408
    %v296 = vunpack.c.0.s8 %v295
    %v297 = vlaneseq
    %v298 = vshrl.u32 %v297, 7
    %v299 = vsub.s32 %v296, %v298
    %v300 = vrot.slane %v292, %v299
    %v302 = vunpack.c.l.s4 1934713408
    %v303 = vunpack.c.0.s8 %v302
    %v304 = vlaneseq
    %v305 = vshrl.u32 %v304, 7
    %v306 = vsub.s32 %v303, %v305
    %v307 = vrot.slane %v293, %v306
    %v308 = vcombine.high %v284, 0.0
    %v309 = vcombine.high %v291, 0.0
    %v310 = vcombine.high %v300, 0.0
    %v311 = vcombine.high %v307, 0.0
    %313 = vrot.lane.b32.xlu0 %v240, 51
    %v314 = vpop.permute.xlu0 %313
    %317 = vrot.lane.b32.xlu0 %v223, 102
    %v318 = vpop.permute.xlu0 %317
    %321 = vrot.lane.b32.xlu0 %v241, 25
    %v322 = vpop.permute.xlu0 %321
    %325 = vrot.lane.b32.xlu0 %v232, 76
    %v326 = vpop.permute.xlu0 %325
    %329 = vrot.lane.b32.xlu0 %v242, 127
    %v330 = vpop.permute.xlu0 %329
    %333 = vrot.lane.b32.xlu0 %v239, 50
    %v334 = vpop.permute.xlu0 %333
    %337 = vrot.lane.b32.xlu0 %v243, 101
    %v338 = vpop.permute.xlu0 %337
    %341 = vrot.lane.b32.xlu0 %v284, 24
    %v342 = vpop.permute.xlu0 %341
    %345 = vrot.lane.b32.xlu0 %v308, 75
    %v346 = vpop.permute.xlu0 %345
    %349 = vrot.lane.b32.xlu0 %v291, 126
    %v350 = vpop.permute.xlu0 %349
    %353 = vrot.lane.b32.xlu0 %v309, 49
    %v354 = vpop.permute.xlu0 %353
    %357 = vrot.lane.b32.xlu0 %v300, 100
    %v358 = vpop.permute.xlu0 %357
    %361 = vrot.lane.b32.xlu0 %v310, 23
    %v362 = vpop.permute.xlu0 %361
    %365 = vrot.lane.b32.xlu0 %v307, 74
    %v366 = vpop.permute.xlu0 %365
    %369 = vrot.lane.b32.xlu0 %v311, 125
    %v370 = vpop.permute.xlu0 %369
    %vm372 = vcmask 416768
    %v373 = vsel %vm372, %v216, %v314
    %vm374 = vcmask 834560
    %v375 = vsel %vm374, %v373, %v318
    %vm376 = vcmask 203776
    %v377 = vsel %vm376, %v318, %v322
    %vm378 = vcmask 621568
    %v379 = vsel %vm378, %v377, %v326
    %vm380 = vcmask 1039360
    %v381 = vsel %vm380, %v379, %v330
    %vm382 = vcmask 408576
    %v383 = vsel %vm382, %v330, %v334
    %vm384 = vcmask 826368
    %v385 = vsel %vm384, %v383, %v338
    %vm386 = vcmask 195584
    %v387 = vsel %vm386, %v338, %v342
    %vm388 = vcmask 613376
    %v389 = vsel %vm388, %v387, %v346
    %vm390 = vcmask 1031168
    %v391 = vsel %vm390, %v389, %v350
    %vm392 = vcmask 400384
    %v393 = vsel %vm392, %v350, %v354
    %vm394 = vcmask 818176
    %v395 = vsel %vm394, %v393, %v358
    %vm396 = vcmask 187392
    %v397 = vsel %vm396, %v358, %v362
    %vm398 = vcmask 605184
    %v399 = vsel %vm398, %v397, %v366
    %vm400 = vcmask 1022976
    %v401 = vsel %vm400, %v399, %v370
    %410 = vrot.lane.b32.xlu0 %v104, 127
    %v411 = vpop.permute.xlu0 %410
    %412 = vrot.lane.b32.xlu0 %v172, 127
    %v413 = vpop.permute.xlu0 %412
    %414 = vrot.lane.b32.xlu0 %v105, 127
    %v415 = vpop.permute.xlu0 %414
    %416 = vrot.lane.b32.xlu0 %v173, 127
    %v417 = vpop.permute.xlu0 %416
    %418 = vrot.lane.b32.xlu0 %v106, 127
    %v419 = vpop.permute.xlu0 %418
    %420 = vrot.lane.b32.xlu0 %v174, 127
    %v421 = vpop.permute.xlu0 %420
    %422 = vrot.lane.b32.xlu0 %v107, 127
    %v423 = vpop.permute.xlu0 %422
    %424 = vrot.lane.b32.xlu0 %v175, 127
    %v425 = vpop.permute.xlu0 %424
    %v434 = vcombine.low %v411, %v419
    %v435 = vcombine.high %v411, %v419
    %v437 = vunpack.c.l.s4 1983009808
    %v438 = vunpack.c.0.s8 %v437
    %v439 = vlaneseq
    %v440 = vshrl.u32 %v439, 7
    %v441 = vsub.s32 %v438, %v440
    %v442 = vrot.slane %v434, %v441
    %v444 = vunpack.c.l.s4 1983009808
    %v445 = vunpack.c.0.s8 %v444
    %v446 = vlaneseq
    %v447 = vshrl.u32 %v446, 7
    %v448 = vsub.s32 %v445, %v447
    %v449 = vrot.slane %v435, %v448
    %v450 = vcombine.low %v415, %v423
    %v451 = vcombine.high %v415, %v423
    %v453 = vunpack.c.l.s4 1983009808
    %v454 = vunpack.c.0.s8 %v453
    %v455 = vlaneseq
    %v456 = vshrl.u32 %v455, 7
    %v457 = vsub.s32 %v454, %v456
    %v458 = vrot.slane %v450, %v457
    %v460 = vunpack.c.l.s4 1983009808
    %v461 = vunpack.c.0.s8 %v460
    %v462 = vlaneseq
    %v463 = vshrl.u32 %v462, 7
    %v464 = vsub.s32 %v461, %v463
    %v465 = vrot.slane %v451, %v464
    %v466 = vcombine.low %v442, %v458
    %v467 = vcombine.high %v442, %v458
    %v469 = vunpack.c.l.s4 1934713408
    %v470 = vunpack.c.0.s8 %v469
    %v471 = vlaneseq
    %v472 = vshrl.u32 %v471, 7
    %v473 = vsub.s32 %v470, %v472
    %v474 = vrot.slane %v466, %v473
    %v476 = vunpack.c.l.s4 1934713408
    %v477 = vunpack.c.0.s8 %v476
    %v478 = vlaneseq
    %v479 = vshrl.u32 %v478, 7
    %v480 = vsub.s32 %v477, %v479
    %v481 = vrot.slane %v467, %v480
    %v482 = vcombine.low %v449, %v465
    %v483 = vcombine.high %v449, %v465
    %v485 = vunpack.c.l.s4 1934713408
    %v486 = vunpack.c.0.s8 %v485
    %v487 = vlaneseq
    %v488 = vshrl.u32 %v487, 7
    %v489 = vsub.s32 %v486, %v488
    %v490 = vrot.slane %v482, %v489
    %v492 = vunpack.c.l.s4 1934713408
    %v493 = vunpack.c.0.s8 %v492
    %v494 = vlaneseq
    %v495 = vshrl.u32 %v494, 7
    %v496 = vsub.s32 %v493, %v495
    %v497 = vrot.slane %v483, %v496
    %v498 = vcombine.high %v474, 0.0
    %v499 = vcombine.high %v481, 0.0
    %v500 = vcombine.high %v490, 0.0
    %v501 = vcombine.high %v497, 0.0
    %v502 = vcombine.low %v413, %v421
    %v503 = vcombine.high %v413, %v421
    %v505 = vunpack.c.l.s4 1983009808
    %v506 = vunpack.c.0.s8 %v505
    %v507 = vlaneseq
    %v508 = vshrl.u32 %v507, 7
    %v509 = vsub.s32 %v506, %v508
    %v510 = vrot.slane %v502, %v509
    %v512 = vunpack.c.l.s4 1983009808
    %v513 = vunpack.c.0.s8 %v512
    %v514 = vlaneseq
    %v515 = vshrl.u32 %v514, 7
    %v516 = vsub.s32 %v513, %v515
    %v517 = vrot.slane %v503, %v516
    %v518 = vcombine.low %v417, %v425
    %v519 = vcombine.high %v417, %v425
    %v521 = vunpack.c.l.s4 1983009808
    %v522 = vunpack.c.0.s8 %v521
    %v523 = vlaneseq
    %v524 = vshrl.u32 %v523, 7
    %v525 = vsub.s32 %v522, %v524
    %v526 = vrot.slane %v518, %v525
    %v528 = vunpack.c.l.s4 1983009808
    %v529 = vunpack.c.0.s8 %v528
    %v530 = vlaneseq
    %v531 = vshrl.u32 %v530, 7
    %v532 = vsub.s32 %v529, %v531
    %v533 = vrot.slane %v519, %v532
    %v534 = vcombine.low %v510, %v526
    %v535 = vcombine.high %v510, %v526
    %v537 = vunpack.c.l.s4 1934713408
    %v538 = vunpack.c.0.s8 %v537
    %v539 = vlaneseq
    %v540 = vshrl.u32 %v539, 7
    %v541 = vsub.s32 %v538, %v540
    %v542 = vrot.slane %v534, %v541
    %v544 = vunpack.c.l.s4 1934713408
    %v545 = vunpack.c.0.s8 %v544
    %v546 = vlaneseq
    %v547 = vshrl.u32 %v546, 7
    %v548 = vsub.s32 %v545, %v547
    %v549 = vrot.slane %v535, %v548
    %v550 = vcombine.low %v517, %v533
    %v551 = vcombine.high %v517, %v533
    %v553 = vunpack.c.l.s4 1934713408
    %v554 = vunpack.c.0.s8 %v553
    %v555 = vlaneseq
    %v556 = vshrl.u32 %v555, 7
    %v557 = vsub.s32 %v554, %v556
    %v558 = vrot.slane %v550, %v557
    %v560 = vunpack.c.l.s4 1934713408
    %v561 = vunpack.c.0.s8 %v560
    %v562 = vlaneseq
    %v563 = vshrl.u32 %v562, 7
    %v564 = vsub.s32 %v561, %v563
    %v565 = vrot.slane %v551, %v564
    %v566 = vcombine.high %v542, 0.0
    %v567 = vcombine.high %v549, 0.0
    %v568 = vcombine.high %v558, 0.0
    %v569 = vcombine.high %v565, 0.0
    %571 = vrot.lane.b32.xlu0 %v498, 51
    %v572 = vpop.permute.xlu0 %571
    %575 = vrot.lane.b32.xlu0 %v481, 102
    %v576 = vpop.permute.xlu0 %575
    %579 = vrot.lane.b32.xlu0 %v499, 25
    %v580 = vpop.permute.xlu0 %579
    %583 = vrot.lane.b32.xlu0 %v490, 76
    %v584 = vpop.permute.xlu0 %583
    %587 = vrot.lane.b32.xlu0 %v500, 127
    %v588 = vpop.permute.xlu0 %587
    %591 = vrot.lane.b32.xlu0 %v497, 50
    %v592 = vpop.permute.xlu0 %591
    %595 = vrot.lane.b32.xlu0 %v501, 101
    %v596 = vpop.permute.xlu0 %595
    %599 = vrot.lane.b32.xlu0 %v542, 24
    %v600 = vpop.permute.xlu0 %599
    %603 = vrot.lane.b32.xlu0 %v566, 75
    %v604 = vpop.permute.xlu0 %603
    %607 = vrot.lane.b32.xlu0 %v549, 126
    %v608 = vpop.permute.xlu0 %607
    %611 = vrot.lane.b32.xlu0 %v567, 49
    %v612 = vpop.permute.xlu0 %611
    %615 = vrot.lane.b32.xlu0 %v558, 100
    %v616 = vpop.permute.xlu0 %615
    %619 = vrot.lane.b32.xlu0 %v568, 23
    %v620 = vpop.permute.xlu0 %619
    %623 = vrot.lane.b32.xlu0 %v565, 74
    %v624 = vpop.permute.xlu0 %623
    %627 = vrot.lane.b32.xlu0 %v569, 125
    %v628 = vpop.permute.xlu0 %627
    %v630 = vsel %vm372, %v474, %v572
    %v631 = vsel %vm374, %v630, %v576
    %v632 = vsel %vm376, %v576, %v580
    %v633 = vsel %vm378, %v632, %v584
    %v634 = vsel %vm380, %v633, %v588
    %v635 = vsel %vm382, %v588, %v592
    %v636 = vsel %vm384, %v635, %v596
    %v637 = vsel %vm386, %v596, %v600
    %v638 = vsel %vm388, %v637, %v604
    %v639 = vsel %vm390, %v638, %v608
    %v640 = vsel %vm392, %v608, %v612
    %v641 = vsel %vm394, %v640, %v616
    %v642 = vsel %vm396, %v616, %v620
    %v643 = vsel %vm398, %v642, %v624
    %v644 = vsel %vm400, %v643, %v628
    %645 = vrot.lane.b32.xlu0 %v104, 126
    %v646 = vpop.permute.xlu0 %645
    %647 = vrot.lane.b32.xlu0 %v172, 126
    %v648 = vpop.permute.xlu0 %647
    %649 = vrot.lane.b32.xlu0 %v105, 126
    %v650 = vpop.permute.xlu0 %649
    %651 = vrot.lane.b32.xlu0 %v173, 126
    %v652 = vpop.permute.xlu0 %651
    %653 = vrot.lane.b32.xlu0 %v106, 126
    %v654 = vpop.permute.xlu0 %653
    %655 = vrot.lane.b32.xlu0 %v174, 126
    %v656 = vpop.permute.xlu0 %655
    %657 = vrot.lane.b32.xlu0 %v107, 126
    %v658 = vpop.permute.xlu0 %657
    %659 = vrot.lane.b32.xlu0 %v175, 126
    %v660 = vpop.permute.xlu0 %659
    %v669 = vcombine.low %v646, %v654
    %v670 = vcombine.high %v646, %v654
    %v672 = vunpack.c.l.s4 1983009808
    %v673 = vunpack.c.0.s8 %v672
    %v674 = vlaneseq
    %v675 = vshrl.u32 %v674, 7
    %v676 = vsub.s32 %v673, %v675
    %v677 = vrot.slane %v669, %v676
    %v679 = vunpack.c.l.s4 1983009808
    %v680 = vunpack.c.0.s8 %v679
    %v681 = vlaneseq
    %v682 = vshrl.u32 %v681, 7
    %v683 = vsub.s32 %v680, %v682
    %v684 = vrot.slane %v670, %v683
    %v685 = vcombine.low %v650, %v658
    %v686 = vcombine.high %v650, %v658
    %v688 = vunpack.c.l.s4 1983009808
    %v689 = vunpack.c.0.s8 %v688
    %v690 = vlaneseq
    %v691 = vshrl.u32 %v690, 7
    %v692 = vsub.s32 %v689, %v691
    %v693 = vrot.slane %v685, %v692
    %v695 = vunpack.c.l.s4 1983009808
    %v696 = vunpack.c.0.s8 %v695
    %v697 = vlaneseq
    %v698 = vshrl.u32 %v697, 7
    %v699 = vsub.s32 %v696, %v698
    %v700 = vrot.slane %v686, %v699
    %v701 = vcombine.low %v677, %v693
    %v702 = vcombine.high %v677, %v693
    %v704 = vunpack.c.l.s4 1934713408
    %v705 = vunpack.c.0.s8 %v704
    %v706 = vlaneseq
    %v707 = vshrl.u32 %v706, 7
    %v708 = vsub.s32 %v705, %v707
    %v709 = vrot.slane %v701, %v708
    %v711 = vunpack.c.l.s4 1934713408
    %v712 = vunpack.c.0.s8 %v711
    %v713 = vlaneseq
    %v714 = vshrl.u32 %v713, 7
    %v715 = vsub.s32 %v712, %v714
    %v716 = vrot.slane %v702, %v715
    %v717 = vcombine.low %v684, %v700
    %v718 = vcombine.high %v684, %v700
    %v720 = vunpack.c.l.s4 1934713408
    %v721 = vunpack.c.0.s8 %v720
    %v722 = vlaneseq
    %v723 = vshrl.u32 %v722, 7
    %v724 = vsub.s32 %v721, %v723
    %v725 = vrot.slane %v717, %v724
    %v727 = vunpack.c.l.s4 1934713408
    %v728 = vunpack.c.0.s8 %v727
    %v729 = vlaneseq
    %v730 = vshrl.u32 %v729, 7
    %v731 = vsub.s32 %v728, %v730
    %v732 = vrot.slane %v718, %v731
    %v733 = vcombine.high %v709, 0.0
    %v734 = vcombine.high %v716, 0.0
    %v735 = vcombine.high %v725, 0.0
    %v736 = vcombine.high %v732, 0.0
    %v737 = vcombine.low %v648, %v656
    %v738 = vcombine.high %v648, %v656
    %v740 = vunpack.c.l.s4 1983009808
    %v741 = vunpack.c.0.s8 %v740
    %v742 = vlaneseq
    %v743 = vshrl.u32 %v742, 7
    %v744 = vsub.s32 %v741, %v743
    %v745 = vrot.slane %v737, %v744
    %v747 = vunpack.c.l.s4 1983009808
    %v748 = vunpack.c.0.s8 %v747
    %v749 = vlaneseq
    %v750 = vshrl.u32 %v749, 7
    %v751 = vsub.s32 %v748, %v750
    %v752 = vrot.slane %v738, %v751
    %v753 = vcombine.low %v652, %v660
    %v754 = vcombine.high %v652, %v660
    %v756 = vunpack.c.l.s4 1983009808
    %v757 = vunpack.c.0.s8 %v756
    %v758 = vlaneseq
    %v759 = vshrl.u32 %v758, 7
    %v760 = vsub.s32 %v757, %v759
    %v761 = vrot.slane %v753, %v760
    %v763 = vunpack.c.l.s4 1983009808
    %v764 = vunpack.c.0.s8 %v763
    %v765 = vlaneseq
    %v766 = vshrl.u32 %v765, 7
    %v767 = vsub.s32 %v764, %v766
    %v768 = vrot.slane %v754, %v767
    %v769 = vcombine.low %v745, %v761
    %v770 = vcombine.high %v745, %v761
    %v772 = vunpack.c.l.s4 1934713408
    %v773 = vunpack.c.0.s8 %v772
    %v774 = vlaneseq
    %v775 = vshrl.u32 %v774, 7
    %v776 = vsub.s32 %v773, %v775
    %v777 = vrot.slane %v769, %v776
    %v779 = vunpack.c.l.s4 1934713408
    %v780 = vunpack.c.0.s8 %v779
    %v781 = vlaneseq
    %v782 = vshrl.u32 %v781, 7
    %v783 = vsub.s32 %v780, %v782
    %v784 = vrot.slane %v770, %v783
    %v785 = vcombine.low %v752, %v768
    %v786 = vcombine.high %v752, %v768
    %v788 = vunpack.c.l.s4 1934713408
    %v789 = vunpack.c.0.s8 %v788
    %v790 = vlaneseq
    %v791 = vshrl.u32 %v790, 7
    %v792 = vsub.s32 %v789, %v791
    %v793 = vrot.slane %v785, %v792
    %v795 = vunpack.c.l.s4 1934713408
    %v796 = vunpack.c.0.s8 %v795
    %v797 = vlaneseq
    %v798 = vshrl.u32 %v797, 7
    %v799 = vsub.s32 %v796, %v798
    %v800 = vrot.slane %v786, %v799
    %v801 = vcombine.high %v777, 0.0
    %v802 = vcombine.high %v784, 0.0
    %v803 = vcombine.high %v793, 0.0
    %v804 = vcombine.high %v800, 0.0
    %806 = vrot.lane.b32.xlu0 %v733, 51
    %v807 = vpop.permute.xlu0 %806
    %810 = vrot.lane.b32.xlu0 %v716, 102
    %v811 = vpop.permute.xlu0 %810
    %814 = vrot.lane.b32.xlu0 %v734, 25
    %v815 = vpop.permute.xlu0 %814
    %818 = vrot.lane.b32.xlu0 %v725, 76
    %v819 = vpop.permute.xlu0 %818
    %822 = vrot.lane.b32.xlu0 %v735, 127
    %v823 = vpop.permute.xlu0 %822
    %826 = vrot.lane.b32.xlu0 %v732, 50
    %v827 = vpop.permute.xlu0 %826
    %830 = vrot.lane.b32.xlu0 %v736, 101
    %v831 = vpop.permute.xlu0 %830
    %834 = vrot.lane.b32.xlu0 %v777, 24
    %v835 = vpop.permute.xlu0 %834
    %838 = vrot.lane.b32.xlu0 %v801, 75
    %v839 = vpop.permute.xlu0 %838
    %842 = vrot.lane.b32.xlu0 %v784, 126
    %v843 = vpop.permute.xlu0 %842
    %846 = vrot.lane.b32.xlu0 %v802, 49
    %v847 = vpop.permute.xlu0 %846
    %850 = vrot.lane.b32.xlu0 %v793, 100
    %v851 = vpop.permute.xlu0 %850
    %854 = vrot.lane.b32.xlu0 %v803, 23
    %v855 = vpop.permute.xlu0 %854
    %858 = vrot.lane.b32.xlu0 %v800, 74
    %v859 = vpop.permute.xlu0 %858
    %862 = vrot.lane.b32.xlu0 %v804, 125
    %v863 = vpop.permute.xlu0 %862
    %v865 = vsel %vm372, %v709, %v807
    %v866 = vsel %vm374, %v865, %v811
    %v867 = vsel %vm376, %v811, %v815
    %v868 = vsel %vm378, %v867, %v819
    %v869 = vsel %vm380, %v868, %v823
    %v870 = vsel %vm382, %v823, %v827
    %v871 = vsel %vm384, %v870, %v831
    %v872 = vsel %vm386, %v831, %v835
    %v873 = vsel %vm388, %v872, %v839
    %v874 = vsel %vm390, %v873, %v843
    %v875 = vsel %vm392, %v843, %v847
    %v876 = vsel %vm394, %v875, %v851
    %v877 = vsel %vm396, %v851, %v855
    %v878 = vsel %vm398, %v877, %v859
    %v879 = vsel %vm400, %v878, %v863
    %880 = vrot.lane.b32.xlu0 %v104, 125
    %v881 = vpop.permute.xlu0 %880
    %882 = vrot.lane.b32.xlu0 %v172, 125
    %v883 = vpop.permute.xlu0 %882
    %884 = vrot.lane.b32.xlu0 %v105, 125
    %v885 = vpop.permute.xlu0 %884
    %886 = vrot.lane.b32.xlu0 %v173, 125
    %v887 = vpop.permute.xlu0 %886
    %888 = vrot.lane.b32.xlu0 %v106, 125
    %v889 = vpop.permute.xlu0 %888
    %890 = vrot.lane.b32.xlu0 %v174, 125
    %v891 = vpop.permute.xlu0 %890
    %892 = vrot.lane.b32.xlu0 %v107, 125
    %v893 = vpop.permute.xlu0 %892
    %894 = vrot.lane.b32.xlu0 %v175, 125
    %v895 = vpop.permute.xlu0 %894
    %v904 = vcombine.low %v881, %v889
    %v905 = vcombine.high %v881, %v889
    %v907 = vunpack.c.l.s4 1983009808
    %v908 = vunpack.c.0.s8 %v907
    %v909 = vlaneseq
    %v910 = vshrl.u32 %v909, 7
    %v911 = vsub.s32 %v908, %v910
    %v912 = vrot.slane %v904, %v911
    %v914 = vunpack.c.l.s4 1983009808
    %v915 = vunpack.c.0.s8 %v914
    %v916 = vlaneseq
    %v917 = vshrl.u32 %v916, 7
    %v918 = vsub.s32 %v915, %v917
    %v919 = vrot.slane %v905, %v918
    %v920 = vcombine.low %v885, %v893
    %v921 = vcombine.high %v885, %v893
    %v923 = vunpack.c.l.s4 1983009808
    %v924 = vunpack.c.0.s8 %v923
    %v925 = vlaneseq
    %v926 = vshrl.u32 %v925, 7
    %v927 = vsub.s32 %v924, %v926
    %v928 = vrot.slane %v920, %v927
    %v930 = vunpack.c.l.s4 1983009808
    %v931 = vunpack.c.0.s8 %v930
    %v932 = vlaneseq
    %v933 = vshrl.u32 %v932, 7
    %v934 = vsub.s32 %v931, %v933
    %v935 = vrot.slane %v921, %v934
    %v936 = vcombine.low %v912, %v928
    %v937 = vcombine.high %v912, %v928
    %v939 = vunpack.c.l.s4 1934713408
    %v940 = vunpack.c.0.s8 %v939
    %v941 = vlaneseq
    %v942 = vshrl.u32 %v941, 7
    %v943 = vsub.s32 %v940, %v942
    %v944 = vrot.slane %v936, %v943
    %v946 = vunpack.c.l.s4 1934713408
    %v947 = vunpack.c.0.s8 %v946
    %v948 = vlaneseq
    %v949 = vshrl.u32 %v948, 7
    %v950 = vsub.s32 %v947, %v949
    %v951 = vrot.slane %v937, %v950
    %v952 = vcombine.low %v919, %v935
    %v953 = vcombine.high %v919, %v935
    %v955 = vunpack.c.l.s4 1934713408
    %v956 = vunpack.c.0.s8 %v955
    %v957 = vlaneseq
    %v958 = vshrl.u32 %v957, 7
    %v959 = vsub.s32 %v956, %v958
    %v960 = vrot.slane %v952, %v959
    %v962 = vunpack.c.l.s4 1934713408
    %v963 = vunpack.c.0.s8 %v962
    %v964 = vlaneseq
    %v965 = vshrl.u32 %v964, 7
    %v966 = vsub.s32 %v963, %v965
    %v967 = vrot.slane %v953, %v966
    %v968 = vcombine.high %v944, 0.0
    %v969 = vcombine.high %v951, 0.0
    %v970 = vcombine.high %v960, 0.0
    %v971 = vcombine.high %v967, 0.0
    %v972 = vcombine.low %v883, %v891
    %v973 = vcombine.high %v883, %v891
    %v975 = vunpack.c.l.s4 1983009808
    %v976 = vunpack.c.0.s8 %v975
    %v977 = vlaneseq
    %v978 = vshrl.u32 %v977, 7
    %v979 = vsub.s32 %v976, %v978
    %v980 = vrot.slane %v972, %v979
    %v982 = vunpack.c.l.s4 1983009808
    %v983 = vunpack.c.0.s8 %v982
    %v984 = vlaneseq
    %v985 = vshrl.u32 %v984, 7
    %v986 = vsub.s32 %v983, %v985
    %v987 = vrot.slane %v973, %v986
    %v988 = vcombine.low %v887, %v895
    %v989 = vcombine.high %v887, %v895
    %v991 = vunpack.c.l.s4 1983009808
    %v992 = vunpack.c.0.s8 %v991
    %v993 = vlaneseq
    %v994 = vshrl.u32 %v993, 7
    %v995 = vsub.s32 %v992, %v994
    %v996 = vrot.slane %v988, %v995
    %v998 = vunpack.c.l.s4 1983009808
    %v999 = vunpack.c.0.s8 %v998
    %v1000 = vlaneseq
    %v1001 = vshrl.u32 %v1000, 7
    %v1002 = vsub.s32 %v999, %v1001
    %v1003 = vrot.slane %v989, %v1002
    %v1004 = vcombine.low %v980, %v996
    %v1005 = vcombine.high %v980, %v996
    %v1007 = vunpack.c.l.s4 1934713408
    %v1008 = vunpack.c.0.s8 %v1007
    %v1009 = vlaneseq
    %v1010 = vshrl.u32 %v1009, 7
    %v1011 = vsub.s32 %v1008, %v1010
    %v1012 = vrot.slane %v1004, %v1011
    %v1014 = vunpack.c.l.s4 1934713408
    %v1015 = vunpack.c.0.s8 %v1014
    %v1016 = vlaneseq
    %v1017 = vshrl.u32 %v1016, 7
    %v1018 = vsub.s32 %v1015, %v1017
    %v1019 = vrot.slane %v1005, %v1018
    %v1020 = vcombine.low %v987, %v1003
    %v1021 = vcombine.high %v987, %v1003
    %v1023 = vunpack.c.l.s4 1934713408
    %v1024 = vunpack.c.0.s8 %v1023
    %v1025 = vlaneseq
    %v1026 = vshrl.u32 %v1025, 7
    %v1027 = vsub.s32 %v1024, %v1026
    %v1028 = vrot.slane %v1020, %v1027
    %v1030 = vunpack.c.l.s4 1934713408
    %v1031 = vunpack.c.0.s8 %v1030
    %v1032 = vlaneseq
    %v1033 = vshrl.u32 %v1032, 7
    %v1034 = vsub.s32 %v1031, %v1033
    %v1035 = vrot.slane %v1021, %v1034
    %v1036 = vcombine.high %v1012, 0.0
    %v1037 = vcombine.high %v1019, 0.0
    %v1038 = vcombine.high %v1028, 0.0
    %v1039 = vcombine.high %v1035, 0.0
    %1041 = vrot.lane.b32.xlu0 %v968, 51
    %v1042 = vpop.permute.xlu0 %1041
    %1045 = vrot.lane.b32.xlu0 %v951, 102
    %v1046 = vpop.permute.xlu0 %1045
    %1049 = vrot.lane.b32.xlu0 %v969, 25
    %v1050 = vpop.permute.xlu0 %1049
    %1053 = vrot.lane.b32.xlu0 %v960, 76
    %v1054 = vpop.permute.xlu0 %1053
    %1057 = vrot.lane.b32.xlu0 %v970, 127
    %v1058 = vpop.permute.xlu0 %1057
    %1061 = vrot.lane.b32.xlu0 %v967, 50
    %v1062 = vpop.permute.xlu0 %1061
    %1065 = vrot.lane.b32.xlu0 %v971, 101
    %v1066 = vpop.permute.xlu0 %1065
    %1069 = vrot.lane.b32.xlu0 %v1012, 24
    %v1070 = vpop.permute.xlu0 %1069
    %1073 = vrot.lane.b32.xlu0 %v1036, 75
    %v1074 = vpop.permute.xlu0 %1073
    %1077 = vrot.lane.b32.xlu0 %v1019, 126
    %v1078 = vpop.permute.xlu0 %1077
    %1081 = vrot.lane.b32.xlu0 %v1037, 49
    %v1082 = vpop.permute.xlu0 %1081
    %1085 = vrot.lane.b32.xlu0 %v1028, 100
    %v1086 = vpop.permute.xlu0 %1085
    %1089 = vrot.lane.b32.xlu0 %v1038, 23
    %v1090 = vpop.permute.xlu0 %1089
    %1093 = vrot.lane.b32.xlu0 %v1035, 74
    %v1094 = vpop.permute.xlu0 %1093
    %1097 = vrot.lane.b32.xlu0 %v1039, 125
    %v1098 = vpop.permute.xlu0 %1097
    %v1100 = vsel %vm372, %v944, %v1042
    %v1101 = vsel %vm374, %v1100, %v1046
    %v1102 = vsel %vm376, %v1046, %v1050
    %v1103 = vsel %vm378, %v1102, %v1054
    %v1104 = vsel %vm380, %v1103, %v1058
    %v1105 = vsel %vm382, %v1058, %v1062
    %v1106 = vsel %vm384, %v1105, %v1066
    %v1107 = vsel %vm386, %v1066, %v1070
    %v1108 = vsel %vm388, %v1107, %v1074
    %v1109 = vsel %vm390, %v1108, %v1078
    %v1110 = vsel %vm392, %v1078, %v1082
    %v1111 = vsel %vm394, %v1110, %v1086
    %v1112 = vsel %vm396, %v1086, %v1090
    %v1113 = vsel %vm398, %v1112, %v1094
    %v1114 = vsel %vm400, %v1113, %v1098
    %1115 = vrot.lane.b32.xlu0 %v104, 124
    %v1116 = vpop.permute.xlu0 %1115
    %1117 = vrot.lane.b32.xlu0 %v172, 124
    %v1118 = vpop.permute.xlu0 %1117
    %1119 = vrot.lane.b32.xlu0 %v105, 124
    %v1120 = vpop.permute.xlu0 %1119
    %1121 = vrot.lane.b32.xlu0 %v173, 124
    %v1122 = vpop.permute.xlu0 %1121
    %1123 = vrot.lane.b32.xlu0 %v106, 124
    %v1124 = vpop.permute.xlu0 %1123
    %1125 = vrot.lane.b32.xlu0 %v174, 124
    %v1126 = vpop.permute.xlu0 %1125
    %1127 = vrot.lane.b32.xlu0 %v107, 124
    %v1128 = vpop.permute.xlu0 %1127
    %1129 = vrot.lane.b32.xlu0 %v175, 124
    %v1130 = vpop.permute.xlu0 %1129
    %v1139 = vcombine.low %v1116, %v1124
    %v1140 = vcombine.high %v1116, %v1124
    %v1142 = vunpack.c.l.s4 1983009808
    %v1143 = vunpack.c.0.s8 %v1142
    %v1144 = vlaneseq
    %v1145 = vshrl.u32 %v1144, 7
    %v1146 = vsub.s32 %v1143, %v1145
    %v1147 = vrot.slane %v1139, %v1146
    %v1149 = vunpack.c.l.s4 1983009808
    %v1150 = vunpack.c.0.s8 %v1149
    %v1151 = vlaneseq
    %v1152 = vshrl.u32 %v1151, 7
    %v1153 = vsub.s32 %v1150, %v1152
    %v1154 = vrot.slane %v1140, %v1153
    %v1155 = vcombine.low %v1120, %v1128
    %v1156 = vcombine.high %v1120, %v1128
    %v1158 = vunpack.c.l.s4 1983009808
    %v1159 = vunpack.c.0.s8 %v1158
    %v1160 = vlaneseq
    %v1161 = vshrl.u32 %v1160, 7
    %v1162 = vsub.s32 %v1159, %v1161
    %v1163 = vrot.slane %v1155, %v1162
    %v1165 = vunpack.c.l.s4 1983009808
    %v1166 = vunpack.c.0.s8 %v1165
    %v1167 = vlaneseq
    %v1168 = vshrl.u32 %v1167, 7
    %v1169 = vsub.s32 %v1166, %v1168
    %v1170 = vrot.slane %v1156, %v1169
    %v1171 = vcombine.low %v1147, %v1163
    %v1172 = vcombine.high %v1147, %v1163
    %v1174 = vunpack.c.l.s4 1934713408
    %v1175 = vunpack.c.0.s8 %v1174
    %v1176 = vlaneseq
    %v1177 = vshrl.u32 %v1176, 7
    %v1178 = vsub.s32 %v1175, %v1177
    %v1179 = vrot.slane %v1171, %v1178
    %v1181 = vunpack.c.l.s4 1934713408
    %v1182 = vunpack.c.0.s8 %v1181
    %v1183 = vlaneseq
    %v1184 = vshrl.u32 %v1183, 7
    %v1185 = vsub.s32 %v1182, %v1184
    %v1186 = vrot.slane %v1172, %v1185
    %v1187 = vcombine.low %v1154, %v1170
    %v1188 = vcombine.high %v1154, %v1170
    %v1190 = vunpack.c.l.s4 1934713408
    %v1191 = vunpack.c.0.s8 %v1190
    %v1192 = vlaneseq
    %v1193 = vshrl.u32 %v1192, 7
    %v1194 = vsub.s32 %v1191, %v1193
    %v1195 = vrot.slane %v1187, %v1194
    %v1197 = vunpack.c.l.s4 1934713408
    %v1198 = vunpack.c.0.s8 %v1197
    %v1199 = vlaneseq
    %v1200 = vshrl.u32 %v1199, 7
    %v1201 = vsub.s32 %v1198, %v1200
    %v1202 = vrot.slane %v1188, %v1201
    %v1203 = vcombine.high %v1179, 0.0
    %v1204 = vcombine.high %v1186, 0.0
    %v1205 = vcombine.high %v1195, 0.0
    %v1206 = vcombine.high %v1202, 0.0
    %v1207 = vcombine.low %v1118, %v1126
    %v1208 = vcombine.high %v1118, %v1126
    %v1210 = vunpack.c.l.s4 1983009808
    %v1211 = vunpack.c.0.s8 %v1210
    %v1212 = vlaneseq
    %v1213 = vshrl.u32 %v1212, 7
    %v1214 = vsub.s32 %v1211, %v1213
    %v1215 = vrot.slane %v1207, %v1214
    %v1217 = vunpack.c.l.s4 1983009808
    %v1218 = vunpack.c.0.s8 %v1217
    %v1219 = vlaneseq
    %v1220 = vshrl.u32 %v1219, 7
    %v1221 = vsub.s32 %v1218, %v1220
    %v1222 = vrot.slane %v1208, %v1221
    %v1223 = vcombine.low %v1122, %v1130
    %v1224 = vcombine.high %v1122, %v1130
    %v1226 = vunpack.c.l.s4 1983009808
    %v1227 = vunpack.c.0.s8 %v1226
    %v1228 = vlaneseq
    %v1229 = vshrl.u32 %v1228, 7
    %v1230 = vsub.s32 %v1227, %v1229
    %v1231 = vrot.slane %v1223, %v1230
    %v1233 = vunpack.c.l.s4 1983009808
    %v1234 = vunpack.c.0.s8 %v1233
    %v1235 = vlaneseq
    %v1236 = vshrl.u32 %v1235, 7
    %v1237 = vsub.s32 %v1234, %v1236
    %v1238 = vrot.slane %v1224, %v1237
    %v1239 = vcombine.low %v1215, %v1231
    %v1240 = vcombine.high %v1215, %v1231
    %v1242 = vunpack.c.l.s4 1934713408
    %v1243 = vunpack.c.0.s8 %v1242
    %v1244 = vlaneseq
    %v1245 = vshrl.u32 %v1244, 7
    %v1246 = vsub.s32 %v1243, %v1245
    %v1247 = vrot.slane %v1239, %v1246
    %v1249 = vunpack.c.l.s4 1934713408
    %v1250 = vunpack.c.0.s8 %v1249
    %v1251 = vlaneseq
    %v1252 = vshrl.u32 %v1251, 7
    %v1253 = vsub.s32 %v1250, %v1252
    %v1254 = vrot.slane %v1240, %v1253
    %v1255 = vcombine.low %v1222, %v1238
    %v1256 = vcombine.high %v1222, %v1238
    %v1258 = vunpack.c.l.s4 1934713408
    %v1259 = vunpack.c.0.s8 %v1258
    %v1260 = vlaneseq
    %v1261 = vshrl.u32 %v1260, 7
    %v1262 = vsub.s32 %v1259, %v1261
    %v1263 = vrot.slane %v1255, %v1262
    %v1265 = vunpack.c.l.s4 1934713408
    %v1266 = vunpack.c.0.s8 %v1265
    %v1267 = vlaneseq
    %v1268 = vshrl.u32 %v1267, 7
    %v1269 = vsub.s32 %v1266, %v1268
    %v1270 = vrot.slane %v1256, %v1269
    %v1271 = vcombine.high %v1247, 0.0
    %v1272 = vcombine.high %v1254, 0.0
    %v1273 = vcombine.high %v1263, 0.0
    %v1274 = vcombine.high %v1270, 0.0
    %1276 = vrot.lane.b32.xlu0 %v1203, 51
    %v1277 = vpop.permute.xlu0 %1276
    %1280 = vrot.lane.b32.xlu0 %v1186, 102
    %v1281 = vpop.permute.xlu0 %1280
    %1284 = vrot.lane.b32.xlu0 %v1204, 25
    %v1285 = vpop.permute.xlu0 %1284
    %1288 = vrot.lane.b32.xlu0 %v1195, 76
    %v1289 = vpop.permute.xlu0 %1288
    %1292 = vrot.lane.b32.xlu0 %v1205, 127
    %v1293 = vpop.permute.xlu0 %1292
    %1296 = vrot.lane.b32.xlu0 %v1202, 50
    %v1297 = vpop.permute.xlu0 %1296
    %1300 = vrot.lane.b32.xlu0 %v1206, 101
    %v1301 = vpop.permute.xlu0 %1300
    %1304 = vrot.lane.b32.xlu0 %v1247, 24
    %v1305 = vpop.permute.xlu0 %1304
    %1308 = vrot.lane.b32.xlu0 %v1271, 75
    %v1309 = vpop.permute.xlu0 %1308
    %1312 = vrot.lane.b32.xlu0 %v1254, 126
    %v1313 = vpop.permute.xlu0 %1312
    %1316 = vrot.lane.b32.xlu0 %v1272, 49
    %v1317 = vpop.permute.xlu0 %1316
    %1320 = vrot.lane.b32.xlu0 %v1263, 100
    %v1321 = vpop.permute.xlu0 %1320
    %1324 = vrot.lane.b32.xlu0 %v1273, 23
    %v1325 = vpop.permute.xlu0 %1324
    %1328 = vrot.lane.b32.xlu0 %v1270, 74
    %v1329 = vpop.permute.xlu0 %1328
    %1332 = vrot.lane.b32.xlu0 %v1274, 125
    %v1333 = vpop.permute.xlu0 %1332
    %v1335 = vsel %vm372, %v1179, %v1277
    %v1336 = vsel %vm374, %v1335, %v1281
    %v1337 = vsel %vm376, %v1281, %v1285
    %v1338 = vsel %vm378, %v1337, %v1289
    %v1339 = vsel %vm380, %v1338, %v1293
    %v1340 = vsel %vm382, %v1293, %v1297
    %v1341 = vsel %vm384, %v1340, %v1301
    %v1342 = vsel %vm386, %v1301, %v1305
    %v1343 = vsel %vm388, %v1342, %v1309
    %v1344 = vsel %vm390, %v1343, %v1313
    %v1345 = vsel %vm392, %v1313, %v1317
    %v1346 = vsel %vm394, %v1345, %v1321
    %v1347 = vsel %vm396, %v1321, %v1325
    %v1348 = vsel %vm398, %v1347, %v1329
    %v1349 = vsel %vm400, %v1348, %v1333
    %1350 = vrot.lane.b32.xlu0 %v104, 123
    %v1351 = vpop.permute.xlu0 %1350
    %1352 = vrot.lane.b32.xlu0 %v172, 123
    %v1353 = vpop.permute.xlu0 %1352
    %1354 = vrot.lane.b32.xlu0 %v105, 123
    %v1355 = vpop.permute.xlu0 %1354
    %1356 = vrot.lane.b32.xlu0 %v173, 123
    %v1357 = vpop.permute.xlu0 %1356
    %1358 = vrot.lane.b32.xlu0 %v106, 123
    %v1359 = vpop.permute.xlu0 %1358
    %1360 = vrot.lane.b32.xlu0 %v174, 123
    %v1361 = vpop.permute.xlu0 %1360
    %1362 = vrot.lane.b32.xlu0 %v107, 123
    %v1363 = vpop.permute.xlu0 %1362
    %1364 = vrot.lane.b32.xlu0 %v175, 123
    %v1365 = vpop.permute.xlu0 %1364
    %v1374 = vcombine.low %v1351, %v1359
    %v1375 = vcombine.high %v1351, %v1359
    %v1377 = vunpack.c.l.s4 1983009808
    %v1378 = vunpack.c.0.s8 %v1377
    %v1379 = vlaneseq
    %v1380 = vshrl.u32 %v1379, 7
    %v1381 = vsub.s32 %v1378, %v1380
    %v1382 = vrot.slane %v1374, %v1381
    %v1384 = vunpack.c.l.s4 1983009808
    %v1385 = vunpack.c.0.s8 %v1384
    %v1386 = vlaneseq
    %v1387 = vshrl.u32 %v1386, 7
    %v1388 = vsub.s32 %v1385, %v1387
    %v1389 = vrot.slane %v1375, %v1388
    %v1390 = vcombine.low %v1355, %v1363
    %v1391 = vcombine.high %v1355, %v1363
    %v1393 = vunpack.c.l.s4 1983009808
    %v1394 = vunpack.c.0.s8 %v1393
    %v1395 = vlaneseq
    %v1396 = vshrl.u32 %v1395, 7
    %v1397 = vsub.s32 %v1394, %v1396
    %v1398 = vrot.slane %v1390, %v1397
    %v1400 = vunpack.c.l.s4 1983009808
    %v1401 = vunpack.c.0.s8 %v1400
    %v1402 = vlaneseq
    %v1403 = vshrl.u32 %v1402, 7
    %v1404 = vsub.s32 %v1401, %v1403
    %v1405 = vrot.slane %v1391, %v1404
    %v1406 = vcombine.low %v1382, %v1398
    %v1407 = vcombine.high %v1382, %v1398
    %v1409 = vunpack.c.l.s4 1934713408
    %v1410 = vunpack.c.0.s8 %v1409
    %v1411 = vlaneseq
    %v1412 = vshrl.u32 %v1411, 7
    %v1413 = vsub.s32 %v1410, %v1412
    %v1414 = vrot.slane %v1406, %v1413
    %v1416 = vunpack.c.l.s4 1934713408
    %v1417 = vunpack.c.0.s8 %v1416
    %v1418 = vlaneseq
    %v1419 = vshrl.u32 %v1418, 7
    %v1420 = vsub.s32 %v1417, %v1419
    %v1421 = vrot.slane %v1407, %v1420
    %v1422 = vcombine.low %v1389, %v1405
    %v1423 = vcombine.high %v1389, %v1405
    %v1425 = vunpack.c.l.s4 1934713408
    %v1426 = vunpack.c.0.s8 %v1425
    %v1427 = vlaneseq
    %v1428 = vshrl.u32 %v1427, 7
    %v1429 = vsub.s32 %v1426, %v1428
    %v1430 = vrot.slane %v1422, %v1429
    %v1432 = vunpack.c.l.s4 1934713408
    %v1433 = vunpack.c.0.s8 %v1432
    %v1434 = vlaneseq
    %v1435 = vshrl.u32 %v1434, 7
    %v1436 = vsub.s32 %v1433, %v1435
    %v1437 = vrot.slane %v1423, %v1436
    %v1438 = vcombine.high %v1414, 0.0
    %v1439 = vcombine.high %v1421, 0.0
    %v1440 = vcombine.high %v1430, 0.0
    %v1441 = vcombine.high %v1437, 0.0
    %v1442 = vcombine.low %v1353, %v1361
    %v1443 = vcombine.high %v1353, %v1361
    %v1445 = vunpack.c.l.s4 1983009808
    %v1446 = vunpack.c.0.s8 %v1445
    %v1447 = vlaneseq
    %v1448 = vshrl.u32 %v1447, 7
    %v1449 = vsub.s32 %v1446, %v1448
    %v1450 = vrot.slane %v1442, %v1449
    %v1452 = vunpack.c.l.s4 1983009808
    %v1453 = vunpack.c.0.s8 %v1452
    %v1454 = vlaneseq
    %v1455 = vshrl.u32 %v1454, 7
    %v1456 = vsub.s32 %v1453, %v1455
    %v1457 = vrot.slane %v1443, %v1456
    %v1458 = vcombine.low %v1357, %v1365
    %v1459 = vcombine.high %v1357, %v1365
    %v1461 = vunpack.c.l.s4 1983009808
    %v1462 = vunpack.c.0.s8 %v1461
    %v1463 = vlaneseq
    %v1464 = vshrl.u32 %v1463, 7
    %v1465 = vsub.s32 %v1462, %v1464
    %v1466 = vrot.slane %v1458, %v1465
    %v1468 = vunpack.c.l.s4 1983009808
    %v1469 = vunpack.c.0.s8 %v1468
    %v1470 = vlaneseq
    %v1471 = vshrl.u32 %v1470, 7
    %v1472 = vsub.s32 %v1469, %v1471
    %v1473 = vrot.slane %v1459, %v1472
    %v1474 = vcombine.low %v1450, %v1466
    %v1475 = vcombine.high %v1450, %v1466
    %v1477 = vunpack.c.l.s4 1934713408
    %v1478 = vunpack.c.0.s8 %v1477
    %v1479 = vlaneseq
    %v1480 = vshrl.u32 %v1479, 7
    %v1481 = vsub.s32 %v1478, %v1480
    %v1482 = vrot.slane %v1474, %v1481
    %v1484 = vunpack.c.l.s4 1934713408
    %v1485 = vunpack.c.0.s8 %v1484
    %v1486 = vlaneseq
    %v1487 = vshrl.u32 %v1486, 7
    %v1488 = vsub.s32 %v1485, %v1487
    %v1489 = vrot.slane %v1475, %v1488
    %v1490 = vcombine.low %v1457, %v1473
    %v1491 = vcombine.high %v1457, %v1473
    %v1493 = vunpack.c.l.s4 1934713408
    %v1494 = vunpack.c.0.s8 %v1493
    %v1495 = vlaneseq
    %v1496 = vshrl.u32 %v1495, 7
    %v1497 = vsub.s32 %v1494, %v1496
    %v1498 = vrot.slane %v1490, %v1497
    %v1500 = vunpack.c.l.s4 1934713408
    %v1501 = vunpack.c.0.s8 %v1500
    %v1502 = vlaneseq
    %v1503 = vshrl.u32 %v1502, 7
    %v1504 = vsub.s32 %v1501, %v1503
    %v1505 = vrot.slane %v1491, %v1504
    %v1506 = vcombine.high %v1482, 0.0
    %v1507 = vcombine.high %v1489, 0.0
    %v1508 = vcombine.high %v1498, 0.0
    %v1509 = vcombine.high %v1505, 0.0
    %1511 = vrot.lane.b32.xlu0 %v1438, 51
    %v1512 = vpop.permute.xlu0 %1511
    %1515 = vrot.lane.b32.xlu0 %v1421, 102
    %v1516 = vpop.permute.xlu0 %1515
    %1519 = vrot.lane.b32.xlu0 %v1439, 25
    %v1520 = vpop.permute.xlu0 %1519
    %1523 = vrot.lane.b32.xlu0 %v1430, 76
    %v1524 = vpop.permute.xlu0 %1523
    %1527 = vrot.lane.b32.xlu0 %v1440, 127
    %v1528 = vpop.permute.xlu0 %1527
    %1531 = vrot.lane.b32.xlu0 %v1437, 50
    %v1532 = vpop.permute.xlu0 %1531
    %1535 = vrot.lane.b32.xlu0 %v1441, 101
    %v1536 = vpop.permute.xlu0 %1535
    %1539 = vrot.lane.b32.xlu0 %v1482, 24
    %v1540 = vpop.permute.xlu0 %1539
    %1543 = vrot.lane.b32.xlu0 %v1506, 75
    %v1544 = vpop.permute.xlu0 %1543
    %1547 = vrot.lane.b32.xlu0 %v1489, 126
    %v1548 = vpop.permute.xlu0 %1547
    %1551 = vrot.lane.b32.xlu0 %v1507, 49
    %v1552 = vpop.permute.xlu0 %1551
    %1555 = vrot.lane.b32.xlu0 %v1498, 100
    %v1556 = vpop.permute.xlu0 %1555
    %1559 = vrot.lane.b32.xlu0 %v1508, 23
    %v1560 = vpop.permute.xlu0 %1559
    %1563 = vrot.lane.b32.xlu0 %v1505, 74
    %v1564 = vpop.permute.xlu0 %1563
    %1567 = vrot.lane.b32.xlu0 %v1509, 125
    %v1568 = vpop.permute.xlu0 %1567
    %v1570 = vsel %vm372, %v1414, %v1512
    %v1571 = vsel %vm374, %v1570, %v1516
    %v1572 = vsel %vm376, %v1516, %v1520
    %v1573 = vsel %vm378, %v1572, %v1524
    %v1574 = vsel %vm380, %v1573, %v1528
    %v1575 = vsel %vm382, %v1528, %v1532
    %v1576 = vsel %vm384, %v1575, %v1536
    %v1577 = vsel %vm386, %v1536, %v1540
    %v1578 = vsel %vm388, %v1577, %v1544
    %v1579 = vsel %vm390, %v1578, %v1548
    %v1580 = vsel %vm392, %v1548, %v1552
    %v1581 = vsel %vm394, %v1580, %v1556
    %v1582 = vsel %vm396, %v1556, %v1560
    %v1583 = vsel %vm398, %v1582, %v1564
    %v1584 = vsel %vm400, %v1583, %v1568
    %1585 = vrot.lane.b32.xlu0 %v104, 122
    %v1586 = vpop.permute.xlu0 %1585
    %1587 = vrot.lane.b32.xlu0 %v172, 122
    %v1588 = vpop.permute.xlu0 %1587
    %1589 = vrot.lane.b32.xlu0 %v105, 122
    %v1590 = vpop.permute.xlu0 %1589
    %1591 = vrot.lane.b32.xlu0 %v173, 122
    %v1592 = vpop.permute.xlu0 %1591
    %1593 = vrot.lane.b32.xlu0 %v106, 122
    %v1594 = vpop.permute.xlu0 %1593
    %1595 = vrot.lane.b32.xlu0 %v174, 122
    %v1596 = vpop.permute.xlu0 %1595
    %1597 = vrot.lane.b32.xlu0 %v107, 122
    %v1598 = vpop.permute.xlu0 %1597
    %1599 = vrot.lane.b32.xlu0 %v175, 122
    %v1600 = vpop.permute.xlu0 %1599
    %v1609 = vcombine.low %v1586, %v1594
    %v1610 = vcombine.high %v1586, %v1594
    %v1612 = vunpack.c.l.s4 1983009808
    %v1613 = vunpack.c.0.s8 %v1612
    %v1614 = vlaneseq
    %v1615 = vshrl.u32 %v1614, 7
    %v1616 = vsub.s32 %v1613, %v1615
    %v1617 = vrot.slane %v1609, %v1616
    %v1619 = vunpack.c.l.s4 1983009808
    %v1620 = vunpack.c.0.s8 %v1619
    %v1621 = vlaneseq
    %v1622 = vshrl.u32 %v1621, 7
    %v1623 = vsub.s32 %v1620, %v1622
    %v1624 = vrot.slane %v1610, %v1623
    %v1625 = vcombine.low %v1590, %v1598
    %v1626 = vcombine.high %v1590, %v1598
    %v1628 = vunpack.c.l.s4 1983009808
    %v1629 = vunpack.c.0.s8 %v1628
    %v1630 = vlaneseq
    %v1631 = vshrl.u32 %v1630, 7
    %v1632 = vsub.s32 %v1629, %v1631
    %v1633 = vrot.slane %v1625, %v1632
    %v1635 = vunpack.c.l.s4 1983009808
    %v1636 = vunpack.c.0.s8 %v1635
    %v1637 = vlaneseq
    %v1638 = vshrl.u32 %v1637, 7
    %v1639 = vsub.s32 %v1636, %v1638
    %v1640 = vrot.slane %v1626, %v1639
    %v1641 = vcombine.low %v1617, %v1633
    %v1642 = vcombine.high %v1617, %v1633
    %v1644 = vunpack.c.l.s4 1934713408
    %v1645 = vunpack.c.0.s8 %v1644
    %v1646 = vlaneseq
    %v1647 = vshrl.u32 %v1646, 7
    %v1648 = vsub.s32 %v1645, %v1647
    %v1649 = vrot.slane %v1641, %v1648
    %v1651 = vunpack.c.l.s4 1934713408
    %v1652 = vunpack.c.0.s8 %v1651
    %v1653 = vlaneseq
    %v1654 = vshrl.u32 %v1653, 7
    %v1655 = vsub.s32 %v1652, %v1654
    %v1656 = vrot.slane %v1642, %v1655
    %v1657 = vcombine.low %v1624, %v1640
    %v1658 = vcombine.high %v1624, %v1640
    %v1660 = vunpack.c.l.s4 1934713408
    %v1661 = vunpack.c.0.s8 %v1660
    %v1662 = vlaneseq
    %v1663 = vshrl.u32 %v1662, 7
    %v1664 = vsub.s32 %v1661, %v1663
    %v1665 = vrot.slane %v1657, %v1664
    %v1667 = vunpack.c.l.s4 1934713408
    %v1668 = vunpack.c.0.s8 %v1667
    %v1669 = vlaneseq
    %v1670 = vshrl.u32 %v1669, 7
    %v1671 = vsub.s32 %v1668, %v1670
    %v1672 = vrot.slane %v1658, %v1671
    %v1673 = vcombine.high %v1649, 0.0
    %v1674 = vcombine.high %v1656, 0.0
    %v1675 = vcombine.high %v1665, 0.0
    %v1676 = vcombine.high %v1672, 0.0
    %v1677 = vcombine.low %v1588, %v1596
    %v1678 = vcombine.high %v1588, %v1596
    %v1680 = vunpack.c.l.s4 1983009808
    %v1681 = vunpack.c.0.s8 %v1680
    %v1682 = vlaneseq
    %v1683 = vshrl.u32 %v1682, 7
    %v1684 = vsub.s32 %v1681, %v1683
    %v1685 = vrot.slane %v1677, %v1684
    %v1687 = vunpack.c.l.s4 1983009808
    %v1688 = vunpack.c.0.s8 %v1687
    %v1689 = vlaneseq
    %v1690 = vshrl.u32 %v1689, 7
    %v1691 = vsub.s32 %v1688, %v1690
    %v1692 = vrot.slane %v1678, %v1691
    %v1693 = vcombine.low %v1592, %v1600
    %v1694 = vcombine.high %v1592, %v1600
    %v1696 = vunpack.c.l.s4 1983009808
    %v1697 = vunpack.c.0.s8 %v1696
    %v1698 = vlaneseq
    %v1699 = vshrl.u32 %v1698, 7
    %v1700 = vsub.s32 %v1697, %v1699
    %v1701 = vrot.slane %v1693, %v1700
    %v1703 = vunpack.c.l.s4 1983009808
    %v1704 = vunpack.c.0.s8 %v1703
    %v1705 = vlaneseq
    %v1706 = vshrl.u32 %v1705, 7
    %v1707 = vsub.s32 %v1704, %v1706
    %v1708 = vrot.slane %v1694, %v1707
    %v1709 = vcombine.low %v1685, %v1701
    %v1710 = vcombine.high %v1685, %v1701
    %v1712 = vunpack.c.l.s4 1934713408
    %v1713 = vunpack.c.0.s8 %v1712
    %v1714 = vlaneseq
    %v1715 = vshrl.u32 %v1714, 7
    %v1716 = vsub.s32 %v1713, %v1715
    %v1717 = vrot.slane %v1709, %v1716
    %v1719 = vunpack.c.l.s4 1934713408
    %v1720 = vunpack.c.0.s8 %v1719
    %v1721 = vlaneseq
    %v1722 = vshrl.u32 %v1721, 7
    %v1723 = vsub.s32 %v1720, %v1722
    %v1724 = vrot.slane %v1710, %v1723
    %v1725 = vcombine.low %v1692, %v1708
    %v1726 = vcombine.high %v1692, %v1708
    %v1728 = vunpack.c.l.s4 1934713408
    %v1729 = vunpack.c.0.s8 %v1728
    %v1730 = vlaneseq
    %v1731 = vshrl.u32 %v1730, 7
    %v1732 = vsub.s32 %v1729, %v1731
    %v1733 = vrot.slane %v1725, %v1732
    %v1735 = vunpack.c.l.s4 1934713408
    %v1736 = vunpack.c.0.s8 %v1735
    %v1737 = vlaneseq
    %v1738 = vshrl.u32 %v1737, 7
    %v1739 = vsub.s32 %v1736, %v1738
    %v1740 = vrot.slane %v1726, %v1739
    %v1741 = vcombine.high %v1717, 0.0
    %v1742 = vcombine.high %v1724, 0.0
    %v1743 = vcombine.high %v1733, 0.0
    %v1744 = vcombine.high %v1740, 0.0
    %1746 = vrot.lane.b32.xlu0 %v1673, 51
    %v1747 = vpop.permute.xlu0 %1746
    %1750 = vrot.lane.b32.xlu0 %v1656, 102
    %v1751 = vpop.permute.xlu0 %1750
    %1754 = vrot.lane.b32.xlu0 %v1674, 25
    %v1755 = vpop.permute.xlu0 %1754
    %1758 = vrot.lane.b32.xlu0 %v1665, 76
    %v1759 = vpop.permute.xlu0 %1758
    %1762 = vrot.lane.b32.xlu0 %v1675, 127
    %v1763 = vpop.permute.xlu0 %1762
    %1766 = vrot.lane.b32.xlu0 %v1672, 50
    %v1767 = vpop.permute.xlu0 %1766
    %1770 = vrot.lane.b32.xlu0 %v1676, 101
    %v1771 = vpop.permute.xlu0 %1770
    %1774 = vrot.lane.b32.xlu0 %v1717, 24
    %v1775 = vpop.permute.xlu0 %1774
    %1778 = vrot.lane.b32.xlu0 %v1741, 75
    %v1779 = vpop.permute.xlu0 %1778
    %1782 = vrot.lane.b32.xlu0 %v1724, 126
    %v1783 = vpop.permute.xlu0 %1782
    %1786 = vrot.lane.b32.xlu0 %v1742, 49
    %v1787 = vpop.permute.xlu0 %1786
    %1790 = vrot.lane.b32.xlu0 %v1733, 100
    %v1791 = vpop.permute.xlu0 %1790
    %1794 = vrot.lane.b32.xlu0 %v1743, 23
    %v1795 = vpop.permute.xlu0 %1794
    %1798 = vrot.lane.b32.xlu0 %v1740, 74
    %v1799 = vpop.permute.xlu0 %1798
    %1802 = vrot.lane.b32.xlu0 %v1744, 125
    %v1803 = vpop.permute.xlu0 %1802
    %v1805 = vsel %vm372, %v1649, %v1747
    %v1806 = vsel %vm374, %v1805, %v1751
    %v1807 = vsel %vm376, %v1751, %v1755
    %v1808 = vsel %vm378, %v1807, %v1759
    %v1809 = vsel %vm380, %v1808, %v1763
    %v1810 = vsel %vm382, %v1763, %v1767
    %v1811 = vsel %vm384, %v1810, %v1771
    %v1812 = vsel %vm386, %v1771, %v1775
    %v1813 = vsel %vm388, %v1812, %v1779
    %v1814 = vsel %vm390, %v1813, %v1783
    %v1815 = vsel %vm392, %v1783, %v1787
    %v1816 = vsel %vm394, %v1815, %v1791
    %v1817 = vsel %vm396, %v1791, %v1795
    %v1818 = vsel %vm398, %v1817, %v1799
    %v1819 = vsel %vm400, %v1818, %v1803
    %1820 = vrot.lane.b32.xlu0 %v104, 121
    %v1821 = vpop.permute.xlu0 %1820
    %1822 = vrot.lane.b32.xlu0 %v172, 121
    %v1823 = vpop.permute.xlu0 %1822
    %1824 = vrot.lane.b32.xlu0 %v105, 121
    %v1825 = vpop.permute.xlu0 %1824
    %1826 = vrot.lane.b32.xlu0 %v173, 121
    %v1827 = vpop.permute.xlu0 %1826
    %1828 = vrot.lane.b32.xlu0 %v106, 121
    %v1829 = vpop.permute.xlu0 %1828
    %1830 = vrot.lane.b32.xlu0 %v174, 121
    %v1831 = vpop.permute.xlu0 %1830
    %1832 = vrot.lane.b32.xlu0 %v107, 121
    %v1833 = vpop.permute.xlu0 %1832
    %1834 = vrot.lane.b32.xlu0 %v175, 121
    %v1835 = vpop.permute.xlu0 %1834
    %v1844 = vcombine.low %v1821, %v1829
    %v1845 = vcombine.high %v1821, %v1829
    %v1847 = vunpack.c.l.s4 1983009808
    %v1848 = vunpack.c.0.s8 %v1847
    %v1849 = vlaneseq
    %v1850 = vshrl.u32 %v1849, 7
    %v1851 = vsub.s32 %v1848, %v1850
    %v1852 = vrot.slane %v1844, %v1851
    %v1854 = vunpack.c.l.s4 1983009808
    %v1855 = vunpack.c.0.s8 %v1854
    %v1856 = vlaneseq
    %v1857 = vshrl.u32 %v1856, 7
    %v1858 = vsub.s32 %v1855, %v1857
    %v1859 = vrot.slane %v1845, %v1858
    %v1860 = vcombine.low %v1825, %v1833
    %v1861 = vcombine.high %v1825, %v1833
    %v1863 = vunpack.c.l.s4 1983009808
    %v1864 = vunpack.c.0.s8 %v1863
    %v1865 = vlaneseq
    %v1866 = vshrl.u32 %v1865, 7
    %v1867 = vsub.s32 %v1864, %v1866
    %v1868 = vrot.slane %v1860, %v1867
    %v1870 = vunpack.c.l.s4 1983009808
    %v1871 = vunpack.c.0.s8 %v1870
    %v1872 = vlaneseq
    %v1873 = vshrl.u32 %v1872, 7
    %v1874 = vsub.s32 %v1871, %v1873
    %v1875 = vrot.slane %v1861, %v1874
    %v1876 = vcombine.low %v1852, %v1868
    %v1877 = vcombine.high %v1852, %v1868
    %v1879 = vunpack.c.l.s4 1934713408
    %v1880 = vunpack.c.0.s8 %v1879
    %v1881 = vlaneseq
    %v1882 = vshrl.u32 %v1881, 7
    %v1883 = vsub.s32 %v1880, %v1882
    %v1884 = vrot.slane %v1876, %v1883
    %v1886 = vunpack.c.l.s4 1934713408
    %v1887 = vunpack.c.0.s8 %v1886
    %v1888 = vlaneseq
    %v1889 = vshrl.u32 %v1888, 7
    %v1890 = vsub.s32 %v1887, %v1889
    %v1891 = vrot.slane %v1877, %v1890
    %v1892 = vcombine.low %v1859, %v1875
    %v1893 = vcombine.high %v1859, %v1875
    %v1895 = vunpack.c.l.s4 1934713408
    %v1896 = vunpack.c.0.s8 %v1895
    %v1897 = vlaneseq
    %v1898 = vshrl.u32 %v1897, 7
    %v1899 = vsub.s32 %v1896, %v1898
    %v1900 = vrot.slane %v1892, %v1899
    %v1902 = vunpack.c.l.s4 1934713408
    %v1903 = vunpack.c.0.s8 %v1902
    %v1904 = vlaneseq
    %v1905 = vshrl.u32 %v1904, 7
    %v1906 = vsub.s32 %v1903, %v1905
    %v1907 = vrot.slane %v1893, %v1906
    %v1908 = vcombine.high %v1884, 0.0
    %v1909 = vcombine.high %v1891, 0.0
    %v1910 = vcombine.high %v1900, 0.0
    %v1911 = vcombine.high %v1907, 0.0
    %v1912 = vcombine.low %v1823, %v1831
    %v1913 = vcombine.high %v1823, %v1831
    %v1915 = vunpack.c.l.s4 1983009808
    %v1916 = vunpack.c.0.s8 %v1915
    %v1917 = vlaneseq
    %v1918 = vshrl.u32 %v1917, 7
    %v1919 = vsub.s32 %v1916, %v1918
    %v1920 = vrot.slane %v1912, %v1919
    %v1922 = vunpack.c.l.s4 1983009808
    %v1923 = vunpack.c.0.s8 %v1922
    %v1924 = vlaneseq
    %v1925 = vshrl.u32 %v1924, 7
    %v1926 = vsub.s32 %v1923, %v1925
    %v1927 = vrot.slane %v1913, %v1926
    %v1928 = vcombine.low %v1827, %v1835
    %v1929 = vcombine.high %v1827, %v1835
    %v1931 = vunpack.c.l.s4 1983009808
    %v1932 = vunpack.c.0.s8 %v1931
    %v1933 = vlaneseq
    %v1934 = vshrl.u32 %v1933, 7
    %v1935 = vsub.s32 %v1932, %v1934
    %v1936 = vrot.slane %v1928, %v1935
    %v1938 = vunpack.c.l.s4 1983009808
    %v1939 = vunpack.c.0.s8 %v1938
    %v1940 = vlaneseq
    %v1941 = vshrl.u32 %v1940, 7
    %v1942 = vsub.s32 %v1939, %v1941
    %v1943 = vrot.slane %v1929, %v1942
    %v1944 = vcombine.low %v1920, %v1936
    %v1945 = vcombine.high %v1920, %v1936
    %v1947 = vunpack.c.l.s4 1934713408
    %v1948 = vunpack.c.0.s8 %v1947
    %v1949 = vlaneseq
    %v1950 = vshrl.u32 %v1949, 7
    %v1951 = vsub.s32 %v1948, %v1950
    %v1952 = vrot.slane %v1944, %v1951
    %v1954 = vunpack.c.l.s4 1934713408
    %v1955 = vunpack.c.0.s8 %v1954
    %v1956 = vlaneseq
    %v1957 = vshrl.u32 %v1956, 7
    %v1958 = vsub.s32 %v1955, %v1957
    %v1959 = vrot.slane %v1945, %v1958
    %v1960 = vcombine.low %v1927, %v1943
    %v1961 = vcombine.high %v1927, %v1943
    %v1963 = vunpack.c.l.s4 1934713408
    %v1964 = vunpack.c.0.s8 %v1963
    %v1965 = vlaneseq
    %v1966 = vshrl.u32 %v1965, 7
    %v1967 = vsub.s32 %v1964, %v1966
    %v1968 = vrot.slane %v1960, %v1967
    %v1970 = vunpack.c.l.s4 1934713408
    %v1971 = vunpack.c.0.s8 %v1970
    %v1972 = vlaneseq
    %v1973 = vshrl.u32 %v1972, 7
    %v1974 = vsub.s32 %v1971, %v1973
    %v1975 = vrot.slane %v1961, %v1974
    %v1976 = vcombine.high %v1952, 0.0
    %v1977 = vcombine.high %v1959, 0.0
    %v1978 = vcombine.high %v1968, 0.0
    %v1979 = vcombine.high %v1975, 0.0
    %1981 = vrot.lane.b32.xlu0 %v1908, 51
    %v1982 = vpop.permute.xlu0 %1981
    %1985 = vrot.lane.b32.xlu0 %v1891, 102
    %v1986 = vpop.permute.xlu0 %1985
    %1989 = vrot.lane.b32.xlu0 %v1909, 25
    %v1990 = vpop.permute.xlu0 %1989
    %1993 = vrot.lane.b32.xlu0 %v1900, 76
    %v1994 = vpop.permute.xlu0 %1993
    %1997 = vrot.lane.b32.xlu0 %v1910, 127
    %v1998 = vpop.permute.xlu0 %1997
    %2001 = vrot.lane.b32.xlu0 %v1907, 50
    %v2002 = vpop.permute.xlu0 %2001
    %2005 = vrot.lane.b32.xlu0 %v1911, 101
    %v2006 = vpop.permute.xlu0 %2005
    %2009 = vrot.lane.b32.xlu0 %v1952, 24
    %v2010 = vpop.permute.xlu0 %2009
    %2013 = vrot.lane.b32.xlu0 %v1976, 75
    %v2014 = vpop.permute.xlu0 %2013
    %2017 = vrot.lane.b32.xlu0 %v1959, 126
    %v2018 = vpop.permute.xlu0 %2017
    %2021 = vrot.lane.b32.xlu0 %v1977, 49
    %v2022 = vpop.permute.xlu0 %2021
    %2025 = vrot.lane.b32.xlu0 %v1968, 100
    %v2026 = vpop.permute.xlu0 %2025
    %2029 = vrot.lane.b32.xlu0 %v1978, 23
    %v2030 = vpop.permute.xlu0 %2029
    %2033 = vrot.lane.b32.xlu0 %v1975, 74
    %v2034 = vpop.permute.xlu0 %2033
    %2037 = vrot.lane.b32.xlu0 %v1979, 125
    %v2038 = vpop.permute.xlu0 %2037
    %v2040 = vsel %vm372, %v1884, %v1982
    %v2041 = vsel %vm374, %v2040, %v1986
    %v2042 = vsel %vm376, %v1986, %v1990
    %v2043 = vsel %vm378, %v2042, %v1994
    %v2044 = vsel %vm380, %v2043, %v1998
    %v2045 = vsel %vm382, %v1998, %v2002
    %v2046 = vsel %vm384, %v2045, %v2006
    %v2047 = vsel %vm386, %v2006, %v2010
    %v2048 = vsel %vm388, %v2047, %v2014
    %v2049 = vsel %vm390, %v2048, %v2018
    %v2050 = vsel %vm392, %v2018, %v2022
    %v2051 = vsel %vm394, %v2050, %v2026
    %v2052 = vsel %vm396, %v2026, %v2030
    %v2053 = vsel %vm398, %v2052, %v2034
    %v2054 = vsel %vm400, %v2053, %v2038
    %2055 = vrot.lane.b32.xlu0 %v104, 120
    %v2056 = vpop.permute.xlu0 %2055
    %2057 = vrot.lane.b32.xlu0 %v172, 120
    %v2058 = vpop.permute.xlu0 %2057
    %2059 = vrot.lane.b32.xlu0 %v105, 120
    %v2060 = vpop.permute.xlu0 %2059
    %2061 = vrot.lane.b32.xlu0 %v173, 120
    %v2062 = vpop.permute.xlu0 %2061
    %2063 = vrot.lane.b32.xlu0 %v106, 120
    %v2064 = vpop.permute.xlu0 %2063
    %2065 = vrot.lane.b32.xlu0 %v174, 120
    %v2066 = vpop.permute.xlu0 %2065
    %2067 = vrot.lane.b32.xlu0 %v107, 120
    %v2068 = vpop.permute.xlu0 %2067
    %2069 = vrot.lane.b32.xlu0 %v175, 120
    %v2070 = vpop.permute.xlu0 %2069
    %v2079 = vcombine.low %v2056, %v2064
    %v2080 = vcombine.high %v2056, %v2064
    %v2082 = vunpack.c.l.s4 1983009808
    %v2083 = vunpack.c.0.s8 %v2082
    %v2084 = vlaneseq
    %v2085 = vshrl.u32 %v2084, 7
    %v2086 = vsub.s32 %v2083, %v2085
    %v2087 = vrot.slane %v2079, %v2086
    %v2089 = vunpack.c.l.s4 1983009808
    %v2090 = vunpack.c.0.s8 %v2089
    %v2091 = vlaneseq
    %v2092 = vshrl.u32 %v2091, 7
    %v2093 = vsub.s32 %v2090, %v2092
    %v2094 = vrot.slane %v2080, %v2093
    %v2095 = vcombine.low %v2060, %v2068
    %v2096 = vcombine.high %v2060, %v2068
    %v2098 = vunpack.c.l.s4 1983009808
    %v2099 = vunpack.c.0.s8 %v2098
    %v2100 = vlaneseq
    %v2101 = vshrl.u32 %v2100, 7
    %v2102 = vsub.s32 %v2099, %v2101
    %v2103 = vrot.slane %v2095, %v2102
    %v2105 = vunpack.c.l.s4 1983009808
    %v2106 = vunpack.c.0.s8 %v2105
    %v2107 = vlaneseq
    %v2108 = vshrl.u32 %v2107, 7
    %v2109 = vsub.s32 %v2106, %v2108
    %v2110 = vrot.slane %v2096, %v2109
    %v2111 = vcombine.low %v2087, %v2103
    %v2112 = vcombine.high %v2087, %v2103
    %v2114 = vunpack.c.l.s4 1934713408
    %v2115 = vunpack.c.0.s8 %v2114
    %v2116 = vlaneseq
    %v2117 = vshrl.u32 %v2116, 7
    %v2118 = vsub.s32 %v2115, %v2117
    %v2119 = vrot.slane %v2111, %v2118
    %v2121 = vunpack.c.l.s4 1934713408
    %v2122 = vunpack.c.0.s8 %v2121
    %v2123 = vlaneseq
    %v2124 = vshrl.u32 %v2123, 7
    %v2125 = vsub.s32 %v2122, %v2124
    %v2126 = vrot.slane %v2112, %v2125
    %v2127 = vcombine.low %v2094, %v2110
    %v2128 = vcombine.high %v2094, %v2110
    %v2130 = vunpack.c.l.s4 1934713408
    %v2131 = vunpack.c.0.s8 %v2130
    %v2132 = vlaneseq
    %v2133 = vshrl.u32 %v2132, 7
    %v2134 = vsub.s32 %v2131, %v2133
    %v2135 = vrot.slane %v2127, %v2134
    %v2137 = vunpack.c.l.s4 1934713408
    %v2138 = vunpack.c.0.s8 %v2137
    %v2139 = vlaneseq
    %v2140 = vshrl.u32 %v2139, 7
    %v2141 = vsub.s32 %v2138, %v2140
    %v2142 = vrot.slane %v2128, %v2141
    %v2143 = vcombine.high %v2119, 0.0
    %v2144 = vcombine.high %v2126, 0.0
    %v2145 = vcombine.high %v2135, 0.0
    %v2146 = vcombine.high %v2142, 0.0
    %v2147 = vcombine.low %v2058, %v2066
    %v2148 = vcombine.high %v2058, %v2066
    %v2150 = vunpack.c.l.s4 1983009808
    %v2151 = vunpack.c.0.s8 %v2150
    %v2152 = vlaneseq
    %v2153 = vshrl.u32 %v2152, 7
    %v2154 = vsub.s32 %v2151, %v2153
    %v2155 = vrot.slane %v2147, %v2154
    %v2157 = vunpack.c.l.s4 1983009808
    %v2158 = vunpack.c.0.s8 %v2157
    %v2159 = vlaneseq
    %v2160 = vshrl.u32 %v2159, 7
    %v2161 = vsub.s32 %v2158, %v2160
    %v2162 = vrot.slane %v2148, %v2161
    %v2163 = vcombine.low %v2062, %v2070
    %v2164 = vcombine.high %v2062, %v2070
    %v2166 = vunpack.c.l.s4 1983009808
    %v2167 = vunpack.c.0.s8 %v2166
    %v2168 = vlaneseq
    %v2169 = vshrl.u32 %v2168, 7
    %v2170 = vsub.s32 %v2167, %v2169
    %v2171 = vrot.slane %v2163, %v2170
    %v2173 = vunpack.c.l.s4 1983009808
    %v2174 = vunpack.c.0.s8 %v2173
    %v2175 = vlaneseq
    %v2176 = vshrl.u32 %v2175, 7
    %v2177 = vsub.s32 %v2174, %v2176
    %v2178 = vrot.slane %v2164, %v2177
    %v2179 = vcombine.low %v2155, %v2171
    %v2180 = vcombine.high %v2155, %v2171
    %v2182 = vunpack.c.l.s4 1934713408
    %v2183 = vunpack.c.0.s8 %v2182
    %v2184 = vlaneseq
    %v2185 = vshrl.u32 %v2184, 7
    %v2186 = vsub.s32 %v2183, %v2185
    %v2187 = vrot.slane %v2179, %v2186
    %v2189 = vunpack.c.l.s4 1934713408
    %v2190 = vunpack.c.0.s8 %v2189
    %v2191 = vlaneseq
    %v2192 = vshrl.u32 %v2191, 7
    %v2193 = vsub.s32 %v2190, %v2192
    %v2194 = vrot.slane %v2180, %v2193
    %v2195 = vcombine.low %v2162, %v2178
    %v2196 = vcombine.high %v2162, %v2178
    %v2198 = vunpack.c.l.s4 1934713408
    %v2199 = vunpack.c.0.s8 %v2198
    %v2200 = vlaneseq
    %v2201 = vshrl.u32 %v2200, 7
    %v2202 = vsub.s32 %v2199, %v2201
    %v2203 = vrot.slane %v2195, %v2202
    %v2205 = vunpack.c.l.s4 1934713408
    %v2206 = vunpack.c.0.s8 %v2205
    %v2207 = vlaneseq
    %v2208 = vshrl.u32 %v2207, 7
    %v2209 = vsub.s32 %v2206, %v2208
    %v2210 = vrot.slane %v2196, %v2209
    %v2211 = vcombine.high %v2187, 0.0
    %v2212 = vcombine.high %v2194, 0.0
    %v2213 = vcombine.high %v2203, 0.0
    %v2214 = vcombine.high %v2210, 0.0
    %2216 = vrot.lane.b32.xlu0 %v2143, 51
    %v2217 = vpop.permute.xlu0 %2216
    %2220 = vrot.lane.b32.xlu0 %v2126, 102
    %v2221 = vpop.permute.xlu0 %2220
    %2224 = vrot.lane.b32.xlu0 %v2144, 25
    %v2225 = vpop.permute.xlu0 %2224
    %2228 = vrot.lane.b32.xlu0 %v2135, 76
    %v2229 = vpop.permute.xlu0 %2228
    %2232 = vrot.lane.b32.xlu0 %v2145, 127
    %v2233 = vpop.permute.xlu0 %2232
    %2236 = vrot.lane.b32.xlu0 %v2142, 50
    %v2237 = vpop.permute.xlu0 %2236
    %2240 = vrot.lane.b32.xlu0 %v2146, 101
    %v2241 = vpop.permute.xlu0 %2240
    %2244 = vrot.lane.b32.xlu0 %v2187, 24
    %v2245 = vpop.permute.xlu0 %2244
    %2248 = vrot.lane.b32.xlu0 %v2211, 75
    %v2249 = vpop.permute.xlu0 %2248
    %2252 = vrot.lane.b32.xlu0 %v2194, 126
    %v2253 = vpop.permute.xlu0 %2252
    %2256 = vrot.lane.b32.xlu0 %v2212, 49
    %v2257 = vpop.permute.xlu0 %2256
    %2260 = vrot.lane.b32.xlu0 %v2203, 100
    %v2261 = vpop.permute.xlu0 %2260
    %2264 = vrot.lane.b32.xlu0 %v2213, 23
    %v2265 = vpop.permute.xlu0 %2264
    %2268 = vrot.lane.b32.xlu0 %v2210, 74
    %v2269 = vpop.permute.xlu0 %2268
    %2272 = vrot.lane.b32.xlu0 %v2214, 125
    %v2273 = vpop.permute.xlu0 %2272
    %v2275 = vsel %vm372, %v2119, %v2217
    %v2276 = vsel %vm374, %v2275, %v2221
    %v2277 = vsel %vm376, %v2221, %v2225
    %v2278 = vsel %vm378, %v2277, %v2229
    %v2279 = vsel %vm380, %v2278, %v2233
    %v2280 = vsel %vm382, %v2233, %v2237
    %v2281 = vsel %vm384, %v2280, %v2241
    %v2282 = vsel %vm386, %v2241, %v2245
    %v2283 = vsel %vm388, %v2282, %v2249
    %v2284 = vsel %vm390, %v2283, %v2253
    %v2285 = vsel %vm392, %v2253, %v2257
    %v2286 = vsel %vm394, %v2285, %v2261
    %v2287 = vsel %vm396, %v2261, %v2265
    %v2288 = vsel %vm398, %v2287, %v2269
    %v2289 = vsel %vm400, %v2288, %v2273
    %2290 = vrot.lane.b32.xlu0 %v104, 119
    %v2291 = vpop.permute.xlu0 %2290
    %2292 = vrot.lane.b32.xlu0 %v172, 119
    %v2293 = vpop.permute.xlu0 %2292
    %2294 = vrot.lane.b32.xlu0 %v105, 119
    %v2295 = vpop.permute.xlu0 %2294
    %2296 = vrot.lane.b32.xlu0 %v173, 119
    %v2297 = vpop.permute.xlu0 %2296
    %2298 = vrot.lane.b32.xlu0 %v106, 119
    %v2299 = vpop.permute.xlu0 %2298
    %2300 = vrot.lane.b32.xlu0 %v174, 119
    %v2301 = vpop.permute.xlu0 %2300
    %2302 = vrot.lane.b32.xlu0 %v107, 119
    %v2303 = vpop.permute.xlu0 %2302
    %2304 = vrot.lane.b32.xlu0 %v175, 119
    %v2305 = vpop.permute.xlu0 %2304
    %v2314 = vcombine.low %v2291, %v2299
    %v2315 = vcombine.high %v2291, %v2299
    %v2317 = vunpack.c.l.s4 1983009808
    %v2318 = vunpack.c.0.s8 %v2317
    %v2319 = vlaneseq
    %v2320 = vshrl.u32 %v2319, 7
    %v2321 = vsub.s32 %v2318, %v2320
    %v2322 = vrot.slane %v2314, %v2321
    %v2324 = vunpack.c.l.s4 1983009808
    %v2325 = vunpack.c.0.s8 %v2324
    %v2326 = vlaneseq
    %v2327 = vshrl.u32 %v2326, 7
    %v2328 = vsub.s32 %v2325, %v2327
    %v2329 = vrot.slane %v2315, %v2328
    %v2330 = vcombine.low %v2295, %v2303
    %v2331 = vcombine.high %v2295, %v2303
    %v2333 = vunpack.c.l.s4 1983009808
    %v2334 = vunpack.c.0.s8 %v2333
    %v2335 = vlaneseq
    %v2336 = vshrl.u32 %v2335, 7
    %v2337 = vsub.s32 %v2334, %v2336
    %v2338 = vrot.slane %v2330, %v2337
    %v2340 = vunpack.c.l.s4 1983009808
    %v2341 = vunpack.c.0.s8 %v2340
    %v2342 = vlaneseq
    %v2343 = vshrl.u32 %v2342, 7
    %v2344 = vsub.s32 %v2341, %v2343
    %v2345 = vrot.slane %v2331, %v2344
    %v2346 = vcombine.low %v2322, %v2338
    %v2347 = vcombine.high %v2322, %v2338
    %v2349 = vunpack.c.l.s4 1934713408
    %v2350 = vunpack.c.0.s8 %v2349
    %v2351 = vlaneseq
    %v2352 = vshrl.u32 %v2351, 7
    %v2353 = vsub.s32 %v2350, %v2352
    %v2354 = vrot.slane %v2346, %v2353
    %v2356 = vunpack.c.l.s4 1934713408
    %v2357 = vunpack.c.0.s8 %v2356
    %v2358 = vlaneseq
    %v2359 = vshrl.u32 %v2358, 7
    %v2360 = vsub.s32 %v2357, %v2359
    %v2361 = vrot.slane %v2347, %v2360
    %v2362 = vcombine.low %v2329, %v2345
    %v2363 = vcombine.high %v2329, %v2345
    %v2365 = vunpack.c.l.s4 1934713408
    %v2366 = vunpack.c.0.s8 %v2365
    %v2367 = vlaneseq
    %v2368 = vshrl.u32 %v2367, 7
    %v2369 = vsub.s32 %v2366, %v2368
    %v2370 = vrot.slane %v2362, %v2369
    %v2372 = vunpack.c.l.s4 1934713408
    %v2373 = vunpack.c.0.s8 %v2372
    %v2374 = vlaneseq
    %v2375 = vshrl.u32 %v2374, 7
    %v2376 = vsub.s32 %v2373, %v2375
    %v2377 = vrot.slane %v2363, %v2376
    %v2378 = vcombine.high %v2354, 0.0
    %v2379 = vcombine.high %v2361, 0.0
    %v2380 = vcombine.high %v2370, 0.0
    %v2381 = vcombine.high %v2377, 0.0
    %v2382 = vcombine.low %v2293, %v2301
    %v2383 = vcombine.high %v2293, %v2301
    %v2385 = vunpack.c.l.s4 1983009808
    %v2386 = vunpack.c.0.s8 %v2385
    %v2387 = vlaneseq
    %v2388 = vshrl.u32 %v2387, 7
    %v2389 = vsub.s32 %v2386, %v2388
    %v2390 = vrot.slane %v2382, %v2389
    %v2392 = vunpack.c.l.s4 1983009808
    %v2393 = vunpack.c.0.s8 %v2392
    %v2394 = vlaneseq
    %v2395 = vshrl.u32 %v2394, 7
    %v2396 = vsub.s32 %v2393, %v2395
    %v2397 = vrot.slane %v2383, %v2396
    %v2398 = vcombine.low %v2297, %v2305
    %v2399 = vcombine.high %v2297, %v2305
    %v2401 = vunpack.c.l.s4 1983009808
    %v2402 = vunpack.c.0.s8 %v2401
    %v2403 = vlaneseq
    %v2404 = vshrl.u32 %v2403, 7
    %v2405 = vsub.s32 %v2402, %v2404
    %v2406 = vrot.slane %v2398, %v2405
    %v2408 = vunpack.c.l.s4 1983009808
    %v2409 = vunpack.c.0.s8 %v2408
    %v2410 = vlaneseq
    %v2411 = vshrl.u32 %v2410, 7
    %v2412 = vsub.s32 %v2409, %v2411
    %v2413 = vrot.slane %v2399, %v2412
    %v2414 = vcombine.low %v2390, %v2406
    %v2415 = vcombine.high %v2390, %v2406
    %v2417 = vunpack.c.l.s4 1934713408
    %v2418 = vunpack.c.0.s8 %v2417
    %v2419 = vlaneseq
    %v2420 = vshrl.u32 %v2419, 7
    %v2421 = vsub.s32 %v2418, %v2420
    %v2422 = vrot.slane %v2414, %v2421
    %v2424 = vunpack.c.l.s4 1934713408
    %v2425 = vunpack.c.0.s8 %v2424
    %v2426 = vlaneseq
    %v2427 = vshrl.u32 %v2426, 7
    %v2428 = vsub.s32 %v2425, %v2427
    %v2429 = vrot.slane %v2415, %v2428
    %v2430 = vcombine.low %v2397, %v2413
    %v2431 = vcombine.high %v2397, %v2413
    %v2433 = vunpack.c.l.s4 1934713408
    %v2434 = vunpack.c.0.s8 %v2433
    %v2435 = vlaneseq
    %v2436 = vshrl.u32 %v2435, 7
    %v2437 = vsub.s32 %v2434, %v2436
    %v2438 = vrot.slane %v2430, %v2437
    %v2440 = vunpack.c.l.s4 1934713408
    %v2441 = vunpack.c.0.s8 %v2440
    %v2442 = vlaneseq
    %v2443 = vshrl.u32 %v2442, 7
    %v2444 = vsub.s32 %v2441, %v2443
    %v2445 = vrot.slane %v2431, %v2444
    %v2446 = vcombine.high %v2422, 0.0
    %v2447 = vcombine.high %v2429, 0.0
    %v2448 = vcombine.high %v2438, 0.0
    %v2449 = vcombine.high %v2445, 0.0
    %2451 = vrot.lane.b32.xlu0 %v2378, 51
    %v2452 = vpop.permute.xlu0 %2451
    %2455 = vrot.lane.b32.xlu0 %v2361, 102
    %v2456 = vpop.permute.xlu0 %2455
    %2459 = vrot.lane.b32.xlu0 %v2379, 25
    %v2460 = vpop.permute.xlu0 %2459
    %2463 = vrot.lane.b32.xlu0 %v2370, 76
    %v2464 = vpop.permute.xlu0 %2463
    %2467 = vrot.lane.b32.xlu0 %v2380, 127
    %v2468 = vpop.permute.xlu0 %2467
    %2471 = vrot.lane.b32.xlu0 %v2377, 50
    %v2472 = vpop.permute.xlu0 %2471
    %2475 = vrot.lane.b32.xlu0 %v2381, 101
    %v2476 = vpop.permute.xlu0 %2475
    %2479 = vrot.lane.b32.xlu0 %v2422, 24
    %v2480 = vpop.permute.xlu0 %2479
    %2483 = vrot.lane.b32.xlu0 %v2446, 75
    %v2484 = vpop.permute.xlu0 %2483
    %2487 = vrot.lane.b32.xlu0 %v2429, 126
    %v2488 = vpop.permute.xlu0 %2487
    %2491 = vrot.lane.b32.xlu0 %v2447, 49
    %v2492 = vpop.permute.xlu0 %2491
    %2495 = vrot.lane.b32.xlu0 %v2438, 100
    %v2496 = vpop.permute.xlu0 %2495
    %2499 = vrot.lane.b32.xlu0 %v2448, 23
    %v2500 = vpop.permute.xlu0 %2499
    %2503 = vrot.lane.b32.xlu0 %v2445, 74
    %v2504 = vpop.permute.xlu0 %2503
    %2507 = vrot.lane.b32.xlu0 %v2449, 125
    %v2508 = vpop.permute.xlu0 %2507
    %v2510 = vsel %vm372, %v2354, %v2452
    %v2511 = vsel %vm374, %v2510, %v2456
    %v2512 = vsel %vm376, %v2456, %v2460
    %v2513 = vsel %vm378, %v2512, %v2464
    %v2514 = vsel %vm380, %v2513, %v2468
    %v2515 = vsel %vm382, %v2468, %v2472
    %v2516 = vsel %vm384, %v2515, %v2476
    %v2517 = vsel %vm386, %v2476, %v2480
    %v2518 = vsel %vm388, %v2517, %v2484
    %v2519 = vsel %vm390, %v2518, %v2488
    %v2520 = vsel %vm392, %v2488, %v2492
    %v2521 = vsel %vm394, %v2520, %v2496
    %v2522 = vsel %vm396, %v2496, %v2500
    %v2523 = vsel %vm398, %v2522, %v2504
    %v2524 = vsel %vm400, %v2523, %v2508
    %2525 = vrot.lane.b32.xlu0 %v104, 118
    %v2526 = vpop.permute.xlu0 %2525
    %2527 = vrot.lane.b32.xlu0 %v172, 118
    %v2528 = vpop.permute.xlu0 %2527
    %2529 = vrot.lane.b32.xlu0 %v105, 118
    %v2530 = vpop.permute.xlu0 %2529
    %2531 = vrot.lane.b32.xlu0 %v173, 118
    %v2532 = vpop.permute.xlu0 %2531
    %2533 = vrot.lane.b32.xlu0 %v106, 118
    %v2534 = vpop.permute.xlu0 %2533
    %2535 = vrot.lane.b32.xlu0 %v174, 118
    %v2536 = vpop.permute.xlu0 %2535
    %2537 = vrot.lane.b32.xlu0 %v107, 118
    %v2538 = vpop.permute.xlu0 %2537
    %2539 = vrot.lane.b32.xlu0 %v175, 118
    %v2540 = vpop.permute.xlu0 %2539
    %v2549 = vcombine.low %v2526, %v2534
    %v2550 = vcombine.high %v2526, %v2534
    %v2552 = vunpack.c.l.s4 1983009808
    %v2553 = vunpack.c.0.s8 %v2552
    %v2554 = vlaneseq
    %v2555 = vshrl.u32 %v2554, 7
    %v2556 = vsub.s32 %v2553, %v2555
    %v2557 = vrot.slane %v2549, %v2556
    %v2559 = vunpack.c.l.s4 1983009808
    %v2560 = vunpack.c.0.s8 %v2559
    %v2561 = vlaneseq
    %v2562 = vshrl.u32 %v2561, 7
    %v2563 = vsub.s32 %v2560, %v2562
    %v2564 = vrot.slane %v2550, %v2563
    %v2565 = vcombine.low %v2530, %v2538
    %v2566 = vcombine.high %v2530, %v2538
    %v2568 = vunpack.c.l.s4 1983009808
    %v2569 = vunpack.c.0.s8 %v2568
    %v2570 = vlaneseq
    %v2571 = vshrl.u32 %v2570, 7
    %v2572 = vsub.s32 %v2569, %v2571
    %v2573 = vrot.slane %v2565, %v2572
    %v2575 = vunpack.c.l.s4 1983009808
    %v2576 = vunpack.c.0.s8 %v2575
    %v2577 = vlaneseq
    %v2578 = vshrl.u32 %v2577, 7
    %v2579 = vsub.s32 %v2576, %v2578
    %v2580 = vrot.slane %v2566, %v2579
    %v2581 = vcombine.low %v2557, %v2573
    %v2582 = vcombine.high %v2557, %v2573
    %v2584 = vunpack.c.l.s4 1934713408
    %v2585 = vunpack.c.0.s8 %v2584
    %v2586 = vlaneseq
    %v2587 = vshrl.u32 %v2586, 7
    %v2588 = vsub.s32 %v2585, %v2587
    %v2589 = vrot.slane %v2581, %v2588
    %v2591 = vunpack.c.l.s4 1934713408
    %v2592 = vunpack.c.0.s8 %v2591
    %v2593 = vlaneseq
    %v2594 = vshrl.u32 %v2593, 7
    %v2595 = vsub.s32 %v2592, %v2594
    %v2596 = vrot.slane %v2582, %v2595
    %v2597 = vcombine.low %v2564, %v2580
    %v2598 = vcombine.high %v2564, %v2580
    %v2600 = vunpack.c.l.s4 1934713408
    %v2601 = vunpack.c.0.s8 %v2600
    %v2602 = vlaneseq
    %v2603 = vshrl.u32 %v2602, 7
    %v2604 = vsub.s32 %v2601, %v2603
    %v2605 = vrot.slane %v2597, %v2604
    %v2607 = vunpack.c.l.s4 1934713408
    %v2608 = vunpack.c.0.s8 %v2607
    %v2609 = vlaneseq
    %v2610 = vshrl.u32 %v2609, 7
    %v2611 = vsub.s32 %v2608, %v2610
    %v2612 = vrot.slane %v2598, %v2611
    %v2613 = vcombine.high %v2589, 0.0
    %v2614 = vcombine.high %v2596, 0.0
    %v2615 = vcombine.high %v2605, 0.0
    %v2616 = vcombine.high %v2612, 0.0
    %v2617 = vcombine.low %v2528, %v2536
    %v2618 = vcombine.high %v2528, %v2536
    %v2620 = vunpack.c.l.s4 1983009808
    %v2621 = vunpack.c.0.s8 %v2620
    %v2622 = vlaneseq
    %v2623 = vshrl.u32 %v2622, 7
    %v2624 = vsub.s32 %v2621, %v2623
    %v2625 = vrot.slane %v2617, %v2624
    %v2627 = vunpack.c.l.s4 1983009808
    %v2628 = vunpack.c.0.s8 %v2627
    %v2629 = vlaneseq
    %v2630 = vshrl.u32 %v2629, 7
    %v2631 = vsub.s32 %v2628, %v2630
    %v2632 = vrot.slane %v2618, %v2631
    %v2633 = vcombine.low %v2532, %v2540
    %v2634 = vcombine.high %v2532, %v2540
    %v2636 = vunpack.c.l.s4 1983009808
    %v2637 = vunpack.c.0.s8 %v2636
    %v2638 = vlaneseq
    %v2639 = vshrl.u32 %v2638, 7
    %v2640 = vsub.s32 %v2637, %v2639
    %v2641 = vrot.slane %v2633, %v2640
    %v2643 = vunpack.c.l.s4 1983009808
    %v2644 = vunpack.c.0.s8 %v2643
    %v2645 = vlaneseq
    %v2646 = vshrl.u32 %v2645, 7
    %v2647 = vsub.s32 %v2644, %v2646
    %v2648 = vrot.slane %v2634, %v2647
    %v2649 = vcombine.low %v2625, %v2641
    %v2650 = vcombine.high %v2625, %v2641
    %v2652 = vunpack.c.l.s4 1934713408
    %v2653 = vunpack.c.0.s8 %v2652
    %v2654 = vlaneseq
    %v2655 = vshrl.u32 %v2654, 7
    %v2656 = vsub.s32 %v2653, %v2655
    %v2657 = vrot.slane %v2649, %v2656
    %v2659 = vunpack.c.l.s4 1934713408
    %v2660 = vunpack.c.0.s8 %v2659
    %v2661 = vlaneseq
    %v2662 = vshrl.u32 %v2661, 7
    %v2663 = vsub.s32 %v2660, %v2662
    %v2664 = vrot.slane %v2650, %v2663
    %v2665 = vcombine.low %v2632, %v2648
    %v2666 = vcombine.high %v2632, %v2648
    %v2668 = vunpack.c.l.s4 1934713408
    %v2669 = vunpack.c.0.s8 %v2668
    %v2670 = vlaneseq
    %v2671 = vshrl.u32 %v2670, 7
    %v2672 = vsub.s32 %v2669, %v2671
    %v2673 = vrot.slane %v2665, %v2672
    %v2675 = vunpack.c.l.s4 1934713408
    %v2676 = vunpack.c.0.s8 %v2675
    %v2677 = vlaneseq
    %v2678 = vshrl.u32 %v2677, 7
    %v2679 = vsub.s32 %v2676, %v2678
    %v2680 = vrot.slane %v2666, %v2679
    %v2681 = vcombine.high %v2657, 0.0
    %v2682 = vcombine.high %v2664, 0.0
    %v2683 = vcombine.high %v2673, 0.0
    %v2684 = vcombine.high %v2680, 0.0
    %2686 = vrot.lane.b32.xlu0 %v2613, 51
    %v2687 = vpop.permute.xlu0 %2686
    %2690 = vrot.lane.b32.xlu0 %v2596, 102
    %v2691 = vpop.permute.xlu0 %2690
    %2694 = vrot.lane.b32.xlu0 %v2614, 25
    %v2695 = vpop.permute.xlu0 %2694
    %2698 = vrot.lane.b32.xlu0 %v2605, 76
    %v2699 = vpop.permute.xlu0 %2698
    %2702 = vrot.lane.b32.xlu0 %v2615, 127
    %v2703 = vpop.permute.xlu0 %2702
    %2706 = vrot.lane.b32.xlu0 %v2612, 50
    %v2707 = vpop.permute.xlu0 %2706
    %2710 = vrot.lane.b32.xlu0 %v2616, 101
    %v2711 = vpop.permute.xlu0 %2710
    %2714 = vrot.lane.b32.xlu0 %v2657, 24
    %v2715 = vpop.permute.xlu0 %2714
    %2718 = vrot.lane.b32.xlu0 %v2681, 75
    %v2719 = vpop.permute.xlu0 %2718
    %2722 = vrot.lane.b32.xlu0 %v2664, 126
    %v2723 = vpop.permute.xlu0 %2722
    %2726 = vrot.lane.b32.xlu0 %v2682, 49
    %v2727 = vpop.permute.xlu0 %2726
    %2730 = vrot.lane.b32.xlu0 %v2673, 100
    %v2731 = vpop.permute.xlu0 %2730
    %2734 = vrot.lane.b32.xlu0 %v2683, 23
    %v2735 = vpop.permute.xlu0 %2734
    %2738 = vrot.lane.b32.xlu0 %v2680, 74
    %v2739 = vpop.permute.xlu0 %2738
    %2742 = vrot.lane.b32.xlu0 %v2684, 125
    %v2743 = vpop.permute.xlu0 %2742
    %v2745 = vsel %vm372, %v2589, %v2687
    %v2746 = vsel %vm374, %v2745, %v2691
    %v2747 = vsel %vm376, %v2691, %v2695
    %v2748 = vsel %vm378, %v2747, %v2699
    %v2749 = vsel %vm380, %v2748, %v2703
    %v2750 = vsel %vm382, %v2703, %v2707
    %v2751 = vsel %vm384, %v2750, %v2711
    %v2752 = vsel %vm386, %v2711, %v2715
    %v2753 = vsel %vm388, %v2752, %v2719
    %v2754 = vsel %vm390, %v2753, %v2723
    %v2755 = vsel %vm392, %v2723, %v2727
    %v2756 = vsel %vm394, %v2755, %v2731
    %v2757 = vsel %vm396, %v2731, %v2735
    %v2758 = vsel %vm398, %v2757, %v2739
    %v2759 = vsel %vm400, %v2758, %v2743
    %2760 = vrot.lane.b32.xlu0 %v104, 117
    %v2761 = vpop.permute.xlu0 %2760
    %2762 = vrot.lane.b32.xlu0 %v172, 117
    %v2763 = vpop.permute.xlu0 %2762
    %2764 = vrot.lane.b32.xlu0 %v105, 117
    %v2765 = vpop.permute.xlu0 %2764
    %2766 = vrot.lane.b32.xlu0 %v173, 117
    %v2767 = vpop.permute.xlu0 %2766
    %2768 = vrot.lane.b32.xlu0 %v106, 117
    %v2769 = vpop.permute.xlu0 %2768
    %2770 = vrot.lane.b32.xlu0 %v174, 117
    %v2771 = vpop.permute.xlu0 %2770
    %2772 = vrot.lane.b32.xlu0 %v107, 117
    %v2773 = vpop.permute.xlu0 %2772
    %2774 = vrot.lane.b32.xlu0 %v175, 117
    %v2775 = vpop.permute.xlu0 %2774
    %v2784 = vcombine.low %v2761, %v2769
    %v2785 = vcombine.high %v2761, %v2769
    %v2787 = vunpack.c.l.s4 1983009808
    %v2788 = vunpack.c.0.s8 %v2787
    %v2789 = vlaneseq
    %v2790 = vshrl.u32 %v2789, 7
    %v2791 = vsub.s32 %v2788, %v2790
    %v2792 = vrot.slane %v2784, %v2791
    %v2794 = vunpack.c.l.s4 1983009808
    %v2795 = vunpack.c.0.s8 %v2794
    %v2796 = vlaneseq
    %v2797 = vshrl.u32 %v2796, 7
    %v2798 = vsub.s32 %v2795, %v2797
    %v2799 = vrot.slane %v2785, %v2798
    %v2800 = vcombine.low %v2765, %v2773
    %v2801 = vcombine.high %v2765, %v2773
    %v2803 = vunpack.c.l.s4 1983009808
    %v2804 = vunpack.c.0.s8 %v2803
    %v2805 = vlaneseq
    %v2806 = vshrl.u32 %v2805, 7
    %v2807 = vsub.s32 %v2804, %v2806
    %v2808 = vrot.slane %v2800, %v2807
    %v2810 = vunpack.c.l.s4 1983009808
    %v2811 = vunpack.c.0.s8 %v2810
    %v2812 = vlaneseq
    %v2813 = vshrl.u32 %v2812, 7
    %v2814 = vsub.s32 %v2811, %v2813
    %v2815 = vrot.slane %v2801, %v2814
    %v2816 = vcombine.low %v2792, %v2808
    %v2817 = vcombine.high %v2792, %v2808
    %v2819 = vunpack.c.l.s4 1934713408
    %v2820 = vunpack.c.0.s8 %v2819
    %v2821 = vlaneseq
    %v2822 = vshrl.u32 %v2821, 7
    %v2823 = vsub.s32 %v2820, %v2822
    %v2824 = vrot.slane %v2816, %v2823
    %v2826 = vunpack.c.l.s4 1934713408
    %v2827 = vunpack.c.0.s8 %v2826
    %v2828 = vlaneseq
    %v2829 = vshrl.u32 %v2828, 7
    %v2830 = vsub.s32 %v2827, %v2829
    %v2831 = vrot.slane %v2817, %v2830
    %v2832 = vcombine.low %v2799, %v2815
    %v2833 = vcombine.high %v2799, %v2815
    %v2835 = vunpack.c.l.s4 1934713408
    %v2836 = vunpack.c.0.s8 %v2835
    %v2837 = vlaneseq
    %v2838 = vshrl.u32 %v2837, 7
    %v2839 = vsub.s32 %v2836, %v2838
    %v2840 = vrot.slane %v2832, %v2839
    %v2842 = vunpack.c.l.s4 1934713408
    %v2843 = vunpack.c.0.s8 %v2842
    %v2844 = vlaneseq
    %v2845 = vshrl.u32 %v2844, 7
    %v2846 = vsub.s32 %v2843, %v2845
    %v2847 = vrot.slane %v2833, %v2846
    %v2848 = vcombine.high %v2824, 0.0
    %v2849 = vcombine.high %v2831, 0.0
    %v2850 = vcombine.high %v2840, 0.0
    %v2851 = vcombine.high %v2847, 0.0
    %v2852 = vcombine.low %v2763, %v2771
    %v2853 = vcombine.high %v2763, %v2771
    %v2855 = vunpack.c.l.s4 1983009808
    %v2856 = vunpack.c.0.s8 %v2855
    %v2857 = vlaneseq
    %v2858 = vshrl.u32 %v2857, 7
    %v2859 = vsub.s32 %v2856, %v2858
    %v2860 = vrot.slane %v2852, %v2859
    %v2862 = vunpack.c.l.s4 1983009808
    %v2863 = vunpack.c.0.s8 %v2862
    %v2864 = vlaneseq
    %v2865 = vshrl.u32 %v2864, 7
    %v2866 = vsub.s32 %v2863, %v2865
    %v2867 = vrot.slane %v2853, %v2866
    %v2868 = vcombine.low %v2767, %v2775
    %v2869 = vcombine.high %v2767, %v2775
    %v2871 = vunpack.c.l.s4 1983009808
    %v2872 = vunpack.c.0.s8 %v2871
    %v2873 = vlaneseq
    %v2874 = vshrl.u32 %v2873, 7
    %v2875 = vsub.s32 %v2872, %v2874
    %v2876 = vrot.slane %v2868, %v2875
    %v2878 = vunpack.c.l.s4 1983009808
    %v2879 = vunpack.c.0.s8 %v2878
    %v2880 = vlaneseq
    %v2881 = vshrl.u32 %v2880, 7
    %v2882 = vsub.s32 %v2879, %v2881
    %v2883 = vrot.slane %v2869, %v2882
    %v2884 = vcombine.low %v2860, %v2876
    %v2885 = vcombine.high %v2860, %v2876
    %v2887 = vunpack.c.l.s4 1934713408
    %v2888 = vunpack.c.0.s8 %v2887
    %v2889 = vlaneseq
    %v2890 = vshrl.u32 %v2889, 7
    %v2891 = vsub.s32 %v2888, %v2890
    %v2892 = vrot.slane %v2884, %v2891
    %v2894 = vunpack.c.l.s4 1934713408
    %v2895 = vunpack.c.0.s8 %v2894
    %v2896 = vlaneseq
    %v2897 = vshrl.u32 %v2896, 7
    %v2898 = vsub.s32 %v2895, %v2897
    %v2899 = vrot.slane %v2885, %v2898
    %v2900 = vcombine.low %v2867, %v2883
    %v2901 = vcombine.high %v2867, %v2883
    %v2903 = vunpack.c.l.s4 1934713408
    %v2904 = vunpack.c.0.s8 %v2903
    %v2905 = vlaneseq
    %v2906 = vshrl.u32 %v2905, 7
    %v2907 = vsub.s32 %v2904, %v2906
    %v2908 = vrot.slane %v2900, %v2907
    %v2910 = vunpack.c.l.s4 1934713408
    %v2911 = vunpack.c.0.s8 %v2910
    %v2912 = vlaneseq
    %v2913 = vshrl.u32 %v2912, 7
    %v2914 = vsub.s32 %v2911, %v2913
    %v2915 = vrot.slane %v2901, %v2914
    %v2916 = vcombine.high %v2892, 0.0
    %v2917 = vcombine.high %v2899, 0.0
    %v2918 = vcombine.high %v2908, 0.0
    %v2919 = vcombine.high %v2915, 0.0
    %2921 = vrot.lane.b32.xlu0 %v2848, 51
    %v2922 = vpop.permute.xlu0 %2921
    %2925 = vrot.lane.b32.xlu0 %v2831, 102
    %v2926 = vpop.permute.xlu0 %2925
    %2929 = vrot.lane.b32.xlu0 %v2849, 25
    %v2930 = vpop.permute.xlu0 %2929
    %2933 = vrot.lane.b32.xlu0 %v2840, 76
    %v2934 = vpop.permute.xlu0 %2933
    %2937 = vrot.lane.b32.xlu0 %v2850, 127
    %v2938 = vpop.permute.xlu0 %2937
    %2941 = vrot.lane.b32.xlu0 %v2847, 50
    %v2942 = vpop.permute.xlu0 %2941
    %2945 = vrot.lane.b32.xlu0 %v2851, 101
    %v2946 = vpop.permute.xlu0 %2945
    %2949 = vrot.lane.b32.xlu0 %v2892, 24
    %v2950 = vpop.permute.xlu0 %2949
    %2953 = vrot.lane.b32.xlu0 %v2916, 75
    %v2954 = vpop.permute.xlu0 %2953
    %2957 = vrot.lane.b32.xlu0 %v2899, 126
    %v2958 = vpop.permute.xlu0 %2957
    %2961 = vrot.lane.b32.xlu0 %v2917, 49
    %v2962 = vpop.permute.xlu0 %2961
    %2965 = vrot.lane.b32.xlu0 %v2908, 100
    %v2966 = vpop.permute.xlu0 %2965
    %2969 = vrot.lane.b32.xlu0 %v2918, 23
    %v2970 = vpop.permute.xlu0 %2969
    %2973 = vrot.lane.b32.xlu0 %v2915, 74
    %v2974 = vpop.permute.xlu0 %2973
    %2977 = vrot.lane.b32.xlu0 %v2919, 125
    %v2978 = vpop.permute.xlu0 %2977
    %v2980 = vsel %vm372, %v2824, %v2922
    %v2981 = vsel %vm374, %v2980, %v2926
    %v2982 = vsel %vm376, %v2926, %v2930
    %v2983 = vsel %vm378, %v2982, %v2934
    %v2984 = vsel %vm380, %v2983, %v2938
    %v2985 = vsel %vm382, %v2938, %v2942
    %v2986 = vsel %vm384, %v2985, %v2946
    %v2987 = vsel %vm386, %v2946, %v2950
    %v2988 = vsel %vm388, %v2987, %v2954
    %v2989 = vsel %vm390, %v2988, %v2958
    %v2990 = vsel %vm392, %v2958, %v2962
    %v2991 = vsel %vm394, %v2990, %v2966
    %v2992 = vsel %vm396, %v2966, %v2970
    %v2993 = vsel %vm398, %v2992, %v2974
    %v2994 = vsel %vm400, %v2993, %v2978
    %2995 = vrot.lane.b32.xlu0 %v104, 116
    %v2996 = vpop.permute.xlu0 %2995
    %2997 = vrot.lane.b32.xlu0 %v172, 116
    %v2998 = vpop.permute.xlu0 %2997
    %2999 = vrot.lane.b32.xlu0 %v105, 116
    %v3000 = vpop.permute.xlu0 %2999
    %3001 = vrot.lane.b32.xlu0 %v173, 116
    %v3002 = vpop.permute.xlu0 %3001
    %3003 = vrot.lane.b32.xlu0 %v106, 116
    %v3004 = vpop.permute.xlu0 %3003
    %3005 = vrot.lane.b32.xlu0 %v174, 116
    %v3006 = vpop.permute.xlu0 %3005
    %3007 = vrot.lane.b32.xlu0 %v107, 116
    %v3008 = vpop.permute.xlu0 %3007
    %3009 = vrot.lane.b32.xlu0 %v175, 116
    %v3010 = vpop.permute.xlu0 %3009
    %v3019 = vcombine.low %v2996, %v3004
    %v3020 = vcombine.high %v2996, %v3004
    %v3022 = vunpack.c.l.s4 1983009808
    %v3023 = vunpack.c.0.s8 %v3022
    %v3024 = vlaneseq
    %v3025 = vshrl.u32 %v3024, 7
    %v3026 = vsub.s32 %v3023, %v3025
    %v3027 = vrot.slane %v3019, %v3026
    %v3029 = vunpack.c.l.s4 1983009808
    %v3030 = vunpack.c.0.s8 %v3029
    %v3031 = vlaneseq
    %v3032 = vshrl.u32 %v3031, 7
    %v3033 = vsub.s32 %v3030, %v3032
    %v3034 = vrot.slane %v3020, %v3033
    %v3035 = vcombine.low %v3000, %v3008
    %v3036 = vcombine.high %v3000, %v3008
    %v3038 = vunpack.c.l.s4 1983009808
    %v3039 = vunpack.c.0.s8 %v3038
    %v3040 = vlaneseq
    %v3041 = vshrl.u32 %v3040, 7
    %v3042 = vsub.s32 %v3039, %v3041
    %v3043 = vrot.slane %v3035, %v3042
    %v3045 = vunpack.c.l.s4 1983009808
    %v3046 = vunpack.c.0.s8 %v3045
    %v3047 = vlaneseq
    %v3048 = vshrl.u32 %v3047, 7
    %v3049 = vsub.s32 %v3046, %v3048
    %v3050 = vrot.slane %v3036, %v3049
    %v3051 = vcombine.low %v3027, %v3043
    %v3052 = vcombine.high %v3027, %v3043
    %v3054 = vunpack.c.l.s4 1934713408
    %v3055 = vunpack.c.0.s8 %v3054
    %v3056 = vlaneseq
    %v3057 = vshrl.u32 %v3056, 7
    %v3058 = vsub.s32 %v3055, %v3057
    %v3059 = vrot.slane %v3051, %v3058
    %v3061 = vunpack.c.l.s4 1934713408
    %v3062 = vunpack.c.0.s8 %v3061
    %v3063 = vlaneseq
    %v3064 = vshrl.u32 %v3063, 7
    %v3065 = vsub.s32 %v3062, %v3064
    %v3066 = vrot.slane %v3052, %v3065
    %v3067 = vcombine.low %v3034, %v3050
    %v3068 = vcombine.high %v3034, %v3050
    %v3070 = vunpack.c.l.s4 1934713408
    %v3071 = vunpack.c.0.s8 %v3070
    %v3072 = vlaneseq
    %v3073 = vshrl.u32 %v3072, 7
    %v3074 = vsub.s32 %v3071, %v3073
    %v3075 = vrot.slane %v3067, %v3074
    %v3077 = vunpack.c.l.s4 1934713408
    %v3078 = vunpack.c.0.s8 %v3077
    %v3079 = vlaneseq
    %v3080 = vshrl.u32 %v3079, 7
    %v3081 = vsub.s32 %v3078, %v3080
    %v3082 = vrot.slane %v3068, %v3081
    %v3083 = vcombine.high %v3059, 0.0
    %v3084 = vcombine.high %v3066, 0.0
    %v3085 = vcombine.high %v3075, 0.0
    %v3086 = vcombine.high %v3082, 0.0
    %v3087 = vcombine.low %v2998, %v3006
    %v3088 = vcombine.high %v2998, %v3006
    %v3090 = vunpack.c.l.s4 1983009808
    %v3091 = vunpack.c.0.s8 %v3090
    %v3092 = vlaneseq
    %v3093 = vshrl.u32 %v3092, 7
    %v3094 = vsub.s32 %v3091, %v3093
    %v3095 = vrot.slane %v3087, %v3094
    %v3097 = vunpack.c.l.s4 1983009808
    %v3098 = vunpack.c.0.s8 %v3097
    %v3099 = vlaneseq
    %v3100 = vshrl.u32 %v3099, 7
    %v3101 = vsub.s32 %v3098, %v3100
    %v3102 = vrot.slane %v3088, %v3101
    %v3103 = vcombine.low %v3002, %v3010
    %v3104 = vcombine.high %v3002, %v3010
    %v3106 = vunpack.c.l.s4 1983009808
    %v3107 = vunpack.c.0.s8 %v3106
    %v3108 = vlaneseq
    %v3109 = vshrl.u32 %v3108, 7
    %v3110 = vsub.s32 %v3107, %v3109
    %v3111 = vrot.slane %v3103, %v3110
    %v3113 = vunpack.c.l.s4 1983009808
    %v3114 = vunpack.c.0.s8 %v3113
    %v3115 = vlaneseq
    %v3116 = vshrl.u32 %v3115, 7
    %v3117 = vsub.s32 %v3114, %v3116
    %v3118 = vrot.slane %v3104, %v3117
    %v3119 = vcombine.low %v3095, %v3111
    %v3120 = vcombine.high %v3095, %v3111
    %v3122 = vunpack.c.l.s4 1934713408
    %v3123 = vunpack.c.0.s8 %v3122
    %v3124 = vlaneseq
    %v3125 = vshrl.u32 %v3124, 7
    %v3126 = vsub.s32 %v3123, %v3125
    %v3127 = vrot.slane %v3119, %v3126
    %v3129 = vunpack.c.l.s4 1934713408
    %v3130 = vunpack.c.0.s8 %v3129
    %v3131 = vlaneseq
    %v3132 = vshrl.u32 %v3131, 7
    %v3133 = vsub.s32 %v3130, %v3132
    %v3134 = vrot.slane %v3120, %v3133
    %v3135 = vcombine.low %v3102, %v3118
    %v3136 = vcombine.high %v3102, %v3118
    %v3138 = vunpack.c.l.s4 1934713408
    %v3139 = vunpack.c.0.s8 %v3138
    %v3140 = vlaneseq
    %v3141 = vshrl.u32 %v3140, 7
    %v3142 = vsub.s32 %v3139, %v3141
    %v3143 = vrot.slane %v3135, %v3142
    %v3145 = vunpack.c.l.s4 1934713408
    %v3146 = vunpack.c.0.s8 %v3145
    %v3147 = vlaneseq
    %v3148 = vshrl.u32 %v3147, 7
    %v3149 = vsub.s32 %v3146, %v3148
    %v3150 = vrot.slane %v3136, %v3149
    %v3151 = vcombine.high %v3127, 0.0
    %v3152 = vcombine.high %v3134, 0.0
    %v3153 = vcombine.high %v3143, 0.0
    %v3154 = vcombine.high %v3150, 0.0
    %3156 = vrot.lane.b32.xlu0 %v3083, 51
    %v3157 = vpop.permute.xlu0 %3156
    %3160 = vrot.lane.b32.xlu0 %v3066, 102
    %v3161 = vpop.permute.xlu0 %3160
    %3164 = vrot.lane.b32.xlu0 %v3084, 25
    %v3165 = vpop.permute.xlu0 %3164
    %3168 = vrot.lane.b32.xlu0 %v3075, 76
    %v3169 = vpop.permute.xlu0 %3168
    %3172 = vrot.lane.b32.xlu0 %v3085, 127
    %v3173 = vpop.permute.xlu0 %3172
    %3176 = vrot.lane.b32.xlu0 %v3082, 50
    %v3177 = vpop.permute.xlu0 %3176
    %3180 = vrot.lane.b32.xlu0 %v3086, 101
    %v3181 = vpop.permute.xlu0 %3180
    %3184 = vrot.lane.b32.xlu0 %v3127, 24
    %v3185 = vpop.permute.xlu0 %3184
    %3188 = vrot.lane.b32.xlu0 %v3151, 75
    %v3189 = vpop.permute.xlu0 %3188
    %3192 = vrot.lane.b32.xlu0 %v3134, 126
    %v3193 = vpop.permute.xlu0 %3192
    %3196 = vrot.lane.b32.xlu0 %v3152, 49
    %v3197 = vpop.permute.xlu0 %3196
    %3200 = vrot.lane.b32.xlu0 %v3143, 100
    %v3201 = vpop.permute.xlu0 %3200
    %3204 = vrot.lane.b32.xlu0 %v3153, 23
    %v3205 = vpop.permute.xlu0 %3204
    %3208 = vrot.lane.b32.xlu0 %v3150, 74
    %v3209 = vpop.permute.xlu0 %3208
    %3212 = vrot.lane.b32.xlu0 %v3154, 125
    %v3213 = vpop.permute.xlu0 %3212
    %v3215 = vsel %vm372, %v3059, %v3157
    %v3216 = vsel %vm374, %v3215, %v3161
    %v3217 = vsel %vm376, %v3161, %v3165
    %v3218 = vsel %vm378, %v3217, %v3169
    %v3219 = vsel %vm380, %v3218, %v3173
    %v3220 = vsel %vm382, %v3173, %v3177
    %v3221 = vsel %vm384, %v3220, %v3181
    %v3222 = vsel %vm386, %v3181, %v3185
    %v3223 = vsel %vm388, %v3222, %v3189
    %v3224 = vsel %vm390, %v3223, %v3193
    %v3225 = vsel %vm392, %v3193, %v3197
    %v3226 = vsel %vm394, %v3225, %v3201
    %v3227 = vsel %vm396, %v3201, %v3205
    %v3228 = vsel %vm398, %v3227, %v3209
    %v3229 = vsel %vm400, %v3228, %v3213
    %3230 = vrot.lane.b32.xlu0 %v104, 115
    %v3231 = vpop.permute.xlu0 %3230
    %3232 = vrot.lane.b32.xlu0 %v172, 115
    %v3233 = vpop.permute.xlu0 %3232
    %3234 = vrot.lane.b32.xlu0 %v105, 115
    %v3235 = vpop.permute.xlu0 %3234
    %3236 = vrot.lane.b32.xlu0 %v173, 115
    %v3237 = vpop.permute.xlu0 %3236
    %3238 = vrot.lane.b32.xlu0 %v106, 115
    %v3239 = vpop.permute.xlu0 %3238
    %3240 = vrot.lane.b32.xlu0 %v174, 115
    %v3241 = vpop.permute.xlu0 %3240
    %3242 = vrot.lane.b32.xlu0 %v107, 115
    %v3243 = vpop.permute.xlu0 %3242
    %3244 = vrot.lane.b32.xlu0 %v175, 115
    %v3245 = vpop.permute.xlu0 %3244
    %v3254 = vcombine.low %v3231, %v3239
    %v3255 = vcombine.high %v3231, %v3239
    %v3257 = vunpack.c.l.s4 1983009808
    %v3258 = vunpack.c.0.s8 %v3257
    %v3259 = vlaneseq
    %v3260 = vshrl.u32 %v3259, 7
    %v3261 = vsub.s32 %v3258, %v3260
    %v3262 = vrot.slane %v3254, %v3261
    %v3264 = vunpack.c.l.s4 1983009808
    %v3265 = vunpack.c.0.s8 %v3264
    %v3266 = vlaneseq
    %v3267 = vshrl.u32 %v3266, 7
    %v3268 = vsub.s32 %v3265, %v3267
    %v3269 = vrot.slane %v3255, %v3268
    %v3270 = vcombine.low %v3235, %v3243
    %v3271 = vcombine.high %v3235, %v3243
    %v3273 = vunpack.c.l.s4 1983009808
    %v3274 = vunpack.c.0.s8 %v3273
    %v3275 = vlaneseq
    %v3276 = vshrl.u32 %v3275, 7
    %v3277 = vsub.s32 %v3274, %v3276
    %v3278 = vrot.slane %v3270, %v3277
    %v3280 = vunpack.c.l.s4 1983009808
    %v3281 = vunpack.c.0.s8 %v3280
    %v3282 = vlaneseq
    %v3283 = vshrl.u32 %v3282, 7
    %v3284 = vsub.s32 %v3281, %v3283
    %v3285 = vrot.slane %v3271, %v3284
    %v3286 = vcombine.low %v3262, %v3278
    %v3287 = vcombine.high %v3262, %v3278
    %v3289 = vunpack.c.l.s4 1934713408
    %v3290 = vunpack.c.0.s8 %v3289
    %v3291 = vlaneseq
    %v3292 = vshrl.u32 %v3291, 7
    %v3293 = vsub.s32 %v3290, %v3292
    %v3294 = vrot.slane %v3286, %v3293
    %v3296 = vunpack.c.l.s4 1934713408
    %v3297 = vunpack.c.0.s8 %v3296
    %v3298 = vlaneseq
    %v3299 = vshrl.u32 %v3298, 7
    %v3300 = vsub.s32 %v3297, %v3299
    %v3301 = vrot.slane %v3287, %v3300
    %v3302 = vcombine.low %v3269, %v3285
    %v3303 = vcombine.high %v3269, %v3285
    %v3305 = vunpack.c.l.s4 1934713408
    %v3306 = vunpack.c.0.s8 %v3305
    %v3307 = vlaneseq
    %v3308 = vshrl.u32 %v3307, 7
    %v3309 = vsub.s32 %v3306, %v3308
    %v3310 = vrot.slane %v3302, %v3309
    %v3312 = vunpack.c.l.s4 1934713408
    %v3313 = vunpack.c.0.s8 %v3312
    %v3314 = vlaneseq
    %v3315 = vshrl.u32 %v3314, 7
    %v3316 = vsub.s32 %v3313, %v3315
    %v3317 = vrot.slane %v3303, %v3316
    %v3318 = vcombine.high %v3294, 0.0
    %v3319 = vcombine.high %v3301, 0.0
    %v3320 = vcombine.high %v3310, 0.0
    %v3321 = vcombine.high %v3317, 0.0
    %v3322 = vcombine.low %v3233, %v3241
    %v3323 = vcombine.high %v3233, %v3241
    %v3325 = vunpack.c.l.s4 1983009808
    %v3326 = vunpack.c.0.s8 %v3325
    %v3327 = vlaneseq
    %v3328 = vshrl.u32 %v3327, 7
    %v3329 = vsub.s32 %v3326, %v3328
    %v3330 = vrot.slane %v3322, %v3329
    %v3332 = vunpack.c.l.s4 1983009808
    %v3333 = vunpack.c.0.s8 %v3332
    %v3334 = vlaneseq
    %v3335 = vshrl.u32 %v3334, 7
    %v3336 = vsub.s32 %v3333, %v3335
    %v3337 = vrot.slane %v3323, %v3336
    %v3338 = vcombine.low %v3237, %v3245
    %v3339 = vcombine.high %v3237, %v3245
    %v3341 = vunpack.c.l.s4 1983009808
    %v3342 = vunpack.c.0.s8 %v3341
    %v3343 = vlaneseq
    %v3344 = vshrl.u32 %v3343, 7
    %v3345 = vsub.s32 %v3342, %v3344
    %v3346 = vrot.slane %v3338, %v3345
    %v3348 = vunpack.c.l.s4 1983009808
    %v3349 = vunpack.c.0.s8 %v3348
    %v3350 = vlaneseq
    %v3351 = vshrl.u32 %v3350, 7
    %v3352 = vsub.s32 %v3349, %v3351
    %v3353 = vrot.slane %v3339, %v3352
    %v3354 = vcombine.low %v3330, %v3346
    %v3355 = vcombine.high %v3330, %v3346
    %v3357 = vunpack.c.l.s4 1934713408
    %v3358 = vunpack.c.0.s8 %v3357
    %v3359 = vlaneseq
    %v3360 = vshrl.u32 %v3359, 7
    %v3361 = vsub.s32 %v3358, %v3360
    %v3362 = vrot.slane %v3354, %v3361
    %v3364 = vunpack.c.l.s4 1934713408
    %v3365 = vunpack.c.0.s8 %v3364
    %v3366 = vlaneseq
    %v3367 = vshrl.u32 %v3366, 7
    %v3368 = vsub.s32 %v3365, %v3367
    %v3369 = vrot.slane %v3355, %v3368
    %v3370 = vcombine.low %v3337, %v3353
    %v3371 = vcombine.high %v3337, %v3353
    %v3373 = vunpack.c.l.s4 1934713408
    %v3374 = vunpack.c.0.s8 %v3373
    %v3375 = vlaneseq
    %v3376 = vshrl.u32 %v3375, 7
    %v3377 = vsub.s32 %v3374, %v3376
    %v3378 = vrot.slane %v3370, %v3377
    %v3380 = vunpack.c.l.s4 1934713408
    %v3381 = vunpack.c.0.s8 %v3380
    %v3382 = vlaneseq
    %v3383 = vshrl.u32 %v3382, 7
    %v3384 = vsub.s32 %v3381, %v3383
    %v3385 = vrot.slane %v3371, %v3384
    %v3386 = vcombine.high %v3362, 0.0
    %v3387 = vcombine.high %v3369, 0.0
    %v3388 = vcombine.high %v3378, 0.0
    %v3389 = vcombine.high %v3385, 0.0
    %3391 = vrot.lane.b32.xlu0 %v3318, 51
    %v3392 = vpop.permute.xlu0 %3391
    %3395 = vrot.lane.b32.xlu0 %v3301, 102
    %v3396 = vpop.permute.xlu0 %3395
    %3399 = vrot.lane.b32.xlu0 %v3319, 25
    %v3400 = vpop.permute.xlu0 %3399
    %3403 = vrot.lane.b32.xlu0 %v3310, 76
    %v3404 = vpop.permute.xlu0 %3403
    %3407 = vrot.lane.b32.xlu0 %v3320, 127
    %v3408 = vpop.permute.xlu0 %3407
    %3411 = vrot.lane.b32.xlu0 %v3317, 50
    %v3412 = vpop.permute.xlu0 %3411
    %3415 = vrot.lane.b32.xlu0 %v3321, 101
    %v3416 = vpop.permute.xlu0 %3415
    %3419 = vrot.lane.b32.xlu0 %v3362, 24
    %v3420 = vpop.permute.xlu0 %3419
    %3423 = vrot.lane.b32.xlu0 %v3386, 75
    %v3424 = vpop.permute.xlu0 %3423
    %3427 = vrot.lane.b32.xlu0 %v3369, 126
    %v3428 = vpop.permute.xlu0 %3427
    %3431 = vrot.lane.b32.xlu0 %v3387, 49
    %v3432 = vpop.permute.xlu0 %3431
    %3435 = vrot.lane.b32.xlu0 %v3378, 100
    %v3436 = vpop.permute.xlu0 %3435
    %3439 = vrot.lane.b32.xlu0 %v3388, 23
    %v3440 = vpop.permute.xlu0 %3439
    %3443 = vrot.lane.b32.xlu0 %v3385, 74
    %v3444 = vpop.permute.xlu0 %3443
    %3447 = vrot.lane.b32.xlu0 %v3389, 125
    %v3448 = vpop.permute.xlu0 %3447
    %v3450 = vsel %vm372, %v3294, %v3392
    %v3451 = vsel %vm374, %v3450, %v3396
    %v3452 = vsel %vm376, %v3396, %v3400
    %v3453 = vsel %vm378, %v3452, %v3404
    %v3454 = vsel %vm380, %v3453, %v3408
    %v3455 = vsel %vm382, %v3408, %v3412
    %v3456 = vsel %vm384, %v3455, %v3416
    %v3457 = vsel %vm386, %v3416, %v3420
    %v3458 = vsel %vm388, %v3457, %v3424
    %v3459 = vsel %vm390, %v3458, %v3428
    %v3460 = vsel %vm392, %v3428, %v3432
    %v3461 = vsel %vm394, %v3460, %v3436
    %v3462 = vsel %vm396, %v3436, %v3440
    %v3463 = vsel %vm398, %v3462, %v3444
    %v3464 = vsel %vm400, %v3463, %v3448
    %v3471 = vrot.slane %v631, 4
    %v3472 = vrot.slane %v634, 4
    %v3473 = vrot.slane %v636, 4
    %v3474 = vrot.slane %v639, 4
    %v3475 = vrot.slane %v641, 4
    %v3476 = vrot.slane %v644, 4
    %v3477 = vrot.slane %v628, 4
    %v3491 = vrot.slane %v1101, 4
    %v3492 = vrot.slane %v1104, 4
    %v3493 = vrot.slane %v1106, 4
    %v3494 = vrot.slane %v1109, 4
    %v3495 = vrot.slane %v1111, 4
    %v3496 = vrot.slane %v1114, 4
    %v3497 = vrot.slane %v1098, 4
    %v3511 = vrot.slane %v1571, 4
    %v3512 = vrot.slane %v1574, 4
    %v3513 = vrot.slane %v1576, 4
    %v3514 = vrot.slane %v1579, 4
    %v3515 = vrot.slane %v1581, 4
    %v3516 = vrot.slane %v1584, 4
    %v3517 = vrot.slane %v1568, 4
    %v3531 = vrot.slane %v2041, 4
    %v3532 = vrot.slane %v2044, 4
    %v3533 = vrot.slane %v2046, 4
    %v3534 = vrot.slane %v2049, 4
    %v3535 = vrot.slane %v2051, 4
    %v3536 = vrot.slane %v2054, 4
    %v3537 = vrot.slane %v2038, 4
    %v3551 = vrot.slane %v2511, 4
    %v3552 = vrot.slane %v2514, 4
    %v3553 = vrot.slane %v2516, 4
    %v3554 = vrot.slane %v2519, 4
    %v3555 = vrot.slane %v2521, 4
    %v3556 = vrot.slane %v2524, 4
    %v3557 = vrot.slane %v2508, 4
    %v3571 = vrot.slane %v2981, 4
    %v3572 = vrot.slane %v2984, 4
    %v3573 = vrot.slane %v2986, 4
    %v3574 = vrot.slane %v2989, 4
    %v3575 = vrot.slane %v2991, 4
    %v3576 = vrot.slane %v2994, 4
    %v3577 = vrot.slane %v2978, 4
    %v3591 = vrot.slane %v3451, 4
    %v3592 = vrot.slane %v3454, 4
    %v3593 = vrot.slane %v3456, 4
    %v3594 = vrot.slane %v3459, 4
    %v3595 = vrot.slane %v3461, 4
    %v3596 = vrot.slane %v3464, 4
    %v3597 = vrot.slane %v3448, 4
    %vm3605 = vcmask 1043456
    %v3606 = vsel %vm3605, %v375, %v3471
    %v3607 = vsel %vm3605, %v381, %v3472
    %v3608 = vsel %vm3605, %v385, %v3473
    %v3609 = vsel %vm3605, %v391, %v3474
    %v3610 = vsel %vm3605, %v395, %v3475
    %v3611 = vsel %vm3605, %v401, %v3476
    %v3612 = vsel %vm3605, %v370, %v3477
    %v3613 = vsel %vm3605, %v866, %v3491
    %v3614 = vsel %vm3605, %v869, %v3492
    %v3615 = vsel %vm3605, %v871, %v3493
    %v3616 = vsel %vm3605, %v874, %v3494
    %v3617 = vsel %vm3605, %v876, %v3495
    %v3618 = vsel %vm3605, %v879, %v3496
    %v3619 = vsel %vm3605, %v863, %v3497
    %v3620 = vsel %vm3605, %v1336, %v3511
    %v3621 = vsel %vm3605, %v1339, %v3512
    %v3622 = vsel %vm3605, %v1341, %v3513
    %v3623 = vsel %vm3605, %v1344, %v3514
    %v3624 = vsel %vm3605, %v1346, %v3515
    %v3625 = vsel %vm3605, %v1349, %v3516
    %v3626 = vsel %vm3605, %v1333, %v3517
    %v3627 = vsel %vm3605, %v1806, %v3531
    %v3628 = vsel %vm3605, %v1809, %v3532
    %v3629 = vsel %vm3605, %v1811, %v3533
    %v3630 = vsel %vm3605, %v1814, %v3534
    %v3631 = vsel %vm3605, %v1816, %v3535
    %v3632 = vsel %vm3605, %v1819, %v3536
    %v3633 = vsel %vm3605, %v1803, %v3537
    %v3634 = vsel %vm3605, %v2276, %v3551
    %v3635 = vsel %vm3605, %v2279, %v3552
    %v3636 = vsel %vm3605, %v2281, %v3553
    %v3637 = vsel %vm3605, %v2284, %v3554
    %v3638 = vsel %vm3605, %v2286, %v3555
    %v3639 = vsel %vm3605, %v2289, %v3556
    %v3640 = vsel %vm3605, %v2273, %v3557
    %v3641 = vsel %vm3605, %v2746, %v3571
    %v3642 = vsel %vm3605, %v2749, %v3572
    %v3643 = vsel %vm3605, %v2751, %v3573
    %v3644 = vsel %vm3605, %v2754, %v3574
    %v3645 = vsel %vm3605, %v2756, %v3575
    %v3646 = vsel %vm3605, %v2759, %v3576
    %v3647 = vsel %vm3605, %v2743, %v3577
    %v3648 = vsel %vm3605, %v3216, %v3591
    %v3649 = vsel %vm3605, %v3219, %v3592
    %v3650 = vsel %vm3605, %v3221, %v3593
    %v3651 = vsel %vm3605, %v3224, %v3594
    %v3652 = vsel %vm3605, %v3226, %v3595
    %v3653 = vsel %vm3605, %v3229, %v3596
    %v3654 = vsel %vm3605, %v3213, %v3597
    %v3655 = vld [vmem:[%s1] sm:$0xff]
    %v3656 = vld [vmem:[%s2] sm:$0xff]
    %3658 = vset.pattern.permute.xlu0 0
    %3659 = vperm.xlu0 %3658, %v3656
    %v3660 = vpop.permute.xlu0 %3659
    %vm3662 = vcmask 457728
    %v3664 = vsel %vm3662, %v3655, 0
    %3666 = vmatprep.subr.mxu0 %v3607
    %3667 = vmatpush1.msra.mxu0 %v3606
    %3668 = vmatprep.subr.mxu0 %v3614
    %3669 = vmatpush1.msra.mxu0 %v3613
    %3670 = vmatprep.subr.mxu0 %v3621
    %3671 = vmatpush1.msra.mxu0 %v3620
    %3672 = vmatprep.subr.mxu0 %v3628
    %3673 = vmatpush1.msra.mxu0 %v3627
    %3674 = vmatprep.subr.mxu0 %v3635
    %3675 = vmatpush1.msra.mxu0 %v3634
    %3676 = vmatprep.subr.mxu0 %v3642
    %3677 = vmatpush1.msra.mxu0 %v3641
    %3678 = vmatprep.subr.mxu0 %v3649
    %3679 = vmatpush1.msra.mxu0 %v3648
    %3680 = vmatprep.subr.mxu0 0.0
    %3681 = vmatpush1.msra.mxu0 0.0
    %3682 = vmatprep.subr.mxu0 0.0
    %3683 = vmatpush1.msra.mxu0 0.0
    %3684 = vmatprep.subr.mxu0 0.0
    %3685 = vmatpush1.msra.mxu0 0.0
    %3686 = vmatprep.subr.mxu0 0.0
    %3687 = vmatpush1.msra.mxu0 0.0
    %3688 = vmatprep.subr.mxu0 0.0
    %3689 = vmatpush1.msra.mxu0 0.0
    %3690 = vmatprep.subr.mxu0 0.0
    %3691 = vmatpush1.msra.mxu0 0.0
    %3692 = vmatprep.subr.mxu0 0.0
    %3693 = vmatpush1.msra.mxu0 0.0
    %3694 = vmatprep.subr.mxu0 0.0
    %3695 = vmatpush1.msra.mxu0 0.0
    %3696 = vmatprep.subr.mxu0 0.0
    %3697 = vmatpush1.msra.mxu0 0.0
    %3698 = vmatprep.subr.mxu0 0.0
    %3699 = vmatpush1.msra.mxu0 0.0
    %3700 = vmatprep.subr.mxu0 0.0
    %3701 = vmatpush1.msra.mxu0 0.0
    %3702 = vmatprep.subr.mxu0 0.0
    %3703 = vmatpush1.msra.mxu0 0.0
    %3704 = vmatprep.subr.mxu0 0.0
    %3705 = vmatpush1.msra.mxu0 0.0
    %3706 = vmatprep.subr.mxu0 0.0
    %3707 = vmatpush1.msra.mxu0 0.0
    %3708 = vmatprep.subr.mxu0 0.0
    %3709 = vmatpush1.msra.mxu0 0.0
    %3710 = vmatprep.subr.mxu0 0.0
    %3711 = vmatpush1.msra.mxu0 0.0
    %3712 = vmatprep.subr.mxu0 0.0
    %3713 = vmatpush1.msra.mxu0 0.0
    %3714 = vmatprep.subr.mxu0 0.0
    %3715 = vmatpush1.msra.mxu0 0.0
    %3716 = vmatprep.subr.mxu0 0.0
    %3717 = vmatpush1.msra.mxu0 0.0
    %3718 = vmatprep.subr.mxu0 0.0
    %3719 = vmatpush1.msra.mxu0 0.0
    %3720 = vmatprep.subr.mxu0 0.0
    %3721 = vmatpush1.msra.mxu0 0.0
    %3722 = vmatprep.subr.mxu0 0.0
    %3723 = vmatpush1.msra.mxu0 0.0
    %3724 = vmatprep.subr.mxu0 0.0
    %3725 = vmatpush1.msra.mxu0 0.0
    %3726 = vmatprep.subr.mxu0 0.0
    %3727 = vmatpush1.msra.mxu0 0.0
    %3728 = vmatprep.subr.mxu0 0.0
    %3729 = vmatpush1.msra.mxu0 0.0
    %3730 = vmatprep.mubr.f32.mxu0 0.0
    %3731 = vmatmul.mubr.f32.gmra.mrb[0].mxu0 %v3664
    %v3732 = vpop.f32.mrb[0].mxu0
    %v3733 = vadd.f32 %v3660, %v3732
    %v3734 = vpop.f32.mrb[0].mxu0
    %v3735 = vadd.f32 %v3660, %v3734
    %3736 = vdwg.mxu0
    %3737 = vmatprep.subr.mxu0 %v3609
    %3738 = vmatpush1.msra.mxu0 %v3608
    %3739 = vmatprep.subr.mxu0 %v3616
    %3740 = vmatpush1.msra.mxu0 %v3615
    %3741 = vmatprep.subr.mxu0 %v3623
    %3742 = vmatpush1.msra.mxu0 %v3622
    %3743 = vmatprep.subr.mxu0 %v3630
    %3744 = vmatpush1.msra.mxu0 %v3629
    %3745 = vmatprep.subr.mxu0 %v3637
    %3746 = vmatpush1.msra.mxu0 %v3636
    %3747 = vmatprep.subr.mxu0 %v3644
    %3748 = vmatpush1.msra.mxu0 %v3643
    %3749 = vmatprep.subr.mxu0 %v3651
    %3750 = vmatpush1.msra.mxu0 %v3650
    %3751 = vmatprep.subr.mxu0 0.0
    %3752 = vmatpush1.msra.mxu0 0.0
    %3753 = vmatprep.subr.mxu0 0.0
    %3754 = vmatpush1.msra.mxu0 0.0
    %3755 = vmatprep.subr.mxu0 0.0
    %3756 = vmatpush1.msra.mxu0 0.0
    %3757 = vmatprep.subr.mxu0 0.0
    %3758 = vmatpush1.msra.mxu0 0.0
    %3759 = vmatprep.subr.mxu0 0.0
    %3760 = vmatpush1.msra.mxu0 0.0
    %3761 = vmatprep.subr.mxu0 0.0
    %3762 = vmatpush1.msra.mxu0 0.0
    %3763 = vmatprep.subr.mxu0 0.0
    %3764 = vmatpush1.msra.mxu0 0.0
    %3765 = vmatprep.subr.mxu0 0.0
    %3766 = vmatpush1.msra.mxu0 0.0
    %3767 = vmatprep.subr.mxu0 0.0
    %3768 = vmatpush1.msra.mxu0 0.0
    %3769 = vmatprep.subr.mxu0 0.0
    %3770 = vmatpush1.msra.mxu0 0.0
    %3771 = vmatprep.subr.mxu0 0.0
    %3772 = vmatpush1.msra.mxu0 0.0
    %3773 = vmatprep.subr.mxu0 0.0
    %3774 = vmatpush1.msra.mxu0 0.0
    %3775 = vmatprep.subr.mxu0 0.0
    %3776 = vmatpush1.msra.mxu0 0.0
    %3777 = vmatprep.subr.mxu0 0.0
    %3778 = vmatpush1.msra.mxu0 0.0
    %3779 = vmatprep.subr.mxu0 0.0
    %3780 = vmatpush1.msra.mxu0 0.0
    %3781 = vmatprep.subr.mxu0 0.0
    %3782 = vmatpush1.msra.mxu0 0.0
    %3783 = vmatprep.subr.mxu0 0.0
    %3784 = vmatpush1.msra.mxu0 0.0
    %3785 = vmatprep.subr.mxu0 0.0
    %3786 = vmatpush1.msra.mxu0 0.0
    %3787 = vmatprep.subr.mxu0 0.0
    %3788 = vmatpush1.msra.mxu0 0.0
    %3789 = vmatprep.subr.mxu0 0.0
    %3790 = vmatpush1.msra.mxu0 0.0
    %3791 = vmatprep.subr.mxu0 0.0
    %3792 = vmatpush1.msra.mxu0 0.0
    %3793 = vmatprep.subr.mxu0 0.0
    %3794 = vmatpush1.msra.mxu0 0.0
    %3795 = vmatprep.subr.mxu0 0.0
    %3796 = vmatpush1.msra.mxu0 0.0
    %3797 = vmatprep.subr.mxu0 0.0
    %3798 = vmatpush1.msra.mxu0 0.0
    %3799 = vmatprep.subr.mxu0 0.0
    %3800 = vmatpush1.msra.mxu0 0.0
    %3801 = vmatprep.mubr.f32.mxu0 0.0
    %3802 = vmatmul.mubr.f32.gmra.mrb[0].mxu0 %v3664
    %v3803 = vpop.f32.mrb[0].mxu0
    %v3804 = vadd.f32 %v3660, %v3803
    %v3805 = vpop.f32.mrb[0].mxu0
    %v3806 = vadd.f32 %v3660, %v3805
    %3807 = vdwg.mxu0
    %3808 = vmatprep.subr.mxu0 %v3611
    %3809 = vmatpush1.msra.mxu0 %v3610
    %3810 = vmatprep.subr.mxu0 %v3618
    %3811 = vmatpush1.msra.mxu0 %v3617
    %3812 = vmatprep.subr.mxu0 %v3625
    %3813 = vmatpush1.msra.mxu0 %v3624
    %3814 = vmatprep.subr.mxu0 %v3632
    %3815 = vmatpush1.msra.mxu0 %v3631
    %3816 = vmatprep.subr.mxu0 %v3639
    %3817 = vmatpush1.msra.mxu0 %v3638
    %3818 = vmatprep.subr.mxu0 %v3646
    %3819 = vmatpush1.msra.mxu0 %v3645
    %3820 = vmatprep.subr.mxu0 %v3653
    %3821 = vmatpush1.msra.mxu0 %v3652
    %3822 = vmatprep.subr.mxu0 0.0
    %3823 = vmatpush1.msra.mxu0 0.0
    %3824 = vmatprep.subr.mxu0 0.0
    %3825 = vmatpush1.msra.mxu0 0.0
    %3826 = vmatprep.subr.mxu0 0.0
    %3827 = vmatpush1.msra.mxu0 0.0
    %3828 = vmatprep.subr.mxu0 0.0
    %3829 = vmatpush1.msra.mxu0 0.0
    %3830 = vmatprep.subr.mxu0 0.0
    %3831 = vmatpush1.msra.mxu0 0.0
    %3832 = vmatprep.subr.mxu0 0.0
    %3833 = vmatpush1.msra.mxu0 0.0
    %3834 = vmatprep.subr.mxu0 0.0
    %3835 = vmatpush1.msra.mxu0 0.0
    %3836 = vmatprep.subr.mxu0 0.0
    %3837 = vmatpush1.msra.mxu0 0.0
    %3838 = vmatprep.subr.mxu0 0.0
    %3839 = vmatpush1.msra.mxu0 0.0
    %3840 = vmatprep.subr.mxu0 0.0
    %3841 = vmatpush1.msra.mxu0 0.0
    %3842 = vmatprep.subr.mxu0 0.0
    %3843 = vmatpush1.msra.mxu0 0.0
    %3844 = vmatprep.subr.mxu0 0.0
    %3845 = vmatpush1.msra.mxu0 0.0
    %3846 = vmatprep.subr.mxu0 0.0
    %3847 = vmatpush1.msra.mxu0 0.0
    %3848 = vmatprep.subr.mxu0 0.0
    %3849 = vmatpush1.msra.mxu0 0.0
    %3850 = vmatprep.subr.mxu0 0.0
    %3851 = vmatpush1.msra.mxu0 0.0
    %3852 = vmatprep.subr.mxu0 0.0
    %3853 = vmatpush1.msra.mxu0 0.0
    %3854 = vmatprep.subr.mxu0 0.0
    %3855 = vmatpush1.msra.mxu0 0.0
    %3856 = vmatprep.subr.mxu0 0.0
    %3857 = vmatpush1.msra.mxu0 0.0
    %3858 = vmatprep.subr.mxu0 0.0
    %3859 = vmatpush1.msra.mxu0 0.0
    %3860 = vmatprep.subr.mxu0 0.0
    %3861 = vmatpush1.msra.mxu0 0.0
    %3862 = vmatprep.subr.mxu0 0.0
    %3863 = vmatpush1.msra.mxu0 0.0
    %3864 = vmatprep.subr.mxu0 0.0
    %3865 = vmatpush1.msra.mxu0 0.0
    %3866 = vmatprep.subr.mxu0 0.0
    %3867 = vmatpush1.msra.mxu0 0.0
    %3868 = vmatprep.subr.mxu0 0.0
    %3869 = vmatpush1.msra.mxu0 0.0
    %3870 = vmatprep.subr.mxu0 0.0
    %3871 = vmatpush1.msra.mxu0 0.0
    %3872 = vmatprep.mubr.f32.mxu0 0.0
    %3873 = vmatmul.mubr.f32.gmra.mrb[0].mxu0 %v3664
    %v3874 = vpop.f32.mrb[0].mxu0
    %v3875 = vadd.f32 %v3660, %v3874
    %v3876 = vpop.f32.mrb[0].mxu0
    %v3877 = vadd.f32 %v3660, %v3876
    %3878 = vdwg.mxu0
    %3879 = vmatprep.subr.mxu0 0.0
    %3880 = vmatpush1.msra.mxu0 %v3612
    %3881 = vmatprep.subr.mxu0 0.0
    %3882 = vmatpush1.msra.mxu0 %v3619
    %3883 = vmatprep.subr.mxu0 0.0
    %3884 = vmatpush1.msra.mxu0 %v3626
    %3885 = vmatprep.subr.mxu0 0.0
    %3886 = vmatpush1.msra.mxu0 %v3633
    %3887 = vmatprep.subr.mxu0 0.0
    %3888 = vmatpush1.msra.mxu0 %v3640
    %3889 = vmatprep.subr.mxu0 0.0
    %3890 = vmatpush1.msra.mxu0 %v3647
    %3891 = vmatprep.subr.mxu0 0.0
    %3892 = vmatpush1.msra.mxu0 %v3654
    %3893 = vmatprep.subr.mxu0 0.0
    %3894 = vmatpush1.msra.mxu0 0.0
    %3895 = vmatprep.subr.mxu0 0.0
    %3896 = vmatpush1.msra.mxu0 0.0
    %3897 = vmatprep.subr.mxu0 0.0
    %3898 = vmatpush1.msra.mxu0 0.0
    %3899 = vmatprep.subr.mxu0 0.0
    %3900 = vmatpush1.msra.mxu0 0.0
    %3901 = vmatprep.subr.mxu0 0.0
    %3902 = vmatpush1.msra.mxu0 0.0
    %3903 = vmatprep.subr.mxu0 0.0
    %3904 = vmatpush1.msra.mxu0 0.0
    %3905 = vmatprep.subr.mxu0 0.0
    %3906 = vmatpush1.msra.mxu0 0.0
    %3907 = vmatprep.subr.mxu0 0.0
    %3908 = vmatpush1.msra.mxu0 0.0
    %3909 = vmatprep.subr.mxu0 0.0
    %3910 = vmatpush1.msra.mxu0 0.0
    %3911 = vmatprep.subr.mxu0 0.0
    %3912 = vmatpush1.msra.mxu0 0.0
    %3913 = vmatprep.subr.mxu0 0.0
    %3914 = vmatpush1.msra.mxu0 0.0
    %3915 = vmatprep.subr.mxu0 0.0
    %3916 = vmatpush1.msra.mxu0 0.0
    %3917 = vmatprep.subr.mxu0 0.0
    %3918 = vmatpush1.msra.mxu0 0.0
    %3919 = vmatprep.subr.mxu0 0.0
    %3920 = vmatpush1.msra.mxu0 0.0
    %3921 = vmatprep.subr.mxu0 0.0
    %3922 = vmatpush1.msra.mxu0 0.0
    %3923 = vmatprep.subr.mxu0 0.0
    %3924 = vmatpush1.msra.mxu0 0.0
    %3925 = vmatprep.subr.mxu0 0.0
    %3926 = vmatpush1.msra.mxu0 0.0
    %3927 = vmatprep.subr.mxu0 0.0
    %3928 = vmatpush1.msra.mxu0 0.0
    %3929 = vmatprep.subr.mxu0 0.0
    %3930 = vmatpush1.msra.mxu0 0.0
    %3931 = vmatprep.subr.mxu0 0.0
    %3932 = vmatpush1.msra.mxu0 0.0
    %3933 = vmatprep.subr.mxu0 0.0
    %3934 = vmatpush1.msra.mxu0 0.0
    %3935 = vmatprep.subr.mxu0 0.0
    %3936 = vmatpush1.msra.mxu0 0.0
    %3937 = vmatprep.subr.mxu0 0.0
    %3938 = vmatpush1.msra.mxu0 0.0
    %3939 = vmatprep.subr.mxu0 0.0
    %3940 = vmatpush1.msra.mxu0 0.0
    %3941 = vmatprep.subr.mxu0 0.0
    %3942 = vmatpush1.msra.mxu0 0.0
    %3943 = vmatprep.mubr.f32.mxu0 0.0
    %3944 = vmatmul.mubr.f32.gmra.mrb[0].mxu0 %v3664
    %v3945 = vpop.f32.mrb[0].mxu0
    %v3946 = vadd.f32 %v3660, %v3945
    %v3947 = vpop.f32.mrb[0].mxu0
    %3948 = vdwg.mxu0
    %v3949 = vmul.f32 %v3733, %v3733
    %v3950 = vmul.f32 %v3735, %v3735
    %v3951 = vmul.f32 %v3804, %v3804
    %v3952 = vmul.f32 %v3806, %v3806
    %v3953 = vmul.f32 %v3875, %v3875
    %v3954 = vmul.f32 %v3877, %v3877
    %v3955 = vmul.f32 %v3946, %v3946
    %v3956 = vld [vmem:[%s3] sm:$0xff]
    %v3957 = vld [vmem:[%s3 + $0x8] sm:$0xff]
    %v3958 = vld [vmem:[%s3 + $0x10] sm:$0xff]
    %v3959 = vld [vmem:[%s3 + $0x18] sm:$0xff]
    %v3960 = vld [vmem:[%s3 + $0x20] sm:$0xff]
    %v3961 = vld [vmem:[%s3 + $0x28] sm:$0xff]
    %v3962 = vld [vmem:[%s3 + $0x30] sm:$0xff]
    %v3963 = vld [vmem:[%s3 + $0x38] sm:$0xff]
    %v3964 = vld [vmem:[%s3 + $0x40] sm:$0xff]
    %v3965 = vld [vmem:[%s3 + $0x48] sm:$0xff]
    %v3966 = vld [vmem:[%s3 + $0x50] sm:$0xff]
    %v3967 = vld [vmem:[%s3 + $0x58] sm:$0xff]
    %v3968 = vld [vmem:[%s3 + $0x60] sm:$0xff]
    %v3969 = vld [vmem:[%s3 + $0x68] sm:$0xff]
    %v3970 = vld [vmem:[%s3 + $0x70] sm:$0xff]
    %v3971 = vld [vmem:[%s3 + $0x78] sm:$0xff]
    %v3972 = vld [vmem:[%s3 + $0x80] sm:$0xff]
    %v3973 = vld [vmem:[%s3 + $0x88] sm:$0xff]
    %v3974 = vld [vmem:[%s3 + $0x90] sm:$0xff]
    %v3975 = vld [vmem:[%s3 + $0x98] sm:$0xff]
    %v3976 = vld [vmem:[%s3 + $0xa0] sm:$0xff]
    %v3977 = vld [vmem:[%s3 + $0xa8] sm:$0xff]
    %v3978 = vld [vmem:[%s3 + $0xb0] sm:$0xff]
    %v3979 = vld [vmem:[%s3 + $0xb8] sm:$0xff]
    %v3980 = vld [vmem:[%s3 + $0xc0] sm:$0xff]
    %v3981 = vld [vmem:[%s3 + $0xc8] sm:$0xff]
    %v3982 = vld [vmem:[%s3 + $0xd0] sm:$0xff]
    %v3983 = vld [vmem:[%s3 + $0xd8] sm:$0xff]
    %v3984 = vld [vmem:[%s3 + $0xe0] sm:$0xff]
    %v3985 = vld [vmem:[%s3 + $0xe8] sm:$0xff]
    %v3986 = vld [vmem:[%s3 + $0xf0] sm:$0xff]
    %v3987 = vld [vmem:[%s3 + $0xf8] sm:$0xff]
    %v3988 = vld [vmem:[%s3 + $0x100] sm:$0xff]
    %v3989 = vld [vmem:[%s3 + $0x108] sm:$0xff]
    %v3990 = vld [vmem:[%s3 + $0x110] sm:$0xff]
    %v3991 = vld [vmem:[%s3 + $0x118] sm:$0xff]
    %v3992 = vld [vmem:[%s3 + $0x120] sm:$0xff]
    %v3993 = vld [vmem:[%s3 + $0x128] sm:$0xff]
    %v3994 = vld [vmem:[%s3 + $0x130] sm:$0xff]
    %v3995 = vld [vmem:[%s3 + $0x138] sm:$0xff]
    %v3996 = vld [vmem:[%s3 + $0x140] sm:$0xff]
    %v3997 = vld [vmem:[%s3 + $0x148] sm:$0xff]
    %v3998 = vld [vmem:[%s3 + $0x150] sm:$0xff]
    %v3999 = vld [vmem:[%s3 + $0x158] sm:$0xff]
    %v4000 = vld [vmem:[%s3 + $0x160] sm:$0xff]
    %v4001 = vld [vmem:[%s3 + $0x168] sm:$0xff]
    %v4002 = vld [vmem:[%s3 + $0x170] sm:$0xff]
    %v4003 = vld [vmem:[%s3 + $0x178] sm:$0xff]
    %v4004 = vld [vmem:[%s3 + $0x180] sm:$0xff]
    %v4005 = vld [vmem:[%s3 + $0x188] sm:$0xff]
    %v4006 = vld [vmem:[%s3 + $0x190] sm:$0xff]
    %v4007 = vld [vmem:[%s3 + $0x198] sm:$0xff]
    %v4008 = vld [vmem:[%s3 + $0x1a0] sm:$0xff]
    %v4009 = vld [vmem:[%s3 + $0x1a8] sm:$0xff]
    %v4010 = vld [vmem:[%s3 + $0x1b0] sm:$0xff]
    %v4011 = vld [vmem:[%s3 + $0x1b8] sm:$0xff]
    %v4012 = vld [vmem:[%s3 + $0x1c0] sm:$0xff]
    %v4013 = vld [vmem:[%s3 + $0x1c8] sm:$0xff]
    %v4014 = vld [vmem:[%s3 + $0x1d0] sm:$0xff]
    %v4015 = vld [vmem:[%s3 + $0x1d8] sm:$0xff]
    %v4016 = vld [vmem:[%s3 + $0x1e0] sm:$0xff]
    %v4017 = vld [vmem:[%s3 + $0x1e8] sm:$0xff]
    %v4018 = vld [vmem:[%s3 + $0x1f0] sm:$0xff]
    %v4019 = vld [vmem:[%s3 + $0x1f8] sm:$0xff]
    %v4020 = vld [vmem:[%s3 + $0x200] sm:$0xff]
    %v4021 = vld [vmem:[%s3 + $0x208] sm:$0xff]
    %v4022 = vld [vmem:[%s3 + $0x210] sm:$0xff]
    %v4023 = vld [vmem:[%s3 + $0x218] sm:$0xff]
    %v4024 = vld [vmem:[%s3 + $0x220] sm:$0xff]
    %v4025 = vld [vmem:[%s3 + $0x228] sm:$0xff]
    %v4026 = vld [vmem:[%s3 + $0x230] sm:$0xff]
    %v4027 = vld [vmem:[%s3 + $0x238] sm:$0xff]
    %v4028 = vld [vmem:[%s3 + $0x240] sm:$0xff]
    %v4029 = vld [vmem:[%s3 + $0x248] sm:$0xff]
    %v4030 = vld [vmem:[%s3 + $0x250] sm:$0xff]
    %v4031 = vld [vmem:[%s3 + $0x258] sm:$0xff]
    %v4032 = vld [vmem:[%s3 + $0x260] sm:$0xff]
    %v4033 = vld [vmem:[%s3 + $0x268] sm:$0xff]
    %v4034 = vld [vmem:[%s3 + $0x270] sm:$0xff]
    %v4035 = vld [vmem:[%s3 + $0x278] sm:$0xff]
    %v4036 = vld [vmem:[%s3 + $0x280] sm:$0xff]
    %v4037 = vld [vmem:[%s3 + $0x288] sm:$0xff]
    %v4038 = vld [vmem:[%s3 + $0x290] sm:$0xff]
    %v4039 = vld [vmem:[%s3 + $0x298] sm:$0xff]
    %v4040 = vld [vmem:[%s3 + $0x2a0] sm:$0xff]
    %v4041 = vld [vmem:[%s3 + $0x2a8] sm:$0xff]
    %v4042 = vld [vmem:[%s3 + $0x2b0] sm:$0xff]
    %v4043 = vld [vmem:[%s3 + $0x2b8] sm:$0xff]
    %v4044 = vld [vmem:[%s3 + $0x2c0] sm:$0xff]
    %v4045 = vld [vmem:[%s3 + $0x2c8] sm:$0xff]
    %v4046 = vld [vmem:[%s3 + $0x2d0] sm:$0xff]
    %v4047 = vld [vmem:[%s3 + $0x2d8] sm:$0xff]
    %v4048 = vld [vmem:[%s3 + $0x2e0] sm:$0xff]
    %v4049 = vld [vmem:[%s3 + $0x2e8] sm:$0xff]
    %v4050 = vld [vmem:[%s3 + $0x2f0] sm:$0xff]
    %v4051 = vld [vmem:[%s3 + $0x2f8] sm:$0xff]
    %v4052 = vld [vmem:[%s3 + $0x300] sm:$0xff]
    %v4053 = vld [vmem:[%s3 + $0x308] sm:$0xff]
    %v4054 = vld [vmem:[%s3 + $0x310] sm:$0xff]
    %v4055 = vld [vmem:[%s3 + $0x318] sm:$0xff]
    %v4056 = vld [vmem:[%s3 + $0x320] sm:$0xff]
    %v4057 = vld [vmem:[%s3 + $0x328] sm:$0xff]
    %vm4058 = vcmask 392192
    %v4060 = vsel %vm4058, %v3955, 0
    %4062 = vmatprep.subr.mxu0 0.0
    %4063 = vmatpush1.msra.mxu0 %v3956
    %4064 = vmatprep.subr.mxu0 0.0
    %4065 = vmatpush1.msra.mxu0 %v3957
    %4066 = vmatprep.subr.mxu0 0.0
    %4067 = vmatpush1.msra.mxu0 %v3958
    %4068 = vmatprep.subr.mxu0 0.0
    %4069 = vmatpush1.msra.mxu0 %v3959
    %4070 = vmatprep.subr.mxu0 0.0
    %4071 = vmatpush1.msra.mxu0 %v3960
    %4072 = vmatprep.subr.mxu0 0.0
    %4073 = vmatpush1.msra.mxu0 %v3961
    %4074 = vmatprep.subr.mxu0 0.0
    %4075 = vmatpush1.msra.mxu0 %v3962
    %4076 = vmatprep.subr.mxu0 0.0
    %4077 = vmatpush1.msra.mxu0 %v3963
    %4078 = vmatprep.subr.mxu0 0.0
    %4079 = vmatpush1.msra.mxu0 %v3964
    %4080 = vmatprep.subr.mxu0 0.0
    %4081 = vmatpush1.msra.mxu0 %v3965
    %4082 = vmatprep.subr.mxu0 0.0
    %4083 = vmatpush1.msra.mxu0 %v3966
    %4084 = vmatprep.subr.mxu0 0.0
    %4085 = vmatpush1.msra.mxu0 %v3967
    %4086 = vmatprep.subr.mxu0 0.0
    %4087 = vmatpush1.msra.mxu0 %v3968
    %4088 = vmatprep.subr.mxu0 0.0
    %4089 = vmatpush1.msra.mxu0 %v3969
    %4090 = vmatprep.subr.mxu0 0.0
    %4091 = vmatpush1.msra.mxu0 %v3970
    %4092 = vmatprep.subr.mxu0 0.0
    %4093 = vmatpush1.msra.mxu0 %v3971
    %4094 = vmatprep.subr.mxu0 0.0
    %4095 = vmatpush1.msra.mxu0 %v3972
    %4096 = vmatprep.subr.mxu0 0.0
    %4097 = vmatpush1.msra.mxu0 %v3973
    %4098 = vmatprep.subr.mxu0 0.0
    %4099 = vmatpush1.msra.mxu0 %v3974
    %4100 = vmatprep.subr.mxu0 0.0
    %4101 = vmatpush1.msra.mxu0 %v3975
    %4102 = vmatprep.subr.mxu0 0.0
    %4103 = vmatpush1.msra.mxu0 %v3976
    %4104 = vmatprep.subr.mxu0 0.0
    %4105 = vmatpush1.msra.mxu0 %v3977
    %4106 = vmatprep.subr.mxu0 0.0
    %4107 = vmatpush1.msra.mxu0 %v3978
    %4108 = vmatprep.subr.mxu0 0.0
    %4109 = vmatpush1.msra.mxu0 %v3979
    %4110 = vmatprep.subr.mxu0 0.0
    %4111 = vmatpush1.msra.mxu0 %v3980
    %4112 = vmatprep.subr.mxu0 0.0
    %4113 = vmatpush1.msra.mxu0 %v3981
    %4114 = vmatprep.subr.mxu0 0.0
    %4115 = vmatpush1.msra.mxu0 %v3982
    %4116 = vmatprep.subr.mxu0 0.0
    %4117 = vmatpush1.msra.mxu0 %v3983
    %4118 = vmatprep.subr.mxu0 0.0
    %4119 = vmatpush1.msra.mxu0 %v3984
    %4120 = vmatprep.subr.mxu0 0.0
    %4121 = vmatpush1.msra.mxu0 %v3985
    %4122 = vmatprep.subr.mxu0 0.0
    %4123 = vmatpush1.msra.mxu0 %v3986
    %4124 = vmatprep.subr.mxu0 0.0
    %4125 = vmatpush1.msra.mxu0 %v3987
    %4126 = vmatprep.mubr.f32.mxu0 %v3950
    %4127 = vmatmul.mubr.f32.gmra.mrb[0].mxu0 %v3949
    %v4128 = vpop.f32.mrb[0].mxu0
    %v4129 = vadd.f32 0.0, %v4128
    %v4130 = vpop.f32.mrb[0].mxu0
    %4131 = vdwg.mxu0
    %4132 = vmatprep.subr.mxu0 0.0
    %4133 = vmatpush1.msra.mxu0 %v3988
    %4134 = vmatprep.subr.mxu0 0.0
    %4135 = vmatpush1.msra.mxu0 %v3989
    %4136 = vmatprep.subr.mxu0 0.0
    %4137 = vmatpush1.msra.mxu0 %v3990
    %4138 = vmatprep.subr.mxu0 0.0
    %4139 = vmatpush1.msra.mxu0 %v3991
    %4140 = vmatprep.subr.mxu0 0.0
    %4141 = vmatpush1.msra.mxu0 %v3992
    %4142 = vmatprep.subr.mxu0 0.0
    %4143 = vmatpush1.msra.mxu0 %v3993
    %4144 = vmatprep.subr.mxu0 0.0
    %4145 = vmatpush1.msra.mxu0 %v3994
    %4146 = vmatprep.subr.mxu0 0.0
    %4147 = vmatpush1.msra.mxu0 %v3995
    %4148 = vmatprep.subr.mxu0 0.0
    %4149 = vmatpush1.msra.mxu0 %v3996
    %4150 = vmatprep.subr.mxu0 0.0
    %4151 = vmatpush1.msra.mxu0 %v3997
    %4152 = vmatprep.subr.mxu0 0.0
    %4153 = vmatpush1.msra.mxu0 %v3998
    %4154 = vmatprep.subr.mxu0 0.0
    %4155 = vmatpush1.msra.mxu0 %v3999
    %4156 = vmatprep.subr.mxu0 0.0
    %4157 = vmatpush1.msra.mxu0 %v4000
    %4158 = vmatprep.subr.mxu0 0.0
    %4159 = vmatpush1.msra.mxu0 %v4001
    %4160 = vmatprep.subr.mxu0 0.0
    %4161 = vmatpush1.msra.mxu0 %v4002
    %4162 = vmatprep.subr.mxu0 0.0
    %4163 = vmatpush1.msra.mxu0 %v4003
    %4164 = vmatprep.subr.mxu0 0.0
    %4165 = vmatpush1.msra.mxu0 %v4004
    %4166 = vmatprep.subr.mxu0 0.0
    %4167 = vmatpush1.msra.mxu0 %v4005
    %4168 = vmatprep.subr.mxu0 0.0
    %4169 = vmatpush1.msra.mxu0 %v4006
    %4170 = vmatprep.subr.mxu0 0.0
    %4171 = vmatpush1.msra.mxu0 %v4007
    %4172 = vmatprep.subr.mxu0 0.0
    %4173 = vmatpush1.msra.mxu0 %v4008
    %4174 = vmatprep.subr.mxu0 0.0
    %4175 = vmatpush1.msra.mxu0 %v4009
    %4176 = vmatprep.subr.mxu0 0.0
    %4177 = vmatpush1.msra.mxu0 %v4010
    %4178 = vmatprep.subr.mxu0 0.0
    %4179 = vmatpush1.msra.mxu0 %v4011
    %4180 = vmatprep.subr.mxu0 0.0
    %4181 = vmatpush1.msra.mxu0 %v4012
    %4182 = vmatprep.subr.mxu0 0.0
    %4183 = vmatpush1.msra.mxu0 %v4013
    %4184 = vmatprep.subr.mxu0 0.0
    %4185 = vmatpush1.msra.mxu0 %v4014
    %4186 = vmatprep.subr.mxu0 0.0
    %4187 = vmatpush1.msra.mxu0 %v4015
    %4188 = vmatprep.subr.mxu0 0.0
    %4189 = vmatpush1.msra.mxu0 %v4016
    %4190 = vmatprep.subr.mxu0 0.0
    %4191 = vmatpush1.msra.mxu0 %v4017
    %4192 = vmatprep.subr.mxu0 0.0
    %4193 = vmatpush1.msra.mxu0 %v4018
    %4194 = vmatprep.subr.mxu0 0.0
    %4195 = vmatpush1.msra.mxu0 %v4019
    %4196 = vmatprep.mubr.f32.mxu0 %v3952
    %4197 = vmatmul.mubr.f32.gmra.mrb[0].mxu0 %v3951
    %v4198 = vpop.f32.mrb[0].mxu0
    %v4199 = vadd.f32 %v4129, %v4198
    %v4200 = vpop.f32.mrb[0].mxu0
    %4201 = vdwg.mxu0
    %4202 = vmatprep.subr.mxu0 0.0
    %4203 = vmatpush1.msra.mxu0 %v4020
    %4204 = vmatprep.subr.mxu0 0.0
    %4205 = vmatpush1.msra.mxu0 %v4021
    %4206 = vmatprep.subr.mxu0 0.0
    %4207 = vmatpush1.msra.mxu0 %v4022
    %4208 = vmatprep.subr.mxu0 0.0
    %4209 = vmatpush1.msra.mxu0 %v4023
    %4210 = vmatprep.subr.mxu0 0.0
    %4211 = vmatpush1.msra.mxu0 %v4024
    %4212 = vmatprep.subr.mxu0 0.0
    %4213 = vmatpush1.msra.mxu0 %v4025
    %4214 = vmatprep.subr.mxu0 0.0
    %4215 = vmatpush1.msra.mxu0 %v4026
    %4216 = vmatprep.subr.mxu0 0.0
    %4217 = vmatpush1.msra.mxu0 %v4027
    %4218 = vmatprep.subr.mxu0 0.0
    %4219 = vmatpush1.msra.mxu0 %v4028
    %4220 = vmatprep.subr.mxu0 0.0
    %4221 = vmatpush1.msra.mxu0 %v4029
    %4222 = vmatprep.subr.mxu0 0.0
    %4223 = vmatpush1.msra.mxu0 %v4030
    %4224 = vmatprep.subr.mxu0 0.0
    %4225 = vmatpush1.msra.mxu0 %v4031
    %4226 = vmatprep.subr.mxu0 0.0
    %4227 = vmatpush1.msra.mxu0 %v4032
    %4228 = vmatprep.subr.mxu0 0.0
    %4229 = vmatpush1.msra.mxu0 %v4033
    %4230 = vmatprep.subr.mxu0 0.0
    %4231 = vmatpush1.msra.mxu0 %v4034
    %4232 = vmatprep.subr.mxu0 0.0
    %4233 = vmatpush1.msra.mxu0 %v4035
    %4234 = vmatprep.subr.mxu0 0.0
    %4235 = vmatpush1.msra.mxu0 %v4036
    %4236 = vmatprep.subr.mxu0 0.0
    %4237 = vmatpush1.msra.mxu0 %v4037
    %4238 = vmatprep.subr.mxu0 0.0
    %4239 = vmatpush1.msra.mxu0 %v4038
    %4240 = vmatprep.subr.mxu0 0.0
    %4241 = vmatpush1.msra.mxu0 %v4039
    %4242 = vmatprep.subr.mxu0 0.0
    %4243 = vmatpush1.msra.mxu0 %v4040
    %4244 = vmatprep.subr.mxu0 0.0
    %4245 = vmatpush1.msra.mxu0 %v4041
    %4246 = vmatprep.subr.mxu0 0.0
    %4247 = vmatpush1.msra.mxu0 %v4042
    %4248 = vmatprep.subr.mxu0 0.0
    %4249 = vmatpush1.msra.mxu0 %v4043
    %4250 = vmatprep.subr.mxu0 0.0
    %4251 = vmatpush1.msra.mxu0 %v4044
    %4252 = vmatprep.subr.mxu0 0.0
    %4253 = vmatpush1.msra.mxu0 %v4045
    %4254 = vmatprep.subr.mxu0 0.0
    %4255 = vmatpush1.msra.mxu0 %v4046
    %4256 = vmatprep.subr.mxu0 0.0
    %4257 = vmatpush1.msra.mxu0 %v4047
    %4258 = vmatprep.subr.mxu0 0.0
    %4259 = vmatpush1.msra.mxu0 %v4048
    %4260 = vmatprep.subr.mxu0 0.0
    %4261 = vmatpush1.msra.mxu0 %v4049
    %4262 = vmatprep.subr.mxu0 0.0
    %4263 = vmatpush1.msra.mxu0 %v4050
    %4264 = vmatprep.subr.mxu0 0.0
    %4265 = vmatpush1.msra.mxu0 %v4051
    %4266 = vmatprep.mubr.f32.mxu0 %v3954
    %4267 = vmatmul.mubr.f32.gmra.mrb[0].mxu0 %v3953
    %v4268 = vpop.f32.mrb[0].mxu0
    %v4269 = vadd.f32 %v4199, %v4268
    %v4270 = vpop.f32.mrb[0].mxu0
    %4271 = vdwg.mxu0
    %4272 = vmatprep.subr.mxu0 0.0
    %4273 = vmatpush1.msra.mxu0 %v4052
    %4274 = vmatprep.subr.mxu0 0.0
    %4275 = vmatpush1.msra.mxu0 %v4053
    %4276 = vmatprep.subr.mxu0 0.0
    %4277 = vmatpush1.msra.mxu0 %v4054
    %4278 = vmatprep.subr.mxu0 0.0
    %4279 = vmatpush1.msra.mxu0 %v4055
    %4280 = vmatprep.subr.mxu0 0.0
    %4281 = vmatpush1.msra.mxu0 %v4056
    %4282 = vmatprep.subr.mxu0 0.0
    %4283 = vmatpush1.msra.mxu0 %v4057
    %4284 = vmatprep.subr.mxu0 0.0
    %4285 = vmatpush1.msra.mxu0 0.0
    %4286 = vmatprep.subr.mxu0 0.0
    %4287 = vmatpush1.msra.mxu0 0.0
    %4288 = vmatprep.subr.mxu0 0.0
    %4289 = vmatpush1.msra.mxu0 0.0
    %4290 = vmatprep.subr.mxu0 0.0
    %4291 = vmatpush1.msra.mxu0 0.0
    %4292 = vmatprep.subr.mxu0 0.0
    %4293 = vmatpush1.msra.mxu0 0.0
    %4294 = vmatprep.subr.mxu0 0.0
    %4295 = vmatpush1.msra.mxu0 0.0
    %4296 = vmatprep.subr.mxu0 0.0
    %4297 = vmatpush1.msra.mxu0 0.0
    %4298 = vmatprep.subr.mxu0 0.0
    %4299 = vmatpush1.msra.mxu0 0.0
    %4300 = vmatprep.subr.mxu0 0.0
    %4301 = vmatpush1.msra.mxu0 0.0
    %4302 = vmatprep.subr.mxu0 0.0
    %4303 = vmatpush1.msra.mxu0 0.0
    %4304 = vmatprep.subr.mxu0 0.0
    %4305 = vmatpush1.msra.mxu0 0.0
    %4306 = vmatprep.subr.mxu0 0.0
    %4307 = vmatpush1.msra.mxu0 0.0
    %4308 = vmatprep.subr.mxu0 0.0
    %4309 = vmatpush1.msra.mxu0 0.0
    %4310 = vmatprep.subr.mxu0 0.0
    %4311 = vmatpush1.msra.mxu0 0.0
    %4312 = vmatprep.subr.mxu0 0.0
    %4313 = vmatpush1.msra.mxu0 0.0
    %4314 = vmatprep.subr.mxu0 0.0
    %4315 = vmatpush1.msra.mxu0 0.0
    %4316 = vmatprep.subr.mxu0 0.0
    %4317 = vmatpush1.msra.mxu0 0.0
    %4318 = vmatprep.subr.mxu0 0.0
    %4319 = vmatpush1.msra.mxu0 0.0
    %4320 = vmatprep.subr.mxu0 0.0
    %4321 = vmatpush1.msra.mxu0 0.0
    %4322 = vmatprep.subr.mxu0 0.0
    %4323 = vmatpush1.msra.mxu0 0.0
    %4324 = vmatprep.subr.mxu0 0.0
    %4325 = vmatpush1.msra.mxu0 0.0
    %4326 = vmatprep.subr.mxu0 0.0
    %4327 = vmatpush1.msra.mxu0 0.0
    %4328 = vmatprep.subr.mxu0 0.0
    %4329 = vmatpush1.msra.mxu0 0.0
    %4330 = vmatprep.subr.mxu0 0.0
    %4331 = vmatpush1.msra.mxu0 0.0
    %4332 = vmatprep.subr.mxu0 0.0
    %4333 = vmatpush1.msra.mxu0 0.0
    %4334 = vmatprep.subr.mxu0 0.0
    %4335 = vmatpush1.msra.mxu0 0.0
    %4336 = vmatprep.mubr.f32.mxu0 0.0
    %4337 = vmatmul.mubr.f32.gmra.mrb[0].mxu0 %v4060
    %v4338 = vpop.f32.mrb[0].mxu0
    %v4339 = vadd.f32 %v4269, %v4338
    %v4340 = vpop.f32.mrb[0].mxu0
    %4341 = vdwg.mxu0
    %v4342 = vlog2.pop %v4339
    %v4343 = vmul.f32 %v4342, 0.6931472
    %4345 = vrot.lane.b32.xlu0 %v4343, 125
    %v4346 = vpop.permute.xlu0 %4345
    %4348 = vrot.lane.b32.xlu0 %v4343, 122
    %v4349 = vpop.permute.xlu0 %4348
    %4351 = vrot.lane.b32.xlu0 %v4343, 119
    %v4352 = vpop.permute.xlu0 %4351
    %4354 = vrot.lane.b32.xlu0 %v4343, 116
    %v4355 = vpop.permute.xlu0 %4354
    %4357 = vrot.lane.b32.xlu0 %v4343, 113
    %v4358 = vpop.permute.xlu0 %4357
    %4360 = vrot.lane.b32.xlu0 %v4343, 110
    %v4361 = vpop.permute.xlu0 %4360
    %4363 = vrot.lane.b32.xlu0 %v4343, 107
    %v4364 = vpop.permute.xlu0 %4363
    %4366 = vrot.lane.b32.xlu0 %v4343, 104
    %v4367 = vpop.permute.xlu0 %4366
    %4369 = vrot.lane.b32.xlu0 %v4343, 101
    %v4370 = vpop.permute.xlu0 %4369
    %4372 = vrot.lane.b32.xlu0 %v4343, 98
    %v4373 = vpop.permute.xlu0 %4372
    %4375 = vrot.lane.b32.xlu0 %v4343, 95
    %v4376 = vpop.permute.xlu0 %4375
    %4378 = vrot.lane.b32.xlu0 %v4343, 92
    %v4379 = vpop.permute.xlu0 %4378
    %4381 = vrot.lane.b32.xlu0 %v4343, 89
    %v4382 = vpop.permute.xlu0 %4381
    %4384 = vrot.lane.b32.xlu0 %v4343, 86
    %v4385 = vpop.permute.xlu0 %4384
    %4387 = vrot.lane.b32.xlu0 %v4343, 83
    %v4388 = vpop.permute.xlu0 %4387
    %v4390 = vcombine.low %v4343, %v4349
    %v4391 = vcombine.high %v4343, %v4349
    %v4393 = vunpack.c.l.s4 1983009808
    %v4394 = vunpack.c.0.s8 %v4393
    %v4395 = vlaneseq
    %v4396 = vshrl.u32 %v4395, 7
    %v4397 = vsub.s32 %v4394, %v4396
    %v4398 = vrot.slane %v4390, %v4397
    %v4400 = vunpack.c.l.s4 1983009808
    %v4401 = vunpack.c.0.s8 %v4400
    %v4402 = vlaneseq
    %v4403 = vshrl.u32 %v4402, 7
    %v4404 = vsub.s32 %v4401, %v4403
    %v4405 = vrot.slane %v4391, %v4404
    %v4406 = vcombine.low %v4346, %v4352
    %v4407 = vcombine.high %v4346, %v4352
    %v4409 = vunpack.c.l.s4 1983009808
    %v4410 = vunpack.c.0.s8 %v4409
    %v4411 = vlaneseq
    %v4412 = vshrl.u32 %v4411, 7
    %v4413 = vsub.s32 %v4410, %v4412
    %v4414 = vrot.slane %v4406, %v4413
    %v4416 = vunpack.c.l.s4 1983009808
    %v4417 = vunpack.c.0.s8 %v4416
    %v4418 = vlaneseq
    %v4419 = vshrl.u32 %v4418, 7
    %v4420 = vsub.s32 %v4417, %v4419
    %v4421 = vrot.slane %v4407, %v4420
    %v4422 = vcombine.low %v4355, %v4361
    %v4423 = vcombine.high %v4355, %v4361
    %v4425 = vunpack.c.l.s4 1983009808
    %v4426 = vunpack.c.0.s8 %v4425
    %v4427 = vlaneseq
    %v4428 = vshrl.u32 %v4427, 7
    %v4429 = vsub.s32 %v4426, %v4428
    %v4430 = vrot.slane %v4422, %v4429
    %v4432 = vunpack.c.l.s4 1983009808
    %v4433 = vunpack.c.0.s8 %v4432
    %v4434 = vlaneseq
    %v4435 = vshrl.u32 %v4434, 7
    %v4436 = vsub.s32 %v4433, %v4435
    %v4437 = vrot.slane %v4423, %v4436
    %v4438 = vcombine.low %v4358, %v4364
    %v4439 = vcombine.high %v4358, %v4364
    %v4441 = vunpack.c.l.s4 1983009808
    %v4442 = vunpack.c.0.s8 %v4441
    %v4443 = vlaneseq
    %v4444 = vshrl.u32 %v4443, 7
    %v4445 = vsub.s32 %v4442, %v4444
    %v4446 = vrot.slane %v4438, %v4445
    %v4448 = vunpack.c.l.s4 1983009808
    %v4449 = vunpack.c.0.s8 %v4448
    %v4450 = vlaneseq
    %v4451 = vshrl.u32 %v4450, 7
    %v4452 = vsub.s32 %v4449, %v4451
    %v4453 = vrot.slane %v4439, %v4452
    %v4454 = vcombine.low %v4398, %v4414
    %v4455 = vcombine.high %v4398, %v4414
    %v4457 = vunpack.c.l.s4 1934713408
    %v4458 = vunpack.c.0.s8 %v4457
    %v4459 = vlaneseq
    %v4460 = vshrl.u32 %v4459, 7
    %v4461 = vsub.s32 %v4458, %v4460
    %v4462 = vrot.slane %v4454, %v4461
    %v4464 = vunpack.c.l.s4 1934713408
    %v4465 = vunpack.c.0.s8 %v4464
    %v4466 = vlaneseq
    %v4467 = vshrl.u32 %v4466, 7
    %v4468 = vsub.s32 %v4465, %v4467
    %v4469 = vrot.slane %v4455, %v4468
    %v4470 = vcombine.low %v4405, %v4421
    %v4471 = vcombine.high %v4405, %v4421
    %v4473 = vunpack.c.l.s4 1934713408
    %v4474 = vunpack.c.0.s8 %v4473
    %v4475 = vlaneseq
    %v4476 = vshrl.u32 %v4475, 7
    %v4477 = vsub.s32 %v4474, %v4476
    %v4478 = vrot.slane %v4470, %v4477
    %v4480 = vunpack.c.l.s4 1934713408
    %v4481 = vunpack.c.0.s8 %v4480
    %v4482 = vlaneseq
    %v4483 = vshrl.u32 %v4482, 7
    %v4484 = vsub.s32 %v4481, %v4483
    %v4485 = vrot.slane %v4471, %v4484
    %v4486 = vcombine.low %v4430, %v4446
    %v4487 = vcombine.high %v4430, %v4446
    %v4489 = vunpack.c.l.s4 1934713408
    %v4490 = vunpack.c.0.s8 %v4489
    %v4491 = vlaneseq
    %v4492 = vshrl.u32 %v4491, 7
    %v4493 = vsub.s32 %v4490, %v4492
    %v4494 = vrot.slane %v4486, %v4493
    %v4496 = vunpack.c.l.s4 1934713408
    %v4497 = vunpack.c.0.s8 %v4496
    %v4498 = vlaneseq
    %v4499 = vshrl.u32 %v4498, 7
    %v4500 = vsub.s32 %v4497, %v4499
    %v4501 = vrot.slane %v4487, %v4500
    %v4502 = vcombine.low %v4437, %v4453
    %v4503 = vcombine.high %v4437, %v4453
    %v4505 = vunpack.c.l.s4 1934713408
    %v4506 = vunpack.c.0.s8 %v4505
    %v4507 = vlaneseq
    %v4508 = vshrl.u32 %v4507, 7
    %v4509 = vsub.s32 %v4506, %v4508
    %v4510 = vrot.slane %v4502, %v4509
    %v4512 = vunpack.c.l.s4 1934713408
    %v4513 = vunpack.c.0.s8 %v4512
    %v4514 = vlaneseq
    %v4515 = vshrl.u32 %v4514, 7
    %v4516 = vsub.s32 %v4513, %v4515
    %v4517 = vrot.slane %v4503, %v4516
    %v4518 = vcombine.low %v4462, %v4494
    %v4519 = vcombine.high %v4462, %v4494
    %v4520 = vcombine.low %v4469, %v4501
    %v4521 = vcombine.high %v4469, %v4501
    %v4522 = vcombine.low %v4478, %v4510
    %v4523 = vcombine.high %v4478, %v4510
    %v4524 = vcombine.low %v4485, %v4517
    %v4525 = vcombine.high %v4485, %v4517
    %v4526 = vcombine.low %v4367, %v4373
    %v4527 = vcombine.high %v4367, %v4373
    %v4529 = vunpack.c.l.s4 1983009808
    %v4530 = vunpack.c.0.s8 %v4529
    %v4531 = vlaneseq
    %v4532 = vshrl.u32 %v4531, 7
    %v4533 = vsub.s32 %v4530, %v4532
    %v4534 = vrot.slane %v4526, %v4533
    %v4536 = vunpack.c.l.s4 1983009808
    %v4537 = vunpack.c.0.s8 %v4536
    %v4538 = vlaneseq
    %v4539 = vshrl.u32 %v4538, 7
    %v4540 = vsub.s32 %v4537, %v4539
    %v4541 = vrot.slane %v4527, %v4540
    %v4542 = vcombine.low %v4370, %v4376
    %v4543 = vcombine.high %v4370, %v4376
    %v4545 = vunpack.c.l.s4 1983009808
    %v4546 = vunpack.c.0.s8 %v4545
    %v4547 = vlaneseq
    %v4548 = vshrl.u32 %v4547, 7
    %v4549 = vsub.s32 %v4546, %v4548
    %v4550 = vrot.slane %v4542, %v4549
    %v4552 = vunpack.c.l.s4 1983009808
    %v4553 = vunpack.c.0.s8 %v4552
    %v4554 = vlaneseq
    %v4555 = vshrl.u32 %v4554, 7
    %v4556 = vsub.s32 %v4553, %v4555
    %v4557 = vrot.slane %v4543, %v4556
    %v4558 = vcombine.low %v4379, %v4385
    %v4559 = vcombine.high %v4379, %v4385
    %v4561 = vunpack.c.l.s4 1983009808
    %v4562 = vunpack.c.0.s8 %v4561
    %v4563 = vlaneseq
    %v4564 = vshrl.u32 %v4563, 7
    %v4565 = vsub.s32 %v4562, %v4564
    %v4566 = vrot.slane %v4558, %v4565
    %v4568 = vunpack.c.l.s4 1983009808
    %v4569 = vunpack.c.0.s8 %v4568
    %v4570 = vlaneseq
    %v4571 = vshrl.u32 %v4570, 7
    %v4572 = vsub.s32 %v4569, %v4571
    %v4573 = vrot.slane %v4559, %v4572
    %v4574 = vcombine.low %v4382, %v4388
    %v4575 = vcombine.high %v4382, %v4388
    %v4577 = vunpack.c.l.s4 1983009808
    %v4578 = vunpack.c.0.s8 %v4577
    %v4579 = vlaneseq
    %v4580 = vshrl.u32 %v4579, 7
    %v4581 = vsub.s32 %v4578, %v4580
    %v4582 = vrot.slane %v4574, %v4581
    %v4584 = vunpack.c.l.s4 1983009808
    %v4585 = vunpack.c.0.s8 %v4584
    %v4586 = vlaneseq
    %v4587 = vshrl.u32 %v4586, 7
    %v4588 = vsub.s32 %v4585, %v4587
    %v4589 = vrot.slane %v4575, %v4588
    %v4590 = vcombine.low %v4534, %v4550
    %v4591 = vcombine.high %v4534, %v4550
    %v4593 = vunpack.c.l.s4 1934713408
    %v4594 = vunpack.c.0.s8 %v4593
    %v4595 = vlaneseq
    %v4596 = vshrl.u32 %v4595, 7
    %v4597 = vsub.s32 %v4594, %v4596
    %v4598 = vrot.slane %v4590, %v4597
    %v4600 = vunpack.c.l.s4 1934713408
    %v4601 = vunpack.c.0.s8 %v4600
    %v4602 = vlaneseq
    %v4603 = vshrl.u32 %v4602, 7
    %v4604 = vsub.s32 %v4601, %v4603
    %v4605 = vrot.slane %v4591, %v4604
    %v4606 = vcombine.low %v4541, %v4557
    %v4607 = vcombine.high %v4541, %v4557
    %v4609 = vunpack.c.l.s4 1934713408
    %v4610 = vunpack.c.0.s8 %v4609
    %v4611 = vlaneseq
    %v4612 = vshrl.u32 %v4611, 7
    %v4613 = vsub.s32 %v4610, %v4612
    %v4614 = vrot.slane %v4606, %v4613
    %v4616 = vunpack.c.l.s4 1934713408
    %v4617 = vunpack.c.0.s8 %v4616
    %v4618 = vlaneseq
    %v4619 = vshrl.u32 %v4618, 7
    %v4620 = vsub.s32 %v4617, %v4619
    %v4621 = vrot.slane %v4607, %v4620
    %v4622 = vcombine.low %v4566, %v4582
    %v4623 = vcombine.high %v4566, %v4582
    %v4625 = vunpack.c.l.s4 1934713408
    %v4626 = vunpack.c.0.s8 %v4625
    %v4627 = vlaneseq
    %v4628 = vshrl.u32 %v4627, 7
    %v4629 = vsub.s32 %v4626, %v4628
    %v4630 = vrot.slane %v4622, %v4629
    %v4632 = vunpack.c.l.s4 1934713408
    %v4633 = vunpack.c.0.s8 %v4632
    %v4634 = vlaneseq
    %v4635 = vshrl.u32 %v4634, 7
    %v4636 = vsub.s32 %v4633, %v4635
    %v4637 = vrot.slane %v4623, %v4636
    %v4638 = vcombine.low %v4573, %v4589
    %v4639 = vcombine.high %v4573, %v4589
    %v4641 = vunpack.c.l.s4 1934713408
    %v4642 = vunpack.c.0.s8 %v4641
    %v4643 = vlaneseq
    %v4644 = vshrl.u32 %v4643, 7
    %v4645 = vsub.s32 %v4642, %v4644
    %v4646 = vrot.slane %v4638, %v4645
    %v4648 = vunpack.c.l.s4 1934713408
    %v4649 = vunpack.c.0.s8 %v4648
    %v4650 = vlaneseq
    %v4651 = vshrl.u32 %v4650, 7
    %v4652 = vsub.s32 %v4649, %v4651
    %v4653 = vrot.slane %v4639, %v4652
    %v4654 = vcombine.low %v4598, %v4630
    %v4655 = vcombine.high %v4598, %v4630
    %v4656 = vcombine.low %v4605, %v4637
    %v4657 = vcombine.high %v4605, %v4637
    %v4658 = vcombine.low %v4614, %v4646
    %v4659 = vcombine.high %v4614, %v4646
    %v4660 = vcombine.low %v4621, %v4653
    %v4661 = vcombine.high %v4621, %v4653
    %v4662 = vcombine.low %v4518, %v4520
    %v4663 = vcombine.high %v4518, %v4520
    %v4665 = vunpack.c.l.s4 1983009808
    %v4666 = vunpack.c.0.s8 %v4665
    %v4667 = vlaneseq
    %v4668 = vshrl.u32 %v4667, 7
    %v4669 = vsub.s32 %v4666, %v4668
    %v4670 = vrot.slane %v4662, %v4669
    %v4672 = vunpack.c.l.s4 1983009808
    %v4673 = vunpack.c.0.s8 %v4672
    %v4674 = vlaneseq
    %v4675 = vshrl.u32 %v4674, 7
    %v4676 = vsub.s32 %v4673, %v4675
    %v4677 = vrot.slane %v4663, %v4676
    %v4678 = vcombine.low %v4519, %v4521
    %v4679 = vcombine.high %v4519, %v4521
    %v4681 = vunpack.c.l.s4 1983009808
    %v4682 = vunpack.c.0.s8 %v4681
    %v4683 = vlaneseq
    %v4684 = vshrl.u32 %v4683, 7
    %v4685 = vsub.s32 %v4682, %v4684
    %v4686 = vrot.slane %v4678, %v4685
    %v4688 = vunpack.c.l.s4 1983009808
    %v4689 = vunpack.c.0.s8 %v4688
    %v4690 = vlaneseq
    %v4691 = vshrl.u32 %v4690, 7
    %v4692 = vsub.s32 %v4689, %v4691
    %v4693 = vrot.slane %v4679, %v4692
    %v4694 = vcombine.low %v4522, %v4524
    %v4695 = vcombine.high %v4522, %v4524
    %v4697 = vunpack.c.l.s4 1983009808
    %v4698 = vunpack.c.0.s8 %v4697
    %v4699 = vlaneseq
    %v4700 = vshrl.u32 %v4699, 7
    %v4701 = vsub.s32 %v4698, %v4700
    %v4702 = vrot.slane %v4694, %v4701
    %v4704 = vunpack.c.l.s4 1983009808
    %v4705 = vunpack.c.0.s8 %v4704
    %v4706 = vlaneseq
    %v4707 = vshrl.u32 %v4706, 7
    %v4708 = vsub.s32 %v4705, %v4707
    %v4709 = vrot.slane %v4695, %v4708
    %v4710 = vcombine.low %v4523, %v4525
    %v4711 = vcombine.high %v4523, %v4525
    %v4713 = vunpack.c.l.s4 1983009808
    %v4714 = vunpack.c.0.s8 %v4713
    %v4715 = vlaneseq
    %v4716 = vshrl.u32 %v4715, 7
    %v4717 = vsub.s32 %v4714, %v4716
    %v4718 = vrot.slane %v4710, %v4717
    %v4720 = vunpack.c.l.s4 1983009808
    %v4721 = vunpack.c.0.s8 %v4720
    %v4722 = vlaneseq
    %v4723 = vshrl.u32 %v4722, 7
    %v4724 = vsub.s32 %v4721, %v4723
    %v4725 = vrot.slane %v4711, %v4724
    %v4726 = vcombine.low %v4670, %v4686
    %v4727 = vcombine.high %v4670, %v4686
    %v4729 = vunpack.c.l.s4 1934713408
    %v4730 = vunpack.c.0.s8 %v4729
    %v4731 = vlaneseq
    %v4732 = vshrl.u32 %v4731, 7
    %v4733 = vsub.s32 %v4730, %v4732
    %v4734 = vrot.slane %v4726, %v4733
    %v4736 = vunpack.c.l.s4 1934713408
    %v4737 = vunpack.c.0.s8 %v4736
    %v4738 = vlaneseq
    %v4739 = vshrl.u32 %v4738, 7
    %v4740 = vsub.s32 %v4737, %v4739
    %v4741 = vrot.slane %v4727, %v4740
    %v4742 = vcombine.low %v4677, %v4693
    %v4743 = vcombine.high %v4677, %v4693
    %v4745 = vunpack.c.l.s4 1934713408
    %v4746 = vunpack.c.0.s8 %v4745
    %v4747 = vlaneseq
    %v4748 = vshrl.u32 %v4747, 7
    %v4749 = vsub.s32 %v4746, %v4748
    %v4750 = vrot.slane %v4742, %v4749
    %v4752 = vunpack.c.l.s4 1934713408
    %v4753 = vunpack.c.0.s8 %v4752
    %v4754 = vlaneseq
    %v4755 = vshrl.u32 %v4754, 7
    %v4756 = vsub.s32 %v4753, %v4755
    %v4757 = vrot.slane %v4743, %v4756
    %v4758 = vcombine.low %v4702, %v4718
    %v4759 = vcombine.high %v4702, %v4718
    %v4761 = vunpack.c.l.s4 1934713408
    %v4762 = vunpack.c.0.s8 %v4761
    %v4763 = vlaneseq
    %v4764 = vshrl.u32 %v4763, 7
    %v4765 = vsub.s32 %v4762, %v4764
    %v4766 = vrot.slane %v4758, %v4765
    %v4768 = vunpack.c.l.s4 1934713408
    %v4769 = vunpack.c.0.s8 %v4768
    %v4770 = vlaneseq
    %v4771 = vshrl.u32 %v4770, 7
    %v4772 = vsub.s32 %v4769, %v4771
    %v4773 = vrot.slane %v4759, %v4772
    %v4774 = vcombine.low %v4709, %v4725
    %v4775 = vcombine.high %v4709, %v4725
    %v4777 = vunpack.c.l.s4 1934713408
    %v4778 = vunpack.c.0.s8 %v4777
    %v4779 = vlaneseq
    %v4780 = vshrl.u32 %v4779, 7
    %v4781 = vsub.s32 %v4778, %v4780
    %v4782 = vrot.slane %v4774, %v4781
    %v4784 = vunpack.c.l.s4 1934713408
    %v4785 = vunpack.c.0.s8 %v4784
    %v4786 = vlaneseq
    %v4787 = vshrl.u32 %v4786, 7
    %v4788 = vsub.s32 %v4785, %v4787
    %v4789 = vrot.slane %v4775, %v4788
    %v4790 = vcombine.low %v4734, %v4766
    %v4791 = vcombine.high %v4734, %v4766
    %v4792 = vcombine.low %v4741, %v4773
    %v4793 = vcombine.high %v4741, %v4773
    %v4794 = vcombine.low %v4750, %v4782
    %v4795 = vcombine.high %v4750, %v4782
    %v4796 = vcombine.low %v4757, %v4789
    %v4797 = vcombine.high %v4757, %v4789
    %v4798 = vcombine.low %v4654, %v4656
    %v4799 = vcombine.high %v4654, %v4656
    %v4801 = vunpack.c.l.s4 1983009808
    %v4802 = vunpack.c.0.s8 %v4801
    %v4803 = vlaneseq
    %v4804 = vshrl.u32 %v4803, 7
    %v4805 = vsub.s32 %v4802, %v4804
    %v4806 = vrot.slane %v4798, %v4805
    %v4808 = vunpack.c.l.s4 1983009808
    %v4809 = vunpack.c.0.s8 %v4808
    %v4810 = vlaneseq
    %v4811 = vshrl.u32 %v4810, 7
    %v4812 = vsub.s32 %v4809, %v4811
    %v4813 = vrot.slane %v4799, %v4812
    %v4814 = vcombine.low %v4655, %v4657
    %v4815 = vcombine.high %v4655, %v4657
    %v4817 = vunpack.c.l.s4 1983009808
    %v4818 = vunpack.c.0.s8 %v4817
    %v4819 = vlaneseq
    %v4820 = vshrl.u32 %v4819, 7
    %v4821 = vsub.s32 %v4818, %v4820
    %v4822 = vrot.slane %v4814, %v4821
    %v4824 = vunpack.c.l.s4 1983009808
    %v4825 = vunpack.c.0.s8 %v4824
    %v4826 = vlaneseq
    %v4827 = vshrl.u32 %v4826, 7
    %v4828 = vsub.s32 %v4825, %v4827
    %v4829 = vrot.slane %v4815, %v4828
    %v4830 = vcombine.low %v4658, %v4660
    %v4831 = vcombine.high %v4658, %v4660
    %v4833 = vunpack.c.l.s4 1983009808
    %v4834 = vunpack.c.0.s8 %v4833
    %v4835 = vlaneseq
    %v4836 = vshrl.u32 %v4835, 7
    %v4837 = vsub.s32 %v4834, %v4836
    %v4838 = vrot.slane %v4830, %v4837
    %v4840 = vunpack.c.l.s4 1983009808
    %v4841 = vunpack.c.0.s8 %v4840
    %v4842 = vlaneseq
    %v4843 = vshrl.u32 %v4842, 7
    %v4844 = vsub.s32 %v4841, %v4843
    %v4845 = vrot.slane %v4831, %v4844
    %v4846 = vcombine.low %v4659, %v4661
    %v4847 = vcombine.high %v4659, %v4661
    %v4849 = vunpack.c.l.s4 1983009808
    %v4850 = vunpack.c.0.s8 %v4849
    %v4851 = vlaneseq
    %v4852 = vshrl.u32 %v4851, 7
    %v4853 = vsub.s32 %v4850, %v4852
    %v4854 = vrot.slane %v4846, %v4853
    %v4856 = vunpack.c.l.s4 1983009808
    %v4857 = vunpack.c.0.s8 %v4856
    %v4858 = vlaneseq
    %v4859 = vshrl.u32 %v4858, 7
    %v4860 = vsub.s32 %v4857, %v4859
    %v4861 = vrot.slane %v4847, %v4860
    %v4862 = vcombine.low %v4806, %v4822
    %v4863 = vcombine.high %v4806, %v4822
    %v4865 = vunpack.c.l.s4 1934713408
    %v4866 = vunpack.c.0.s8 %v4865
    %v4867 = vlaneseq
    %v4868 = vshrl.u32 %v4867, 7
    %v4869 = vsub.s32 %v4866, %v4868
    %v4870 = vrot.slane %v4862, %v4869
    %v4872 = vunpack.c.l.s4 1934713408
    %v4873 = vunpack.c.0.s8 %v4872
    %v4874 = vlaneseq
    %v4875 = vshrl.u32 %v4874, 7
    %v4876 = vsub.s32 %v4873, %v4875
    %v4877 = vrot.slane %v4863, %v4876
    %v4878 = vcombine.low %v4813, %v4829
    %v4879 = vcombine.high %v4813, %v4829
    %v4881 = vunpack.c.l.s4 1934713408
    %v4882 = vunpack.c.0.s8 %v4881
    %v4883 = vlaneseq
    %v4884 = vshrl.u32 %v4883, 7
    %v4885 = vsub.s32 %v4882, %v4884
    %v4886 = vrot.slane %v4878, %v4885
    %v4888 = vunpack.c.l.s4 1934713408
    %v4889 = vunpack.c.0.s8 %v4888
    %v4890 = vlaneseq
    %v4891 = vshrl.u32 %v4890, 7
    %v4892 = vsub.s32 %v4889, %v4891
    %v4893 = vrot.slane %v4879, %v4892
    %v4894 = vcombine.low %v4838, %v4854
    %v4895 = vcombine.high %v4838, %v4854
    %v4897 = vunpack.c.l.s4 1934713408
    %v4898 = vunpack.c.0.s8 %v4897
    %v4899 = vlaneseq
    %v4900 = vshrl.u32 %v4899, 7
    %v4901 = vsub.s32 %v4898, %v4900
    %v4902 = vrot.slane %v4894, %v4901
    %v4904 = vunpack.c.l.s4 1934713408
    %v4905 = vunpack.c.0.s8 %v4904
    %v4906 = vlaneseq
    %v4907 = vshrl.u32 %v4906, 7
    %v4908 = vsub.s32 %v4905, %v4907
    %v4909 = vrot.slane %v4895, %v4908
    %v4910 = vcombine.low %v4845, %v4861
    %v4911 = vcombine.high %v4845, %v4861
    %v4913 = vunpack.c.l.s4 1934713408
    %v4914 = vunpack.c.0.s8 %v4913
    %v4915 = vlaneseq
    %v4916 = vshrl.u32 %v4915, 7
    %v4917 = vsub.s32 %v4914, %v4916
    %v4918 = vrot.slane %v4910, %v4917
    %v4920 = vunpack.c.l.s4 1934713408
    %v4921 = vunpack.c.0.s8 %v4920
    %v4922 = vlaneseq
    %v4923 = vshrl.u32 %v4922, 7
    %v4924 = vsub.s32 %v4921, %v4923
    %v4925 = vrot.slane %v4911, %v4924
    %v4926 = vcombine.low %v4870, %v4902
    %v4927 = vcombine.high %v4870, %v4902
    %v4928 = vcombine.low %v4877, %v4909
    %v4929 = vcombine.high %v4877, %v4909
    %v4930 = vcombine.low %v4886, %v4918
    %v4931 = vcombine.high %v4886, %v4918
    %v4932 = vcombine.low %v4893, %v4925
    %v4933 = vcombine.high %v4893, %v4925
    %v4934 = vcombine.low %v4790, %v4792
    %v4935 = vcombine.high %v4790, %v4792
    %v4937 = vunpack.c.l.s4 1983009808
    %v4938 = vunpack.c.0.s8 %v4937
    %v4939 = vlaneseq
    %v4940 = vshrl.u32 %v4939, 7
    %v4941 = vsub.s32 %v4938, %v4940
    %v4942 = vrot.slane %v4934, %v4941
    %v4944 = vunpack.c.l.s4 1983009808
    %v4945 = vunpack.c.0.s8 %v4944
    %v4946 = vlaneseq
    %v4947 = vshrl.u32 %v4946, 7
    %v4948 = vsub.s32 %v4945, %v4947
    %v4949 = vrot.slane %v4935, %v4948
    %v4950 = vcombine.low %v4791, %v4793
    %v4951 = vcombine.high %v4791, %v4793
    %v4953 = vunpack.c.l.s4 1983009808
    %v4954 = vunpack.c.0.s8 %v4953
    %v4955 = vlaneseq
    %v4956 = vshrl.u32 %v4955, 7
    %v4957 = vsub.s32 %v4954, %v4956
    %v4958 = vrot.slane %v4950, %v4957
    %v4960 = vunpack.c.l.s4 1983009808
    %v4961 = vunpack.c.0.s8 %v4960
    %v4962 = vlaneseq
    %v4963 = vshrl.u32 %v4962, 7
    %v4964 = vsub.s32 %v4961, %v4963
    %v4965 = vrot.slane %v4951, %v4964
    %v4966 = vcombine.low %v4794, %v4796
    %v4967 = vcombine.high %v4794, %v4796
    %v4969 = vunpack.c.l.s4 1983009808
    %v4970 = vunpack.c.0.s8 %v4969
    %v4971 = vlaneseq
    %v4972 = vshrl.u32 %v4971, 7
    %v4973 = vsub.s32 %v4970, %v4972
    %v4974 = vrot.slane %v4966, %v4973
    %v4976 = vunpack.c.l.s4 1983009808
    %v4977 = vunpack.c.0.s8 %v4976
    %v4978 = vlaneseq
    %v4979 = vshrl.u32 %v4978, 7
    %v4980 = vsub.s32 %v4977, %v4979
    %v4981 = vrot.slane %v4967, %v4980
    %v4982 = vcombine.low %v4795, %v4797
    %v4983 = vcombine.high %v4795, %v4797
    %v4985 = vunpack.c.l.s4 1983009808
    %v4986 = vunpack.c.0.s8 %v4985
    %v4987 = vlaneseq
    %v4988 = vshrl.u32 %v4987, 7
    %v4989 = vsub.s32 %v4986, %v4988
    %v4990 = vrot.slane %v4982, %v4989
    %v4992 = vunpack.c.l.s4 1983009808
    %v4993 = vunpack.c.0.s8 %v4992
    %v4994 = vlaneseq
    %v4995 = vshrl.u32 %v4994, 7
    %v4996 = vsub.s32 %v4993, %v4995
    %v4997 = vrot.slane %v4983, %v4996
    %v4998 = vcombine.low %v4942, %v4958
    %v4999 = vcombine.high %v4942, %v4958
    %v5001 = vunpack.c.l.s4 1934713408
    %v5002 = vunpack.c.0.s8 %v5001
    %v5003 = vlaneseq
    %v5004 = vshrl.u32 %v5003, 7
    %v5005 = vsub.s32 %v5002, %v5004
    %v5006 = vrot.slane %v4998, %v5005
    %v5008 = vunpack.c.l.s4 1934713408
    %v5009 = vunpack.c.0.s8 %v5008
    %v5010 = vlaneseq
    %v5011 = vshrl.u32 %v5010, 7
    %v5012 = vsub.s32 %v5009, %v5011
    %v5013 = vrot.slane %v4999, %v5012
    %v5014 = vcombine.low %v4949, %v4965
    %v5015 = vcombine.high %v4949, %v4965
    %v5017 = vunpack.c.l.s4 1934713408
    %v5018 = vunpack.c.0.s8 %v5017
    %v5019 = vlaneseq
    %v5020 = vshrl.u32 %v5019, 7
    %v5021 = vsub.s32 %v5018, %v5020
    %v5022 = vrot.slane %v5014, %v5021
    %v5024 = vunpack.c.l.s4 1934713408
    %v5025 = vunpack.c.0.s8 %v5024
    %v5026 = vlaneseq
    %v5027 = vshrl.u32 %v5026, 7
    %v5028 = vsub.s32 %v5025, %v5027
    %v5029 = vrot.slane %v5015, %v5028
    %v5030 = vcombine.low %v4974, %v4990
    %v5031 = vcombine.high %v4974, %v4990
    %v5033 = vunpack.c.l.s4 1934713408
    %v5034 = vunpack.c.0.s8 %v5033
    %v5035 = vlaneseq
    %v5036 = vshrl.u32 %v5035, 7
    %v5037 = vsub.s32 %v5034, %v5036
    %v5038 = vrot.slane %v5030, %v5037
    %v5040 = vunpack.c.l.s4 1934713408
    %v5041 = vunpack.c.0.s8 %v5040
    %v5042 = vlaneseq
    %v5043 = vshrl.u32 %v5042, 7
    %v5044 = vsub.s32 %v5041, %v5043
    %v5045 = vrot.slane %v5031, %v5044
    %v5046 = vcombine.low %v4981, %v4997
    %v5047 = vcombine.high %v4981, %v4997
    %v5049 = vunpack.c.l.s4 1934713408
    %v5050 = vunpack.c.0.s8 %v5049
    %v5051 = vlaneseq
    %v5052 = vshrl.u32 %v5051, 7
    %v5053 = vsub.s32 %v5050, %v5052
    %v5054 = vrot.slane %v5046, %v5053
    %v5056 = vunpack.c.l.s4 1934713408
    %v5057 = vunpack.c.0.s8 %v5056
    %v5058 = vlaneseq
    %v5059 = vshrl.u32 %v5058, 7
    %v5060 = vsub.s32 %v5057, %v5059
    %v5061 = vrot.slane %v5047, %v5060
    %v5062 = vcombine.low %v5006, %v5038
    %v5063 = vcombine.high %v5006, %v5038
    %v5064 = vcombine.low %v5013, %v5045
    %v5065 = vcombine.high %v5013, %v5045
    %v5066 = vcombine.low %v5022, %v5054
    %v5067 = vcombine.high %v5022, %v5054
    %v5068 = vcombine.low %v5029, %v5061
    %v5069 = vcombine.high %v5029, %v5061
    %v5070 = vcombine.low %v4926, %v4928
    %v5071 = vcombine.high %v4926, %v4928
    %v5073 = vunpack.c.l.s4 1983009808
    %v5074 = vunpack.c.0.s8 %v5073
    %v5075 = vlaneseq
    %v5076 = vshrl.u32 %v5075, 7
    %v5077 = vsub.s32 %v5074, %v5076
    %v5078 = vrot.slane %v5070, %v5077
    %v5080 = vunpack.c.l.s4 1983009808
    %v5081 = vunpack.c.0.s8 %v5080
    %v5082 = vlaneseq
    %v5083 = vshrl.u32 %v5082, 7
    %v5084 = vsub.s32 %v5081, %v5083
    %v5085 = vrot.slane %v5071, %v5084
    %v5086 = vcombine.low %v4927, %v4929
    %v5087 = vcombine.high %v4927, %v4929
    %v5089 = vunpack.c.l.s4 1983009808
    %v5090 = vunpack.c.0.s8 %v5089
    %v5091 = vlaneseq
    %v5092 = vshrl.u32 %v5091, 7
    %v5093 = vsub.s32 %v5090, %v5092
    %v5094 = vrot.slane %v5086, %v5093
    %v5096 = vunpack.c.l.s4 1983009808
    %v5097 = vunpack.c.0.s8 %v5096
    %v5098 = vlaneseq
    %v5099 = vshrl.u32 %v5098, 7
    %v5100 = vsub.s32 %v5097, %v5099
    %v5101 = vrot.slane %v5087, %v5100
    %v5102 = vcombine.low %v4930, %v4932
    %v5103 = vcombine.high %v4930, %v4932
    %v5105 = vunpack.c.l.s4 1983009808
    %v5106 = vunpack.c.0.s8 %v5105
    %v5107 = vlaneseq
    %v5108 = vshrl.u32 %v5107, 7
    %v5109 = vsub.s32 %v5106, %v5108
    %v5110 = vrot.slane %v5102, %v5109
    %v5112 = vunpack.c.l.s4 1983009808
    %v5113 = vunpack.c.0.s8 %v5112
    %v5114 = vlaneseq
    %v5115 = vshrl.u32 %v5114, 7
    %v5116 = vsub.s32 %v5113, %v5115
    %v5117 = vrot.slane %v5103, %v5116
    %v5118 = vcombine.low %v4931, %v4933
    %v5119 = vcombine.high %v4931, %v4933
    %v5121 = vunpack.c.l.s4 1983009808
    %v5122 = vunpack.c.0.s8 %v5121
    %v5123 = vlaneseq
    %v5124 = vshrl.u32 %v5123, 7
    %v5125 = vsub.s32 %v5122, %v5124
    %v5126 = vrot.slane %v5118, %v5125
    %v5128 = vunpack.c.l.s4 1983009808
    %v5129 = vunpack.c.0.s8 %v5128
    %v5130 = vlaneseq
    %v5131 = vshrl.u32 %v5130, 7
    %v5132 = vsub.s32 %v5129, %v5131
    %v5133 = vrot.slane %v5119, %v5132
    %v5134 = vcombine.low %v5078, %v5094
    %v5135 = vcombine.high %v5078, %v5094
    %v5137 = vunpack.c.l.s4 1934713408
    %v5138 = vunpack.c.0.s8 %v5137
    %v5139 = vlaneseq
    %v5140 = vshrl.u32 %v5139, 7
    %v5141 = vsub.s32 %v5138, %v5140
    %v5142 = vrot.slane %v5134, %v5141
    %v5144 = vunpack.c.l.s4 1934713408
    %v5145 = vunpack.c.0.s8 %v5144
    %v5146 = vlaneseq
    %v5147 = vshrl.u32 %v5146, 7
    %v5148 = vsub.s32 %v5145, %v5147
    %v5149 = vrot.slane %v5135, %v5148
    %v5150 = vcombine.low %v5085, %v5101
    %v5151 = vcombine.high %v5085, %v5101
    %v5153 = vunpack.c.l.s4 1934713408
    %v5154 = vunpack.c.0.s8 %v5153
    %v5155 = vlaneseq
    %v5156 = vshrl.u32 %v5155, 7
    %v5157 = vsub.s32 %v5154, %v5156
    %v5158 = vrot.slane %v5150, %v5157
    %v5160 = vunpack.c.l.s4 1934713408
    %v5161 = vunpack.c.0.s8 %v5160
    %v5162 = vlaneseq
    %v5163 = vshrl.u32 %v5162, 7
    %v5164 = vsub.s32 %v5161, %v5163
    %v5165 = vrot.slane %v5151, %v5164
    %v5166 = vcombine.low %v5110, %v5126
    %v5167 = vcombine.high %v5110, %v5126
    %v5169 = vunpack.c.l.s4 1934713408
    %v5170 = vunpack.c.0.s8 %v5169
    %v5171 = vlaneseq
    %v5172 = vshrl.u32 %v5171, 7
    %v5173 = vsub.s32 %v5170, %v5172
    %v5174 = vrot.slane %v5166, %v5173
    %v5176 = vunpack.c.l.s4 1934713408
    %v5177 = vunpack.c.0.s8 %v5176
    %v5178 = vlaneseq
    %v5179 = vshrl.u32 %v5178, 7
    %v5180 = vsub.s32 %v5177, %v5179
    %v5181 = vrot.slane %v5167, %v5180
    %v5182 = vcombine.low %v5117, %v5133
    %v5183 = vcombine.high %v5117, %v5133
    %v5185 = vunpack.c.l.s4 1934713408
    %v5186 = vunpack.c.0.s8 %v5185
    %v5187 = vlaneseq
    %v5188 = vshrl.u32 %v5187, 7
    %v5189 = vsub.s32 %v5186, %v5188
    %v5190 = vrot.slane %v5182, %v5189
    %v5192 = vunpack.c.l.s4 1934713408
    %v5193 = vunpack.c.0.s8 %v5192
    %v5194 = vlaneseq
    %v5195 = vshrl.u32 %v5194, 7
    %v5196 = vsub.s32 %v5193, %v5195
    %v5197 = vrot.slane %v5183, %v5196
    %v5198 = vcombine.low %v5142, %v5174
    %v5199 = vcombine.high %v5142, %v5174
    %v5200 = vcombine.low %v5149, %v5181
    %v5201 = vcombine.high %v5149, %v5181
    %v5202 = vcombine.low %v5158, %v5190
    %v5203 = vcombine.high %v5158, %v5190
    %v5204 = vcombine.low %v5165, %v5197
    %v5205 = vcombine.high %v5165, %v5197
    %5208 = vrot.lane.b32.xlu0 %v5063, 3
    %v5209 = vpop.permute.xlu0 %5208
    %5210 = vrot.lane.b32.xlu0 %v5199, 3
    %v5211 = vpop.permute.xlu0 %5210
    %5216 = vrot.lane.b32.xlu0 %v5064, 6
    %v5217 = vpop.permute.xlu0 %5216
    %5218 = vrot.lane.b32.xlu0 %v5200, 6
    %v5219 = vpop.permute.xlu0 %5218
    %5224 = vrot.lane.b32.xlu0 %v5065, 9
    %v5225 = vpop.permute.xlu0 %5224
    %5226 = vrot.lane.b32.xlu0 %v5201, 9
    %v5227 = vpop.permute.xlu0 %5226
    %5232 = vrot.lane.b32.xlu0 %v5066, 12
    %v5233 = vpop.permute.xlu0 %5232
    %5234 = vrot.lane.b32.xlu0 %v5202, 12
    %v5235 = vpop.permute.xlu0 %5234
    %5240 = vrot.lane.b32.xlu0 %v5067, 15
    %v5241 = vpop.permute.xlu0 %5240
    %5242 = vrot.lane.b32.xlu0 %v5203, 15
    %v5243 = vpop.permute.xlu0 %5242
    %5248 = vrot.lane.b32.xlu0 %v5068, 18
    %v5249 = vpop.permute.xlu0 %5248
    %5250 = vrot.lane.b32.xlu0 %v5204, 18
    %v5251 = vpop.permute.xlu0 %5250
    %5256 = vrot.lane.b32.xlu0 %v5069, 21
    %v5257 = vpop.permute.xlu0 %5256
    %5258 = vrot.lane.b32.xlu0 %v5205, 21
    %v5259 = vpop.permute.xlu0 %5258
    %vm5262 = vcmask 23552
    %v5263 = vsel %vm5262, %v5062, %v5209
    %v5264 = vsel %vm5262, %v5198, %v5211
    %vm5265 = vcmask 48128
    %v5266 = vsel %vm5265, %v5263, %v5217
    %v5267 = vsel %vm5265, %v5264, %v5219
    %vm5268 = vcmask 72704
    %v5269 = vsel %vm5268, %v5266, %v5225
    %v5270 = vsel %vm5268, %v5267, %v5227
    %vm5271 = vcmask 97280
    %v5272 = vsel %vm5271, %v5269, %v5233
    %v5273 = vsel %vm5271, %v5270, %v5235
    %vm5274 = vcmask 121856
    %v5275 = vsel %vm5274, %v5272, %v5241
    %v5276 = vsel %vm5274, %v5273, %v5243
    %vm5277 = vcmask 146432
    %v5278 = vsel %vm5277, %v5275, %v5249
    %v5279 = vsel %vm5277, %v5276, %v5251
    %vm5280 = vcmask 171008
    %v5281 = vsel %vm5280, %v5278, %v5257
    %v5282 = vsel %vm5280, %v5279, %v5259
    %v5283 = vld [vmem:[%s4] sm:$0xff]
    %v5284 = vld [vmem:[%s4 + $0x8] sm:$0xff]
    %v5285 = vld [vmem:[%s4 + $0x10] sm:$0xff]
    %v5286 = vld [vmem:[%s5] sm:$0x1]
    %v5288 = vlaneseq
    %v5289 = vshrl.u32 %v5288, 7
    %v5290 = vsub.s32 0, %v5289
    %v5291 = vrot.slane %v5286, %v5290
    %v5294 = vsel %vm386, %v5281, 0
    %v5297 = vsel %vm386, %v5282, 0
    %5299 = vmatprep.subr.mxu0 0.0
    %5300 = vmatpush1.msra.mxu0 %v5283
    %5301 = vmatprep.subr.mxu0 0.0
    %5302 = vmatpush1.msra.mxu0 %v5284
    %5303 = vmatprep.subr.mxu0 0.0
    %5304 = vmatpush1.msra.mxu0 %v5285
    %5305 = vmatprep.subr.mxu0 0.0
    %5306 = vmatpush1.msra.mxu0 0.0
    %5307 = vmatprep.subr.mxu0 0.0
    %5308 = vmatpush1.msra.mxu0 0.0
    %5309 = vmatprep.subr.mxu0 0.0
    %5310 = vmatpush1.msra.mxu0 0.0
    %5311 = vmatprep.subr.mxu0 0.0
    %5312 = vmatpush1.msra.mxu0 0.0
    %5313 = vmatprep.subr.mxu0 0.0
    %5314 = vmatpush1.msra.mxu0 0.0
    %5315 = vmatprep.subr.mxu0 0.0
    %5316 = vmatpush1.msra.mxu0 0.0
    %5317 = vmatprep.subr.mxu0 0.0
    %5318 = vmatpush1.msra.mxu0 0.0
    %5319 = vmatprep.subr.mxu0 0.0
    %5320 = vmatpush1.msra.mxu0 0.0
    %5321 = vmatprep.subr.mxu0 0.0
    %5322 = vmatpush1.msra.mxu0 0.0
    %5323 = vmatprep.subr.mxu0 0.0
    %5324 = vmatpush1.msra.mxu0 0.0
    %5325 = vmatprep.subr.mxu0 0.0
    %5326 = vmatpush1.msra.mxu0 0.0
    %5327 = vmatprep.subr.mxu0 0.0
    %5328 = vmatpush1.msra.mxu0 0.0
    %5329 = vmatprep.subr.mxu0 0.0
    %5330 = vmatpush1.msra.mxu0 0.0
    %5331 = vmatprep.subr.mxu0 0.0
    %5332 = vmatpush1.msra.mxu0 0.0
    %5333 = vmatprep.subr.mxu0 0.0
    %5334 = vmatpush1.msra.mxu0 0.0
    %5335 = vmatprep.subr.mxu0 0.0
    %5336 = vmatpush1.msra.mxu0 0.0
    %5337 = vmatprep.subr.mxu0 0.0
    %5338 = vmatpush1.msra.mxu0 0.0
    %5339 = vmatprep.subr.mxu0 0.0
    %5340 = vmatpush1.msra.mxu0 0.0
    %5341 = vmatprep.subr.mxu0 0.0
    %5342 = vmatpush1.msra.mxu0 0.0
    %5343 = vmatprep.subr.mxu0 0.0
    %5344 = vmatpush1.msra.mxu0 0.0
    %5345 = vmatprep.subr.mxu0 0.0
    %5346 = vmatpush1.msra.mxu0 0.0
    %5347 = vmatprep.subr.mxu0 0.0
    %5348 = vmatpush1.msra.mxu0 0.0
    %5349 = vmatprep.subr.mxu0 0.0
    %5350 = vmatpush1.msra.mxu0 0.0
    %5351 = vmatprep.subr.mxu0 0.0
    %5352 = vmatpush1.msra.mxu0 0.0
    %5353 = vmatprep.subr.mxu0 0.0
    %5354 = vmatpush1.msra.mxu0 0.0
    %5355 = vmatprep.subr.mxu0 0.0
    %5356 = vmatpush1.msra.mxu0 0.0
    %5357 = vmatprep.subr.mxu0 0.0
    %5358 = vmatpush1.msra.mxu0 0.0
    %5359 = vmatprep.subr.mxu0 0.0
    %5360 = vmatpush1.msra.mxu0 0.0
    %5361 = vmatprep.subr.mxu0 0.0
    %5362 = vmatpush1.msra.mxu0 0.0
    %5363 = vmatprep.mubr.f32.mxu0 0.0
    %5364 = vmatmul.mubr.f32.gmra.mrb[0].mxu0 %v5294
    %v5365 = vpop.f32.mrb[0].mxu0
    %v5366 = vadd.f32 %v5291, %v5365
    %v5367 = vpop.f32.mrb[0].mxu0
    %5368 = vmatprep.mubr.f32.mxu0 0.0
    %5369 = vmatmul.mubr.f32.gmra.mrb[0].mxu0 %v5297
    %v5370 = vpop.f32.mrb[0].mxu0
    %v5371 = vadd.f32 %v5291, %v5370
    %v5372 = vpop.f32.mrb[0].mxu0
    %5373 = vdwg.mxu0
    %5374 = vmax.xlane.f32.xlu0 %v5366
    %v5375 = vpop.xlane.xlu0 %5374
    %5376 = vmax.xlane.f32.xlu0 %v5371
    %v5377 = vpop.xlane.xlu0 %5376
    %v5378 = vsub.f32 %v5366, %v5375
    %v5379 = vsub.f32 %v5371, %v5377
    %v5380 = vmul.f32 %v5378, 1.442695
    %v5381 = vpow.pop %v5380
    %v5382 = vmul.f32 %v5379, 1.442695
    %v5383 = vpow.pop %v5382
    %5384 = vadd.xlane.f32.xlu0 %v5381
    %v5385 = vpop.xlane.xlu0 %5384
    %5386 = vadd.xlane.f32.xlu0 %v5383
    %v5387 = vpop.xlane.xlu0 %5386
    %v5388 = vlog2.pop %v5385
    %v5389 = vmul.f32 %v5388, 0.6931472
    %v5390 = vlog2.pop %v5387
    %v5391 = vmul.f32 %v5390, 0.6931472
    %v5392 = vadd.f32 %v5375, %v5389
    %v5393 = vadd.f32 %v5377, %v5391
    %v5394 = vsub.f32 %v5366, %v5392
    %v5395 = vsub.f32 %v5371, %v5393
    %5396 = vst [vmem:[#allocation2] sm:$0xff] %v5394
    %5397 = vst [vmem:[#allocation2 + $0x8] sm:$0xff] %v5395
    // Predicated region
    $region26: #{tpu_custom_call.1} parent=1 // pred_check
      _
    $region27: #{tpu_custom_call.1} parent=1 // pred_check_branch
      %5399 = sbr.rel (0) target = $region29
    $region28: #{tpu_custom_call.1} parent=1 // pred_region
      %s5401 = ssub.s32 256, 256
      %5402 = vsyncadd [#allocation3], %s5401
      %s5403 = sshll.u32 [#allocation2], 4
      %s5404 = int_to_ptr.vmem [resolvable:$true] %s5403
      %5409 = dma.vmem_to_hbm [thread:$0]  %s5404, 256, %s6, [#allocation3], 128, 128, 8
    $region29: #{tpu_custom_call.1} parent=1 // pred_fallthru
      _
    // Predicated region
    $region30: #{tpu_custom_call.1} parent=1 // pred_check
      _
    $region31: #{tpu_custom_call.1} parent=1 // pred_check_branch
      %5411 = sbr.rel (0) target = $region33
    $region32: #{tpu_custom_call.1} parent=1 // pred_region
      %5412 = dma.done [#allocation3], 256
    $region33: #{tpu_custom_call.1} parent=1 // pred_fallthru
      _
    %5413 = vsyncpa [#allocation3], 1

</llo_original>
